<compile_context>
chip_gen: v6e
topology: v6e:2x2x1
jax: 0.10.0
libtpu: 0.0.40
codegen_flags: <defaults>
</compile_context>

<pallas_src>
import functools
import math

import jax
import jax.numpy as jnp
from jax import lax
from jax.experimental import pallas as pl
from jax.experimental.pallas import tpu as pltpu


def _round_up(v: int, m: int) -> int:
    return -(-v // m) * m


def _sigmoid(x):
    # Explicit form: exp + divide, guaranteed Mosaic lowering (EUP ops).
    return 1.0 / (1.0 + jnp.exp(-x))


# ---------------------------------------------------------------------------
# Kernel A -- small H (Hp <= 128): both directions fused into one
# block-diagonal hidden matmul per time step (single MXU push; latency-bound).
# ---------------------------------------------------------------------------
def _bilstm_fused_kernel(xproj_ref, whh_ref, h_out_ref, c_out_ref, h_sc, c_sc,
                         *, t_total, t_chunk, mask_tail):
    blk = pl.program_id(0)

    @pl.when(blk == 0)
    def _():
        h_sc[...] = jnp.zeros_like(h_sc)
        c_sc[...] = jnp.zeros_like(c_sc)

    whh = whh_ref[...]                       # (2Hp, 8Hp) bf16 block-diagonal
    S = h_sc.shape[-1]                       # 2 * Hp

    h = h_sc[...]
    c = c_sc[...]
    # Fully unrolled static loop: t_chunk is a small Python int and at
    # Hp <= 128 the per-step live set is only a handful of vregs.
    for t in range(t_chunk):
        gates = xproj_ref[t].astype(jnp.float32) + jnp.dot(
            h.astype(whh.dtype), whh, preferred_element_type=jnp.float32)
        # Columns: [ i_f|i_b | f_f|f_b | o_f|o_b | g_f|g_b ] -> one contiguous
        # sigmoid slab for i/f/o and one tanh slab for g.
        sig = _sigmoid(gates[:, :3 * S])
        i_g = sig[:, 0 * S:1 * S]
        f_g = sig[:, 1 * S:2 * S]
        o_g = sig[:, 2 * S:3 * S]
        g_g = jnp.tanh(gates[:, 3 * S:])
        c_new = f_g * c + i_g * g_g
        if mask_tail:
            # Padded tail steps only exist in the LAST time block, so only the
            # cell-state carry needs masking: a garbage h never reaches a valid
            # step and padded h_out rows are sliced off by the wrapper.
            c = jnp.where(blk * t_chunk + t < t_total, c_new, c)
        else:
            c = c_new
        h = o_g * jnp.tanh(c_new)
        h_out_ref[t] = h                     # lane-dense (Bp, 2Hp) store

    h_sc[...] = h
    c_sc[...] = c
    c_out_ref[...] = c                       # cheap; robust vs. when(last)-only


# ---------------------------------------------------------------------------
# Kernel B -- large H (Hp > 128): one direction per grid program.  Direction
# axis is 'parallel' (v7x: one direction per TensorCore) and the hidden matmul
# is the exact per-direction (Bp,Hp)x(Hp,4Hp) product.
# ---------------------------------------------------------------------------
def _bilstm_dir_kernel(xproj_ref, whh_ref, h_out_ref, c_out_ref, h_sc, c_sc,
                       *, t_total, t_chunk, mask_tail, unroll):
    blk = pl.program_id(1)

    @pl.when(blk == 0)                       # also re-inits when direction flips
    def _():
        h_sc[...] = jnp.zeros_like(h_sc)
        c_sc[...] = jnp.zeros_like(c_sc)

    whh = whh_ref[...]                       # (Hp, 4Hp) bf16, this direction
    Hp = h_sc.shape[-1]

    def step(t, carry):
        h, c = carry
        gates = xproj_ref[t].astype(jnp.float32) + jnp.dot(
            h.astype(whh.dtype), whh, preferred_element_type=jnp.float32)
        sig = _sigmoid(gates[:, :3 * Hp])    # [ i | f | o ] contiguous slab
        i_g = sig[:, 0 * Hp:1 * Hp]
        f_g = sig[:, 1 * Hp:2 * Hp]
        o_g = sig[:, 2 * Hp:3 * Hp]
        g_g = jnp.tanh(gates[:, 3 * Hp:])
        c_new = f_g * c + i_g * g_g
        if mask_tail:
            c_next = jnp.where(blk * t_chunk + t < t_total, c_new, c)
        else:
            c_next = c_new
        h_new = o_g * jnp.tanh(c_new)
        h_out_ref[t] = h_new
        return h_new, c_next

    # Capped unroll bounds the per-step live set (gates + gate slabs + h + c)
    # so large Hp does not spill the 64-vreg file.
    h, c = lax.fori_loop(0, t_chunk, step, (h_sc[...], c_sc[...]), unroll=unroll)
    h_sc[...] = h
    c_sc[...] = c
    c_out_ref[...] = c


def bilstm_forward(x, params_fwd, params_bwd, *, max_time_block=32,
                   split_directions=None, whh_dtype=jnp.bfloat16,
                   xproj_dtype=jnp.bfloat16):
    """x: (T, B, D) float32, layout (seq, batch, feature) i.e. batch_first=False.

    Returns (output (T, B, 2H), (h_n (1, B, 2H), c_n (1, B, 2H))) matching
    BiLSTM.forward(x, init_states=None) with num_layers=1.
    """
    T, B, D = x.shape
    wih_f, whh_f, bih_f, bhh_f = params_fwd
    wih_b, whh_b, bih_b, bhh_b = params_bwd
    H = whh_f.shape[0]

    Bp = _round_up(B, 8)                      # sublane multiple
    Hp = _round_up(H, 64)                     # 2Hp / 4Hp / 8Hp lane multiples
    if split_directions is None:
        # Tiny H: latency-bound -> one fused block-diag push beats two
        # sequential half-size pushes on 1-TC chips.  Large H: per-direction
        # matmuls halve MXU work + resident W_hh and enable the v7x 2-TC split.
        split_directions = Hp > 128

    Tc = min(T, max_time_block)
    n_blk = -(-T // Tc)                       # ceil: Tc never degrades
    Tp = n_blk * Tc
    mask_tail = Tp != T

    # ---- per-direction weight re-layout: gate order [ i | f | o | g ] ------
    # (PyTorch column order is [i, f, g, o]; moving g last lets sigmoid act on
    #  one contiguous 3*Hp slab.)  Gate blocks are zero-padded H -> Hp, so the
    #  padded columns stay exactly zero throughout the recurrence.
    def dir_weights(wih, whh, bih, bhh):
        def cols(w):
            i, f, g, o = [w[:, k * H:(k + 1) * H] for k in range(4)]
            return [jnp.pad(v, ((0, 0), (0, Hp - H))) for v in (i, f, o, g)]

        wih_c = jnp.concatenate(cols(wih), axis=-1)                     # (D, 4Hp)
        whh_c = jnp.concatenate(cols(jnp.pad(whh, ((0, Hp - H), (0, 0)))),
                                axis=-1)                                # (Hp, 4Hp)
        b = bih + bhh                                                   # fold biases
        i, f, g, o = [b[k * H:(k + 1) * H] for k in range(4)]
        bias_c = jnp.concatenate([jnp.pad(v, (0, Hp - H)) for v in (i, f, o, g)])
        return wih_c, whh_c, bias_c

    wih_fc, whh_fc, bias_fc = dir_weights(wih_f, whh_f, bih_f, bhh_f)
    wih_bc, whh_bc, bias_bc = dir_weights(wih_b, whh_b, bih_b, bhh_b)

    # ---- hoisted input projection (one big matmul, off the serial path) ----
    x_p = jnp.pad(x, ((0, 0), (0, Bp - B), (0, 0))).reshape(T * Bp, D)

    xbytes = jnp.dtype(xproj_dtype).itemsize
    wbytes = jnp.dtype(whh_dtype).itemsize

    if not split_directions:
        # ---------------- fused block-diagonal path (Hp <= 128) -------------
        G = 8 * Hp

        def fuse_cols(wf, wb):               # [i_f|i_b|f_f|f_b|o_f|o_b|g_f|g_b]
            blocks = []
            for k in range(4):
                blocks.append(wf[..., k * Hp:(k + 1) * Hp])
                blocks.append(wb[..., k * Hp:(k + 1) * Hp])
            return jnp.concatenate(blocks, axis=-1)

        W_ih = fuse_cols(wih_fc, wih_bc)                                # (D, 8Hp)
        bias = fuse_cols(bias_fc, bias_bc)                              # (8Hp,)
        Z = jnp.zeros((Hp, Hp), jnp.float32)

        def hh_rows(whh_c, pos):             # forward rows feed only *_f columns
            blocks = []
            for k in range(4):
                gk = whh_c[:, k * Hp:(k + 1) * Hp]
                blocks.extend([gk, Z] if pos == 0 else [Z, gk])
            return jnp.concatenate(blocks, axis=-1)

        whh_arr = jnp.concatenate([hh_rows(whh_fc, 0), hh_rows(whh_bc, 1)],
                                  axis=0).astype(whh_dtype)             # (2Hp, 8Hp)

        xproj = (jnp.dot(x_p, W_ih, preferred_element_type=jnp.float32)
                 + bias).reshape(T, Bp, G)
        xproj = jnp.pad(xproj, ((0, Tp - T), (0, 0), (0, 0))).astype(xproj_dtype)

        kernel = functools.partial(_bilstm_fused_kernel, t_total=T, t_chunk=Tc,
                                   mask_tail=mask_tail)
        grid = (n_blk,)
        dim_sem = ("arbitrary",)              # sequential time carry
        xproj_spec = pl.BlockSpec((Tc, Bp, G), lambda b: (b, 0, 0))
        whh_block, whh_imap = (2 * Hp, G), (lambda b: (0, 0))
        out_specs = [pl.BlockSpec((Tc, Bp, 2 * Hp), lambda b: (b, 0, 0)),
                     pl.BlockSpec((Bp, 2 * Hp), lambda b: (0, 0))]
        out_shapes = (jax.ShapeDtypeStruct((Tp, Bp, 2 * Hp), jnp.float32),
                      jax.ShapeDtypeStruct((Bp, 2 * Hp), jnp.float32))
        scratch = [pltpu.VMEM((Bp, 2 * Hp), jnp.float32),
                   pltpu.VMEM((Bp, 2 * Hp), jnp.float32)]
        vmem_est = (2 * Tc * Bp * G * xbytes          # xproj (double buffered)
                    + 2 * Hp * G * wbytes             # W_hh  (single buffer)
                    + 2 * Tc * Bp * 2 * Hp * 4        # h_out (double buffered)
                    + 2 * Bp * 2 * Hp * 4             # c_out
                    + 2 * Bp * 2 * Hp * 4)            # h/c scratch
    else:
        # ---------------- per-direction path (Hp > 128 / v7x) ---------------
        Gd = 4 * Hp
        xp_f = (jnp.dot(x_p, wih_fc, preferred_element_type=jnp.float32)
                + bias_fc).reshape(T, Bp, Gd)
        xp_b = (jnp.dot(x_p, wih_bc, preferred_element_type=jnp.float32)
                + bias_bc).reshape(T, Bp, Gd)
        xproj = jnp.stack([xp_f, xp_b], axis=0)                         # (2,T,Bp,4Hp)
        xproj = jnp.pad(xproj, ((0, 0), (0, Tp - T), (0, 0), (0, 0))
                        ).astype(xproj_dtype)
        whh_arr = jnp.stack([whh_fc, whh_bc], axis=0).astype(whh_dtype)  # (2,Hp,4Hp)

        # Cap the in-kernel unroll so the per-step live set stays ~< 48 vregs.
        if Hp <= 256:
            unroll = 4
        elif Hp <= 512:
            unroll = 2
        else:
            unroll = 1
        unroll = max(1, min(unroll, Tc))

        kernel = functools.partial(_bilstm_dir_kernel, t_total=T, t_chunk=Tc,
                                   mask_tail=mask_tail, unroll=unroll)
        grid = (2, n_blk)                     # (direction, time-block)
        dim_sem = ("parallel", "arbitrary")   # v7x: one direction per TensorCore
        xproj_spec = pl.BlockSpec((None, Tc, Bp, Gd), lambda d, b: (d, b, 0, 0))
        whh_block, whh_imap = (None, Hp, Gd), (lambda d, b: (d, 0, 0))
        out_specs = [pl.BlockSpec((None, Tc, Bp, Hp), lambda d, b: (d, b, 0, 0)),
                     pl.BlockSpec((None, Bp, Hp), lambda d, b: (d, 0, 0))]
        out_shapes = (jax.ShapeDtypeStruct((2, Tp, Bp, Hp), jnp.float32),
                      jax.ShapeDtypeStruct((2, Bp, Hp), jnp.float32))
        scratch = [pltpu.VMEM((Bp, Hp), jnp.float32),
                   pltpu.VMEM((Bp, Hp), jnp.float32)]
        vmem_est = (2 * Tc * Bp * Gd * xbytes
                    + Hp * Gd * wbytes
                    + 2 * Tc * Bp * Hp * 4
                    + 2 * Bp * Hp * 4
                    + 2 * Bp * Hp * 4)

    # Scoped-VMEM budget sized from the actual buffers (+ headroom), floored at
    # the 32 MiB default so small configs never regress, capped at 128 MiB
    # (v5e/v6e physical; very large H on v7x must shrink Tc instead).
    vmem_limit = int(max(32 << 20, min(128 << 20, vmem_est + (8 << 20))))
    cparams = pltpu.CompilerParams(dimension_semantics=dim_sem,
                                   vmem_limit_bytes=vmem_limit)

    def _run(whh_spec):
        grid_spec = pltpu.PrefetchScalarGridSpec(
            num_scalar_prefetch=0, grid=grid,
            in_specs=[xproj_spec, whh_spec],
            out_specs=out_specs, scratch_shapes=scratch)
        return pl.pallas_call(kernel, out_shape=out_shapes, grid_spec=grid_spec,
                              compiler_params=cparams)(xproj, whh_arr)

    # W_hh is grid-invariant -> request a single resident VMEM buffer (halves
    # its footprint vs. default double buffering; matters on v7x's 64 MiB).
    try:
        h_all, c_fin = _run(pl.BlockSpec(whh_block, whh_imap,
                                         pipeline_mode=pl.Buffered(1)))
    except Exception:   # pragma: no cover -- Pallas w/o per-spec buffer counts
        h_all, c_fin = _run(pl.BlockSpec(whh_block, whh_imap))

    # ---- strip padding / assemble PyTorch-layout results -------------------
    if not split_directions:
        h_all = h_all[:T, :B]
        c_fin = c_fin[:B]
        if Hp == H:                           # skip re-concat when lane-aligned
            output, c_cat = h_all, c_fin
        else:
            output = jnp.concatenate([h_all[..., :H], h_all[..., Hp:Hp + H]], -1)
            c_cat = jnp.concatenate([c_fin[..., :H], c_fin[..., Hp:Hp + H]], -1)
    else:
        output = jnp.concatenate([h_all[0, :T, :B, :H], h_all[1, :T, :B, :H]], -1)
        c_cat = jnp.concatenate([c_fin[0, :B, :H], c_fin[1, :B, :H]], -1)

    h_n = output[-1][None]                    # (1, B, 2H)
    c_n = c_cat[None]                         # (1, B, 2H)
    return output, (h_n, c_n)


def init_lstm_cell_params(key, input_size, hidden_size):
    """Matches LSTMCell.init_parameters: uniform(-1/sqrt(H), 1/sqrt(H))."""
    stdv = 1.0 / math.sqrt(hidden_size)
    k = jax.random.split(key, 4)
    wih = jax.random.uniform(k[0], (input_size, 4 * hidden_size), jnp.float32, -stdv, stdv)
    whh = jax.random.uniform(k[1], (hidden_size, 4 * hidden_size), jnp.float32, -stdv, stdv)
    bih = jax.random.uniform(k[2], (4 * hidden_size,), jnp.float32, -stdv, stdv)
    bhh = jax.random.uniform(k[3], (4 * hidden_size,), jnp.float32, -stdv, stdv)
    return wih, whh, bih, bhh


def _reference_bilstm(x, params_fwd, params_bwd):
    """Pure-JAX f32 reference mirroring the PyTorch forward (init_states=None)."""
    T, B, _ = x.shape
    H = params_fwd[1].shape[0]

    def run_cell(params):
        wih, whh, bih, bhh = params
        h = jnp.zeros((B, H), jnp.float32)
        c = jnp.zeros((B, H), jnp.float32)
        hs = []
        for t in range(T):
            gates = x[t] @ wih + bih + h @ whh + bhh
            i_g, f_g, g_g, o_g = jnp.split(gates, 4, axis=1)
            c = jax.nn.sigmoid(f_g) * c + jax.nn.sigmoid(i_g) * jnp.tanh(g_g)
            h = jax.nn.sigmoid(o_g) * jnp.tanh(c)
            hs.append(h)
        return jnp.stack(hs, 0), h, c

    hf, hf_n, cf_n = run_cell(params_fwd)
    hb, hb_n, cb_n = run_cell(params_bwd)
    out = jnp.concatenate([hf, hb], -1)
    h_n = jnp.concatenate([hf_n, hb_n], -1)[None]
    c_n = jnp.concatenate([cf_n, cb_n], -1)[None]
    return out, (h_n, c_n)


def _check(name, x, pf, pb, **kw):
    out, (h_n, c_n) = bilstm_forward(x, pf, pb, **kw)
    jax.block_until_ready((out, h_n, c_n))
    ref_out, (ref_h, ref_c) = _reference_bilstm(x, pf, pb)
    T, B, _ = x.shape
    H = pf[1].shape[0]
    assert out.shape == (T, B, 2 * H), (name, out.shape)
    assert h_n.shape == (1, B, 2 * H) and c_n.shape == (1, B, 2 * H), name
    # bf16 W_hh / xproj -> tolerance loosened vs. the f32 reference.
    assert jnp.allclose(out, ref_out, atol=2e-2, rtol=2e-2), (
        name, float(jnp.abs(out - ref_out).max()))
    assert jnp.allclose(h_n, ref_h, atol=2e-2, rtol=2e-2), name
    assert jnp.allclose(c_n, ref_c, atol=2e-2, rtol=2e-2), name


if __name__ == "__main__":
    key = jax.random.PRNGKey(0)
    k1, k2, k3, k4, k5, k6 = jax.random.split(key, 6)

    # Small config exercising the fused block-diagonal (Hp <= 128) path.
    T, B, D, H = 8, 2, 16, 32
    x = jax.random.normal(k1, (T, B, D), jnp.float32)      # (seq, batch, feature)
    pf = init_lstm_cell_params(k2, D, H)
    pb = init_lstm_cell_params(k3, D, H)
    _check("fused_small", x, pf, pb)

    # Larger-H config exercising the per-direction ('parallel' direction axis)
    # path, batch padding, and a ragged time tail (T not a multiple of Tc).
    T2, B2, D2, H2 = 7, 3, 16, 256
    x2 = jax.random.normal(k4, (T2, B2, D2), jnp.float32)
    pf2 = init_lstm_cell_params(k5, D2, H2)
    pb2 = init_lstm_cell_params(k6, D2, H2)
    _check("split_large", x2, pf2, pb2, max_time_block=4)

    print("KERNEL_OK")
</pallas_src>

<mosaic_0001>
module attributes {stable_mosaic.version = 11 : i64} {
  func.func @_bilstm_fused_kernel(%arg0: i32, %arg1: memref<8x8x512xbf16, #tpu.memory_space<vmem>>, %arg2: memref<128x512xbf16, #tpu.memory_space<vmem>>, %arg3: memref<8x8x128xf32, #tpu.memory_space<vmem>>, %arg4: memref<8x128xf32, #tpu.memory_space<vmem>>, %arg5: memref<8x128xf32, #tpu.memory_space<vmem>>, %arg6: memref<8x128xf32, #tpu.memory_space<vmem>>) attributes {dimension_semantics = [#tpu.dimension_semantics<arbitrary>], iteration_bounds = array<i64: 1>, scalar_prefetch = 0 : i64, scratch_operands = 2 : i64, tpu.core_type = #tpu.core_type<tc>, window_params = [{transform_indices = @transform_0, window_bounds = array<i64: 8, 8, 512>}, {pipeline_mode = #tpu.pipeline_mode<synchronous>, transform_indices = @transform_1, window_bounds = array<i64: 128, 512>}, {transform_indices = @transform_2, window_bounds = array<i64: 8, 8, 128>}, {pipeline_mode = #tpu.pipeline_mode<synchronous>, transform_indices = @transform_3, window_bounds = array<i64: 8, 128>}]} {
    %c0_i32 = arith.constant 0 : i32
    %0 = arith.cmpi eq, %arg0, %c0_i32 : i32
    %1 = arith.extui %0 : i1 to i32
    %c0_i32_0 = arith.constant 0 : i32
    %2 = arith.cmpi ne, %1, %c0_i32_0 : i32
    scf.if %2 {
      %cst_84 = arith.constant 0.000000e+00 : f32
      %225 = vector.broadcast %cst_84 : f32 to vector<8x128xf32>
      %c0_85 = arith.constant 0 : index
      %c0_86 = arith.constant 0 : index
      %226 = vector.load %arg5[%c0_85, %c0_86] : memref<8x128xf32, #tpu.memory_space<vmem>>, vector<8x128xf32>
      tpu.vector_store %arg5[%c0_85, %c0_86], %225 {strides = array<i32>} : memref<8x128xf32, #tpu.memory_space<vmem>>, vector<8x128xf32>,
      %cst_87 = arith.constant 0.000000e+00 : f32
      %227 = vector.broadcast %cst_87 : f32 to vector<8x128xf32>
      %c0_88 = arith.constant 0 : index
      %c0_89 = arith.constant 0 : index
      %228 = vector.load %arg6[%c0_88, %c0_89] : memref<8x128xf32, #tpu.memory_space<vmem>>, vector<8x128xf32>
      tpu.vector_store %arg6[%c0_88, %c0_89], %227 {strides = array<i32>} : memref<8x128xf32, #tpu.memory_space<vmem>>, vector<8x128xf32>,
    } else {
    }
    %c0 = arith.constant 0 : index
    %c0_1 = arith.constant 0 : index
    %3 = vector.load %arg2[%c0, %c0_1] : memref<128x512xbf16, #tpu.memory_space<vmem>>, vector<128x512xbf16>
    %c0_2 = arith.constant 0 : index
    %c0_3 = arith.constant 0 : index
    %4 = vector.load %arg5[%c0_2, %c0_3] : memref<8x128xf32, #tpu.memory_space<vmem>>, vector<8x128xf32>
    %c0_4 = arith.constant 0 : index
    %c0_5 = arith.constant 0 : index
    %5 = vector.load %arg6[%c0_4, %c0_5] : memref<8x128xf32, #tpu.memory_space<vmem>>, vector<8x128xf32>
    %c0_6 = arith.constant 0 : index
    %c0_7 = arith.constant 0 : index
    %c0_8 = arith.constant 0 : index
    %6 = vector.load %arg1[%c0_6, %c0_7, %c0_8] : memref<8x8x512xbf16, #tpu.memory_space<vmem>>, vector<1x8x512xbf16>
    %7 = vector.shape_cast %6 : vector<1x8x512xbf16> to vector<8x512xbf16>
    %8 = arith.extf %7 : vector<8x512xbf16> to vector<8x512xf32>
    %9 = arith.truncf %4 : vector<8x128xf32> to vector<8x128xbf16>
    %cst = arith.constant dense<0.000000e+00> : vector<8x512xf32>
    %10 = tpu.matmul %9, %3, %cst {dimension_numbers = #tpu.dot_dimension_numbers<[1], [0], [0], [1], [0, 0, 1, 1], [], []>} : vector<8x128xbf16>, vector<128x512xbf16>, vector<8x512xf32> -> vector<8x512xf32>
    %11 = arith.addf %8, %10 : vector<8x512xf32>
    %12 = vector.extract_strided_slice %11 {offsets = [0, 0], sizes = [8, 384], strides = [1, 1]} : vector<8x512xf32> to vector<8x384xf32>
    %cst_9 = arith.constant 0.000000e+00 : f32
    %13 = vector.broadcast %cst_9 : f32 to vector<8x384xf32>
    %14 = arith.subf %13, %12 : vector<8x384xf32>
    %15 = math.exp %14 : vector<8x384xf32>
    %cst_10 = arith.constant 1.000000e+00 : f32
    %16 = vector.broadcast %cst_10 : f32 to vector<8x384xf32>
    %17 = arith.addf %16, %15 : vector<8x384xf32>
    %cst_11 = arith.constant 1.000000e+00 : f32
    %18 = vector.broadcast %cst_11 : f32 to vector<8x384xf32>
    %19 = arith.divf %18, %17 : vector<8x384xf32>
    %20 = vector.extract_strided_slice %19 {offsets = [0, 0], sizes = [8, 128], strides = [1, 1]} : vector<8x384xf32> to vector<8x128xf32>
    %21 = vector.extract_strided_slice %19 {offsets = [0, 128], sizes = [8, 128], strides = [1, 1]} : vector<8x384xf32> to vector<8x128xf32>
    %22 = vector.extract_strided_slice %19 {offsets = [0, 256], sizes = [8, 128], strides = [1, 1]} : vector<8x384xf32> to vector<8x128xf32>
    %23 = vector.extract_strided_slice %11 {offsets = [0, 384], sizes = [8, 128], strides = [1, 1]} : vector<8x512xf32> to vector<8x128xf32>
    %24 = math.tanh %23 : vector<8x128xf32>
    %25 = arith.mulf %21, %5 : vector<8x128xf32>
    %26 = arith.mulf %20, %24 : vector<8x128xf32>
    %27 = arith.addf %25, %26 : vector<8x128xf32>
    %28 = math.tanh %27 : vector<8x128xf32>
    %29 = arith.mulf %22, %28 : vector<8x128xf32>
    %c0_12 = arith.constant 0 : index
    %c0_13 = arith.constant 0 : index
    %c0_14 = arith.constant 0 : index
    %30 = vector.load %arg3[%c0_12, %c0_13, %c0_14] : memref<8x8x128xf32, #tpu.memory_space<vmem>>, vector<1x8x128xf32>
    %31 = vector.shape_cast %30 : vector<1x8x128xf32> to vector<8x128xf32>
    %32 = vector.shape_cast %29 : vector<8x128xf32> to vector<1x8x128xf32>
    tpu.vector_store %arg3[%c0_12, %c0_13, %c0_14], %32 {strides = array<i32>} : memref<8x8x128xf32, #tpu.memory_space<vmem>>, vector<1x8x128xf32>,
    %c1 = arith.constant 1 : index
    %c0_15 = arith.constant 0 : index
    %c0_16 = arith.constant 0 : index
    %33 = vector.load %arg1[%c1, %c0_15, %c0_16] : memref<8x8x512xbf16, #tpu.memory_space<vmem>>, vector<1x8x512xbf16>
    %34 = vector.shape_cast %33 : vector<1x8x512xbf16> to vector<8x512xbf16>
    %35 = arith.extf %34 : vector<8x512xbf16> to vector<8x512xf32>
    %36 = arith.truncf %29 : vector<8x128xf32> to vector<8x128xbf16>
    %cst_17 = arith.constant dense<0.000000e+00> : vector<8x512xf32>
    %37 = tpu.matmul %36, %3, %cst_17 {dimension_numbers = #tpu.dot_dimension_numbers<[1], [0], [0], [1], [0, 0, 1, 1], [], []>} : vector<8x128xbf16>, vector<128x512xbf16>, vector<8x512xf32> -> vector<8x512xf32>
    %38 = arith.addf %35, %37 : vector<8x512xf32>
    %39 = vector.extract_strided_slice %38 {offsets = [0, 0], sizes = [8, 384], strides = [1, 1]} : vector<8x512xf32> to vector<8x384xf32>
    %cst_18 = arith.constant 0.000000e+00 : f32
    %40 = vector.broadcast %cst_18 : f32 to vector<8x384xf32>
    %41 = arith.subf %40, %39 : vector<8x384xf32>
    %42 = math.exp %41 : vector<8x384xf32>
    %cst_19 = arith.constant 1.000000e+00 : f32
    %43 = vector.broadcast %cst_19 : f32 to vector<8x384xf32>
    %44 = arith.addf %43, %42 : vector<8x384xf32>
    %cst_20 = arith.constant 1.000000e+00 : f32
    %45 = vector.broadcast %cst_20 : f32 to vector<8x384xf32>
    %46 = arith.divf %45, %44 : vector<8x384xf32>
    %47 = vector.extract_strided_slice %46 {offsets = [0, 0], sizes = [8, 128], strides = [1, 1]} : vector<8x384xf32> to vector<8x128xf32>
    %48 = vector.extract_strided_slice %46 {offsets = [0, 128], sizes = [8, 128], strides = [1, 1]} : vector<8x384xf32> to vector<8x128xf32>
    %49 = vector.extract_strided_slice %46 {offsets = [0, 256], sizes = [8, 128], strides = [1, 1]} : vector<8x384xf32> to vector<8x128xf32>
    %50 = vector.extract_strided_slice %38 {offsets = [0, 384], sizes = [8, 128], strides = [1, 1]} : vector<8x512xf32> to vector<8x128xf32>
    %51 = math.tanh %50 : vector<8x128xf32>
    %52 = arith.mulf %48, %27 : vector<8x128xf32>
    %53 = arith.mulf %47, %51 : vector<8x128xf32>
    %54 = arith.addf %52, %53 : vector<8x128xf32>
    %55 = math.tanh %54 : vector<8x128xf32>
    %56 = arith.mulf %49, %55 : vector<8x128xf32>
    %c1_21 = arith.constant 1 : index
    %c0_22 = arith.constant 0 : index
    %c0_23 = arith.constant 0 : index
    %57 = vector.load %arg3[%c1_21, %c0_22, %c0_23] : memref<8x8x128xf32, #tpu.memory_space<vmem>>, vector<1x8x128xf32>
    %58 = vector.shape_cast %57 : vector<1x8x128xf32> to vector<8x128xf32>
    %59 = vector.shape_cast %56 : vector<8x128xf32> to vector<1x8x128xf32>
    tpu.vector_store %arg3[%c1_21, %c0_22, %c0_23], %59 {strides = array<i32>} : memref<8x8x128xf32, #tpu.memory_space<vmem>>, vector<1x8x128xf32>,
    %c2 = arith.constant 2 : index
    %c0_24 = arith.constant 0 : index
    %c0_25 = arith.constant 0 : index
    %60 = vector.load %arg1[%c2, %c0_24, %c0_25] : memref<8x8x512xbf16, #tpu.memory_space<vmem>>, vector<1x8x512xbf16>
    %61 = vector.shape_cast %60 : vector<1x8x512xbf16> to vector<8x512xbf16>
    %62 = arith.extf %61 : vector<8x512xbf16> to vector<8x512xf32>
    %63 = arith.truncf %56 : vector<8x128xf32> to vector<8x128xbf16>
    %cst_26 = arith.constant dense<0.000000e+00> : vector<8x512xf32>
    %64 = tpu.matmul %63, %3, %cst_26 {dimension_numbers = #tpu.dot_dimension_numbers<[1], [0], [0], [1], [0, 0, 1, 1], [], []>} : vector<8x128xbf16>, vector<128x512xbf16>, vector<8x512xf32> -> vector<8x512xf32>
    %65 = arith.addf %62, %64 : vector<8x512xf32>
    %66 = vector.extract_strided_slice %65 {offsets = [0, 0], sizes = [8, 384], strides = [1, 1]} : vector<8x512xf32> to vector<8x384xf32>
    %cst_27 = arith.constant 0.000000e+00 : f32
    %67 = vector.broadcast %cst_27 : f32 to vector<8x384xf32>
    %68 = arith.subf %67, %66 : vector<8x384xf32>
    %69 = math.exp %68 : vector<8x384xf32>
    %cst_28 = arith.constant 1.000000e+00 : f32
    %70 = vector.broadcast %cst_28 : f32 to vector<8x384xf32>
    %71 = arith.addf %70, %69 : vector<8x384xf32>
    %cst_29 = arith.constant 1.000000e+00 : f32
    %72 = vector.broadcast %cst_29 : f32 to vector<8x384xf32>
    %73 = arith.divf %72, %71 : vector<8x384xf32>
    %74 = vector.extract_strided_slice %73 {offsets = [0, 0], sizes = [8, 128], strides = [1, 1]} : vector<8x384xf32> to vector<8x128xf32>
    %75 = vector.extract_strided_slice %73 {offsets = [0, 128], sizes = [8, 128], strides = [1, 1]} : vector<8x384xf32> to vector<8x128xf32>
    %76 = vector.extract_strided_slice %73 {offsets = [0, 256], sizes = [8, 128], strides = [1, 1]} : vector<8x384xf32> to vector<8x128xf32>
    %77 = vector.extract_strided_slice %65 {offsets = [0, 384], sizes = [8, 128], strides = [1, 1]} : vector<8x512xf32> to vector<8x128xf32>
    %78 = math.tanh %77 : vector<8x128xf32>
    %79 = arith.mulf %75, %54 : vector<8x128xf32>
    %80 = arith.mulf %74, %78 : vector<8x128xf32>
    %81 = arith.addf %79, %80 : vector<8x128xf32>
    %82 = math.tanh %81 : vector<8x128xf32>
    %83 = arith.mulf %76, %82 : vector<8x128xf32>
    %c2_30 = arith.constant 2 : index
    %c0_31 = arith.constant 0 : index
    %c0_32 = arith.constant 0 : index
    %84 = vector.load %arg3[%c2_30, %c0_31, %c0_32] : memref<8x8x128xf32, #tpu.memory_space<vmem>>, vector<1x8x128xf32>
    %85 = vector.shape_cast %84 : vector<1x8x128xf32> to vector<8x128xf32>
    %86 = vector.shape_cast %83 : vector<8x128xf32> to vector<1x8x128xf32>
    tpu.vector_store %arg3[%c2_30, %c0_31, %c0_32], %86 {strides = array<i32>} : memref<8x8x128xf32, #tpu.memory_space<vmem>>, vector<1x8x128xf32>,
    %c3 = arith.constant 3 : index
    %c0_33 = arith.constant 0 : index
    %c0_34 = arith.constant 0 : index
    %87 = vector.load %arg1[%c3, %c0_33, %c0_34] : memref<8x8x512xbf16, #tpu.memory_space<vmem>>, vector<1x8x512xbf16>
    %88 = vector.shape_cast %87 : vector<1x8x512xbf16> to vector<8x512xbf16>
    %89 = arith.extf %88 : vector<8x512xbf16> to vector<8x512xf32>
    %90 = arith.truncf %83 : vector<8x128xf32> to vector<8x128xbf16>
    %cst_35 = arith.constant dense<0.000000e+00> : vector<8x512xf32>
    %91 = tpu.matmul %90, %3, %cst_35 {dimension_numbers = #tpu.dot_dimension_numbers<[1], [0], [0], [1], [0, 0, 1, 1], [], []>} : vector<8x128xbf16>, vector<128x512xbf16>, vector<8x512xf32> -> vector<8x512xf32>
    %92 = arith.addf %89, %91 : vector<8x512xf32>
    %93 = vector.extract_strided_slice %92 {offsets = [0, 0], sizes = [8, 384], strides = [1, 1]} : vector<8x512xf32> to vector<8x384xf32>
    %cst_36 = arith.constant 0.000000e+00 : f32
    %94 = vector.broadcast %cst_36 : f32 to vector<8x384xf32>
    %95 = arith.subf %94, %93 : vector<8x384xf32>
    %96 = math.exp %95 : vector<8x384xf32>
    %cst_37 = arith.constant 1.000000e+00 : f32
    %97 = vector.broadcast %cst_37 : f32 to vector<8x384xf32>
    %98 = arith.addf %97, %96 : vector<8x384xf32>
    %cst_38 = arith.constant 1.000000e+00 : f32
    %99 = vector.broadcast %cst_38 : f32 to vector<8x384xf32>
    %100 = arith.divf %99, %98 : vector<8x384xf32>
    %101 = vector.extract_strided_slice %100 {offsets = [0, 0], sizes = [8, 128], strides = [1, 1]} : vector<8x384xf32> to vector<8x128xf32>
    %102 = vector.extract_strided_slice %100 {offsets = [0, 128], sizes = [8, 128], strides = [1, 1]} : vector<8x384xf32> to vector<8x128xf32>
    %103 = vector.extract_strided_slice %100 {offsets = [0, 256], sizes = [8, 128], strides = [1, 1]} : vector<8x384xf32> to vector<8x128xf32>
    %104 = vector.extract_strided_slice %92 {offsets = [0, 384], sizes = [8, 128], strides = [1, 1]} : vector<8x512xf32> to vector<8x128xf32>
    %105 = math.tanh %104 : vector<8x128xf32>
    %106 = arith.mulf %102, %81 : vector<8x128xf32>
    %107 = arith.mulf %101, %105 : vector<8x128xf32>
    %108 = arith.addf %106, %107 : vector<8x128xf32>
    %109 = math.tanh %108 : vector<8x128xf32>
    %110 = arith.mulf %103, %109 : vector<8x128xf32>
    %c3_39 = arith.constant 3 : index
    %c0_40 = arith.constant 0 : index
    %c0_41 = arith.constant 0 : index
    %111 = vector.load %arg3[%c3_39, %c0_40, %c0_41] : memref<8x8x128xf32, #tpu.memory_space<vmem>>, vector<1x8x128xf32>
    %112 = vector.shape_cast %111 : vector<1x8x128xf32> to vector<8x128xf32>
    %113 = vector.shape_cast %110 : vector<8x128xf32> to vector<1x8x128xf32>
    tpu.vector_store %arg3[%c3_39, %c0_40, %c0_41], %113 {strides = array<i32>} : memref<8x8x128xf32, #tpu.memory_space<vmem>>, vector<1x8x128xf32>,
    %c4 = arith.constant 4 : index
    %c0_42 = arith.constant 0 : index
    %c0_43 = arith.constant 0 : index
    %114 = vector.load %arg1[%c4, %c0_42, %c0_43] : memref<8x8x512xbf16, #tpu.memory_space<vmem>>, vector<1x8x512xbf16>
    %115 = vector.shape_cast %114 : vector<1x8x512xbf16> to vector<8x512xbf16>
    %116 = arith.extf %115 : vector<8x512xbf16> to vector<8x512xf32>
    %117 = arith.truncf %110 : vector<8x128xf32> to vector<8x128xbf16>
    %cst_44 = arith.constant dense<0.000000e+00> : vector<8x512xf32>
    %118 = tpu.matmul %117, %3, %cst_44 {dimension_numbers = #tpu.dot_dimension_numbers<[1], [0], [0], [1], [0, 0, 1, 1], [], []>} : vector<8x128xbf16>, vector<128x512xbf16>, vector<8x512xf32> -> vector<8x512xf32>
    %119 = arith.addf %116, %118 : vector<8x512xf32>
    %120 = vector.extract_strided_slice %119 {offsets = [0, 0], sizes = [8, 384], strides = [1, 1]} : vector<8x512xf32> to vector<8x384xf32>
    %cst_45 = arith.constant 0.000000e+00 : f32
    %121 = vector.broadcast %cst_45 : f32 to vector<8x384xf32>
    %122 = arith.subf %121, %120 : vector<8x384xf32>
    %123 = math.exp %122 : vector<8x384xf32>
    %cst_46 = arith.constant 1.000000e+00 : f32
    %124 = vector.broadcast %cst_46 : f32 to vector<8x384xf32>
    %125 = arith.addf %124, %123 : vector<8x384xf32>
    %cst_47 = arith.constant 1.000000e+00 : f32
    %126 = vector.broadcast %cst_47 : f32 to vector<8x384xf32>
    %127 = arith.divf %126, %125 : vector<8x384xf32>
    %128 = vector.extract_strided_slice %127 {offsets = [0, 0], sizes = [8, 128], strides = [1, 1]} : vector<8x384xf32> to vector<8x128xf32>
    %129 = vector.extract_strided_slice %127 {offsets = [0, 128], sizes = [8, 128], strides = [1, 1]} : vector<8x384xf32> to vector<8x128xf32>
    %130 = vector.extract_strided_slice %127 {offsets = [0, 256], sizes = [8, 128], strides = [1, 1]} : vector<8x384xf32> to vector<8x128xf32>
    %131 = vector.extract_strided_slice %119 {offsets = [0, 384], sizes = [8, 128], strides = [1, 1]} : vector<8x512xf32> to vector<8x128xf32>
    %132 = math.tanh %131 : vector<8x128xf32>
    %133 = arith.mulf %129, %108 : vector<8x128xf32>
    %134 = arith.mulf %128, %132 : vector<8x128xf32>
    %135 = arith.addf %133, %134 : vector<8x128xf32>
    %136 = math.tanh %135 : vector<8x128xf32>
    %137 = arith.mulf %130, %136 : vector<8x128xf32>
    %c4_48 = arith.constant 4 : index
    %c0_49 = arith.constant 0 : index
    %c0_50 = arith.constant 0 : index
    %138 = vector.load %arg3[%c4_48, %c0_49, %c0_50] : memref<8x8x128xf32, #tpu.memory_space<vmem>>, vector<1x8x128xf32>
    %139 = vector.shape_cast %138 : vector<1x8x128xf32> to vector<8x128xf32>
    %140 = vector.shape_cast %137 : vector<8x128xf32> to vector<1x8x128xf32>
    tpu.vector_store %arg3[%c4_48, %c0_49, %c0_50], %140 {strides = array<i32>} : memref<8x8x128xf32, #tpu.memory_space<vmem>>, vector<1x8x128xf32>,
    %c5 = arith.constant 5 : index
    %c0_51 = arith.constant 0 : index
    %c0_52 = arith.constant 0 : index
    %141 = vector.load %arg1[%c5, %c0_51, %c0_52] : memref<8x8x512xbf16, #tpu.memory_space<vmem>>, vector<1x8x512xbf16>
    %142 = vector.shape_cast %141 : vector<1x8x512xbf16> to vector<8x512xbf16>
    %143 = arith.extf %142 : vector<8x512xbf16> to vector<8x512xf32>
    %144 = arith.truncf %137 : vector<8x128xf32> to vector<8x128xbf16>
    %cst_53 = arith.constant dense<0.000000e+00> : vector<8x512xf32>
    %145 = tpu.matmul %144, %3, %cst_53 {dimension_numbers = #tpu.dot_dimension_numbers<[1], [0], [0], [1], [0, 0, 1, 1], [], []>} : vector<8x128xbf16>, vector<128x512xbf16>, vector<8x512xf32> -> vector<8x512xf32>
    %146 = arith.addf %143, %145 : vector<8x512xf32>
    %147 = vector.extract_strided_slice %146 {offsets = [0, 0], sizes = [8, 384], strides = [1, 1]} : vector<8x512xf32> to vector<8x384xf32>
    %cst_54 = arith.constant 0.000000e+00 : f32
    %148 = vector.broadcast %cst_54 : f32 to vector<8x384xf32>
    %149 = arith.subf %148, %147 : vector<8x384xf32>
    %150 = math.exp %149 : vector<8x384xf32>
    %cst_55 = arith.constant 1.000000e+00 : f32
    %151 = vector.broadcast %cst_55 : f32 to vector<8x384xf32>
    %152 = arith.addf %151, %150 : vector<8x384xf32>
    %cst_56 = arith.constant 1.000000e+00 : f32
    %153 = vector.broadcast %cst_56 : f32 to vector<8x384xf32>
    %154 = arith.divf %153, %152 : vector<8x384xf32>
    %155 = vector.extract_strided_slice %154 {offsets = [0, 0], sizes = [8, 128], strides = [1, 1]} : vector<8x384xf32> to vector<8x128xf32>
    %156 = vector.extract_strided_slice %154 {offsets = [0, 128], sizes = [8, 128], strides = [1, 1]} : vector<8x384xf32> to vector<8x128xf32>
    %157 = vector.extract_strided_slice %154 {offsets = [0, 256], sizes = [8, 128], strides = [1, 1]} : vector<8x384xf32> to vector<8x128xf32>
    %158 = vector.extract_strided_slice %146 {offsets = [0, 384], sizes = [8, 128], strides = [1, 1]} : vector<8x512xf32> to vector<8x128xf32>
    %159 = math.tanh %158 : vector<8x128xf32>
    %160 = arith.mulf %156, %135 : vector<8x128xf32>
    %161 = arith.mulf %155, %159 : vector<8x128xf32>
    %162 = arith.addf %160, %161 : vector<8x128xf32>
    %163 = math.tanh %162 : vector<8x128xf32>
    %164 = arith.mulf %157, %163 : vector<8x128xf32>
    %c5_57 = arith.constant 5 : index
    %c0_58 = arith.constant 0 : index
    %c0_59 = arith.constant 0 : index
    %165 = vector.load %arg3[%c5_57, %c0_58, %c0_59] : memref<8x8x128xf32, #tpu.memory_space<vmem>>, vector<1x8x128xf32>
    %166 = vector.shape_cast %165 : vector<1x8x128xf32> to vector<8x128xf32>
    %167 = vector.shape_cast %164 : vector<8x128xf32> to vector<1x8x128xf32>
    tpu.vector_store %arg3[%c5_57, %c0_58, %c0_59], %167 {strides = array<i32>} : memref<8x8x128xf32, #tpu.memory_space<vmem>>, vector<1x8x128xf32>,
    %c6 = arith.constant 6 : index
    %c0_60 = arith.constant 0 : index
    %c0_61 = arith.constant 0 : index
    %168 = vector.load %arg1[%c6, %c0_60, %c0_61] : memref<8x8x512xbf16, #tpu.memory_space<vmem>>, vector<1x8x512xbf16>
    %169 = vector.shape_cast %168 : vector<1x8x512xbf16> to vector<8x512xbf16>
    %170 = arith.extf %169 : vector<8x512xbf16> to vector<8x512xf32>
    %171 = arith.truncf %164 : vector<8x128xf32> to vector<8x128xbf16>
    %cst_62 = arith.constant dense<0.000000e+00> : vector<8x512xf32>
    %172 = tpu.matmul %171, %3, %cst_62 {dimension_numbers = #tpu.dot_dimension_numbers<[1], [0], [0], [1], [0, 0, 1, 1], [], []>} : vector<8x128xbf16>, vector<128x512xbf16>, vector<8x512xf32> -> vector<8x512xf32>
    %173 = arith.addf %170, %172 : vector<8x512xf32>
    %174 = vector.extract_strided_slice %173 {offsets = [0, 0], sizes = [8, 384], strides = [1, 1]} : vector<8x512xf32> to vector<8x384xf32>
    %cst_63 = arith.constant 0.000000e+00 : f32
    %175 = vector.broadcast %cst_63 : f32 to vector<8x384xf32>
    %176 = arith.subf %175, %174 : vector<8x384xf32>
    %177 = math.exp %176 : vector<8x384xf32>
    %cst_64 = arith.constant 1.000000e+00 : f32
    %178 = vector.broadcast %cst_64 : f32 to vector<8x384xf32>
    %179 = arith.addf %178, %177 : vector<8x384xf32>
    %cst_65 = arith.constant 1.000000e+00 : f32
    %180 = vector.broadcast %cst_65 : f32 to vector<8x384xf32>
    %181 = arith.divf %180, %179 : vector<8x384xf32>
    %182 = vector.extract_strided_slice %181 {offsets = [0, 0], sizes = [8, 128], strides = [1, 1]} : vector<8x384xf32> to vector<8x128xf32>
    %183 = vector.extract_strided_slice %181 {offsets = [0, 128], sizes = [8, 128], strides = [1, 1]} : vector<8x384xf32> to vector<8x128xf32>
    %184 = vector.extract_strided_slice %181 {offsets = [0, 256], sizes = [8, 128], strides = [1, 1]} : vector<8x384xf32> to vector<8x128xf32>
    %185 = vector.extract_strided_slice %173 {offsets = [0, 384], sizes = [8, 128], strides = [1, 1]} : vector<8x512xf32> to vector<8x128xf32>
    %186 = math.tanh %185 : vector<8x128xf32>
    %187 = arith.mulf %183, %162 : vector<8x128xf32>
    %188 = arith.mulf %182, %186 : vector<8x128xf32>
    %189 = arith.addf %187, %188 : vector<8x128xf32>
    %190 = math.tanh %189 : vector<8x128xf32>
    %191 = arith.mulf %184, %190 : vector<8x128xf32>
    %c6_66 = arith.constant 6 : index
    %c0_67 = arith.constant 0 : index
    %c0_68 = arith.constant 0 : index
    %192 = vector.load %arg3[%c6_66, %c0_67, %c0_68] : memref<8x8x128xf32, #tpu.memory_space<vmem>>, vector<1x8x128xf32>
    %193 = vector.shape_cast %192 : vector<1x8x128xf32> to vector<8x128xf32>
    %194 = vector.shape_cast %191 : vector<8x128xf32> to vector<1x8x128xf32>
    tpu.vector_store %arg3[%c6_66, %c0_67, %c0_68], %194 {strides = array<i32>} : memref<8x8x128xf32, #tpu.memory_space<vmem>>, vector<1x8x128xf32>,
    %c7 = arith.constant 7 : index
    %c0_69 = arith.constant 0 : index
    %c0_70 = arith.constant 0 : index
    %195 = vector.load %arg1[%c7, %c0_69, %c0_70] : memref<8x8x512xbf16, #tpu.memory_space<vmem>>, vector<1x8x512xbf16>
    %196 = vector.shape_cast %195 : vector<1x8x512xbf16> to vector<8x512xbf16>
    %197 = arith.extf %196 : vector<8x512xbf16> to vector<8x512xf32>
    %198 = arith.truncf %191 : vector<8x128xf32> to vector<8x128xbf16>
    %cst_71 = arith.constant dense<0.000000e+00> : vector<8x512xf32>
    %199 = tpu.matmul %198, %3, %cst_71 {dimension_numbers = #tpu.dot_dimension_numbers<[1], [0], [0], [1], [0, 0, 1, 1], [], []>} : vector<8x128xbf16>, vector<128x512xbf16>, vector<8x512xf32> -> vector<8x512xf32>
    %200 = arith.addf %197, %199 : vector<8x512xf32>
    %201 = vector.extract_strided_slice %200 {offsets = [0, 0], sizes = [8, 384], strides = [1, 1]} : vector<8x512xf32> to vector<8x384xf32>
    %cst_72 = arith.constant 0.000000e+00 : f32
    %202 = vector.broadcast %cst_72 : f32 to vector<8x384xf32>
    %203 = arith.subf %202, %201 : vector<8x384xf32>
    %204 = math.exp %203 : vector<8x384xf32>
    %cst_73 = arith.constant 1.000000e+00 : f32
    %205 = vector.broadcast %cst_73 : f32 to vector<8x384xf32>
    %206 = arith.addf %205, %204 : vector<8x384xf32>
    %cst_74 = arith.constant 1.000000e+00 : f32
    %207 = vector.broadcast %cst_74 : f32 to vector<8x384xf32>
    %208 = arith.divf %207, %206 : vector<8x384xf32>
    %209 = vector.extract_strided_slice %208 {offsets = [0, 0], sizes = [8, 128], strides = [1, 1]} : vector<8x384xf32> to vector<8x128xf32>
    %210 = vector.extract_strided_slice %208 {offsets = [0, 128], sizes = [8, 128], strides = [1, 1]} : vector<8x384xf32> to vector<8x128xf32>
    %211 = vector.extract_strided_slice %208 {offsets = [0, 256], sizes = [8, 128], strides = [1, 1]} : vector<8x384xf32> to vector<8x128xf32>
    %212 = vector.extract_strided_slice %200 {offsets = [0, 384], sizes = [8, 128], strides = [1, 1]} : vector<8x512xf32> to vector<8x128xf32>
    %213 = math.tanh %212 : vector<8x128xf32>
    %214 = arith.mulf %210, %189 : vector<8x128xf32>
    %215 = arith.mulf %209, %213 : vector<8x128xf32>
    %216 = arith.addf %214, %215 : vector<8x128xf32>
    %217 = math.tanh %216 : vector<8x128xf32>
    %218 = arith.mulf %211, %217 : vector<8x128xf32>
    %c7_75 = arith.constant 7 : index
    %c0_76 = arith.constant 0 : index
    %c0_77 = arith.constant 0 : index
    %219 = vector.load %arg3[%c7_75, %c0_76, %c0_77] : memref<8x8x128xf32, #tpu.memory_space<vmem>>, vector<1x8x128xf32>
    %220 = vector.shape_cast %219 : vector<1x8x128xf32> to vector<8x128xf32>
    %221 = vector.shape_cast %218 : vector<8x128xf32> to vector<1x8x128xf32>
    tpu.vector_store %arg3[%c7_75, %c0_76, %c0_77], %221 {strides = array<i32>} : memref<8x8x128xf32, #tpu.memory_space<vmem>>, vector<1x8x128xf32>,
    %c0_78 = arith.constant 0 : index
    %c0_79 = arith.constant 0 : index
    %222 = vector.load %arg5[%c0_78, %c0_79] : memref<8x128xf32, #tpu.memory_space<vmem>>, vector<8x128xf32>
    tpu.vector_store %arg5[%c0_78, %c0_79], %218 {strides = array<i32>} : memref<8x128xf32, #tpu.memory_space<vmem>>, vector<8x128xf32>,
    %c0_80 = arith.constant 0 : index
    %c0_81 = arith.constant 0 : index
    %223 = vector.load %arg6[%c0_80, %c0_81] : memref<8x128xf32, #tpu.memory_space<vmem>>, vector<8x128xf32>
    tpu.vector_store %arg6[%c0_80, %c0_81], %216 {strides = array<i32>} : memref<8x128xf32, #tpu.memory_space<vmem>>, vector<8x128xf32>,
    %c0_82 = arith.constant 0 : index
    %c0_83 = arith.constant 0 : index
    %224 = vector.load %arg4[%c0_82, %c0_83] : memref<8x128xf32, #tpu.memory_space<vmem>>, vector<8x128xf32>
    tpu.vector_store %arg4[%c0_82, %c0_83], %216 {strides = array<i32>} : memref<8x128xf32, #tpu.memory_space<vmem>>, vector<8x128xf32>,
    return
  }
  func.func @transform_0(%arg0: i32) -> (i32, i32, i32) {
    %c0_i32 = arith.constant 0 : i32
    %c0_i32_0 = arith.constant 0 : i32
    %c0_i32_1 = arith.constant 0 : i32
    return %arg0, %c0_i32, %c0_i32_0 : i32, i32, i32
  }
  func.func @transform_1(%arg0: i32) -> (i32, i32) {
    %c0_i32 = arith.constant 0 : i32
    %c0_i32_0 = arith.constant 0 : i32
    %c0_i32_1 = arith.constant 0 : i32
    return %c0_i32, %c0_i32_0 : i32, i32
  }
  func.func @transform_2(%arg0: i32) -> (i32, i32, i32) {
    %c0_i32 = arith.constant 0 : i32
    %c0_i32_0 = arith.constant 0 : i32
    %c0_i32_1 = arith.constant 0 : i32
    return %arg0, %c0_i32, %c0_i32_0 : i32, i32, i32
  }
  func.func @transform_3(%arg0: i32) -> (i32, i32) {
    %c0_i32 = arith.constant 0 : i32
    %c0_i32_0 = arith.constant 0 : i32
    %c0_i32_1 = arith.constant 0 : i32
    return %c0_i32, %c0_i32_0 : i32, i32
  }
}

module attributes {stable_mosaic.version = 11 : i64} {
  func.func @_bilstm_fused_kernel(%arg0: i32, %arg1: memref<8x8x512xbf16, #tpu.memory_space<vmem>>, %arg2: memref<128x512xbf16, #tpu.memory_space<vmem>>, %arg3: memref<8x8x128xf32, #tpu.memory_space<vmem>>, %arg4: memref<8x128xf32, #tpu.memory_space<vmem>>, %arg5: memref<8x128xf32, #tpu.memory_space<vmem>>, %arg6: memref<8x128xf32, #tpu.memory_space<vmem>>) attributes {dimension_semantics = [#tpu.dimension_semantics<arbitrary>], iteration_bounds = array<i64: 1>, scalar_prefetch = 0 : i64, scratch_operands = 2 : i64, tpu.core_type = #tpu.core_type<tc>, window_params = [{transform_indices = @transform_0, window_bounds = array<i64: 8, 8, 512>}, {pipeline_mode = #tpu.pipeline_mode<synchronous>, transform_indices = @transform_1, window_bounds = array<i64: 128, 512>}, {transform_indices = @transform_2, window_bounds = array<i64: 8, 8, 128>}, {pipeline_mode = #tpu.pipeline_mode<synchronous>, transform_indices = @transform_3, window_bounds = array<i64: 8, 128>}]} {
    %c0_i32 = arith.constant 0 : i32
    %0 = arith.cmpi eq, %arg0, %c0_i32 : i32
    %1 = arith.extui %0 : i1 to i32
    %c0_i32_0 = arith.constant 0 : i32
    %2 = arith.cmpi ne, %1, %c0_i32_0 : i32
    scf.if %2 {
      %cst_84 = arith.constant 0.000000e+00 : f32
      %225 = vector.broadcast %cst_84 : f32 to vector<8x128xf32>
      %c0_85 = arith.constant 0 : index
      %c0_86 = arith.constant 0 : index
      %226 = vector.load %arg5[%c0_85, %c0_86] : memref<8x128xf32, #tpu.memory_space<vmem>>, vector<8x128xf32>
      tpu.vector_store %arg5[%c0_85, %c0_86], %225 {strides = array<i32>} : memref<8x128xf32, #tpu.memory_space<vmem>>, vector<8x128xf32>,
      %cst_87 = arith.constant 0.000000e+00 : f32
      %227 = vector.broadcast %cst_87 : f32 to vector<8x128xf32>
      %c0_88 = arith.constant 0 : index
      %c0_89 = arith.constant 0 : index
      %228 = vector.load %arg6[%c0_88, %c0_89] : memref<8x128xf32, #tpu.memory_space<vmem>>, vector<8x128xf32>
      tpu.vector_store %arg6[%c0_88, %c0_89], %227 {strides = array<i32>} : memref<8x128xf32, #tpu.memory_space<vmem>>, vector<8x128xf32>,
    } else {
    }
    %c0 = arith.constant 0 : index
    %c0_1 = arith.constant 0 : index
    %3 = vector.load %arg2[%c0, %c0_1] : memref<128x512xbf16, #tpu.memory_space<vmem>>, vector<128x512xbf16>
    %c0_2 = arith.constant 0 : index
    %c0_3 = arith.constant 0 : index
    %4 = vector.load %arg5[%c0_2, %c0_3] : memref<8x128xf32, #tpu.memory_space<vmem>>, vector<8x128xf32>
    %c0_4 = arith.constant 0 : index
    %c0_5 = arith.constant 0 : index
    %5 = vector.load %arg6[%c0_4, %c0_5] : memref<8x128xf32, #tpu.memory_space<vmem>>, vector<8x128xf32>
    %c0_6 = arith.constant 0 : index
    %c0_7 = arith.constant 0 : index
    %c0_8 = arith.constant 0 : index
    %6 = vector.load %arg1[%c0_6, %c0_7, %c0_8] : memref<8x8x512xbf16, #tpu.memory_space<vmem>>, vector<1x8x512xbf16>
    %7 = vector.shape_cast %6 : vector<1x8x512xbf16> to vector<8x512xbf16>
    %8 = arith.extf %7 : vector<8x512xbf16> to vector<8x512xf32>
    %9 = arith.truncf %4 : vector<8x128xf32> to vector<8x128xbf16>
    %cst = arith.constant dense<0.000000e+00> : vector<8x512xf32>
    %10 = tpu.matmul %9, %3, %cst {dimension_numbers = #tpu.dot_dimension_numbers<[1], [0], [0], [1], [0, 0, 1, 1], [], []>} : vector<8x128xbf16>, vector<128x512xbf16>, vector<8x512xf32> -> vector<8x512xf32>
    %11 = arith.addf %8, %10 : vector<8x512xf32>
    %12 = vector.extract_strided_slice %11 {offsets = [0, 0], sizes = [8, 384], strides = [1, 1]} : vector<8x512xf32> to vector<8x384xf32>
    %cst_9 = arith.constant 0.000000e+00 : f32
    %13 = vector.broadcast %cst_9 : f32 to vector<8x384xf32>
    %14 = arith.subf %13, %12 : vector<8x384xf32>
    %15 = math.exp %14 : vector<8x384xf32>
    %cst_10 = arith.constant 1.000000e+00 : f32
    %16 = vector.broadcast %cst_10 : f32 to vector<8x384xf32>
    %17 = arith.addf %16, %15 : vector<8x384xf32>
    %cst_11 = arith.constant 1.000000e+00 : f32
    %18 = vector.broadcast %cst_11 : f32 to vector<8x384xf32>
    %19 = arith.divf %18, %17 : vector<8x384xf32>
    %20 = vector.extract_strided_slice %19 {offsets = [0, 0], sizes = [8, 128], strides = [1, 1]} : vector<8x384xf32> to vector<8x128xf32>
    %21 = vector.extract_strided_slice %19 {offsets = [0, 128], sizes = [8, 128], strides = [1, 1]} : vector<8x384xf32> to vector<8x128xf32>
    %22 = vector.extract_strided_slice %19 {offsets = [0, 256], sizes = [8, 128], strides = [1, 1]} : vector<8x384xf32> to vector<8x128xf32>
    %23 = vector.extract_strided_slice %11 {offsets = [0, 384], sizes = [8, 128], strides = [1, 1]} : vector<8x512xf32> to vector<8x128xf32>
    %24 = math.tanh %23 : vector<8x128xf32>
    %25 = arith.mulf %21, %5 : vector<8x128xf32>
    %26 = arith.mulf %20, %24 : vector<8x128xf32>
    %27 = arith.addf %25, %26 : vector<8x128xf32>
    %28 = math.tanh %27 : vector<8x128xf32>
    %29 = arith.mulf %22, %28 : vector<8x128xf32>
    %c0_12 = arith.constant 0 : index
    %c0_13 = arith.constant 0 : index
    %c0_14 = arith.constant 0 : index
    %30 = vector.load %arg3[%c0_12, %c0_13, %c0_14] : memref<8x8x128xf32, #tpu.memory_space<vmem>>, vector<1x8x128xf32>
    %31 = vector.shape_cast %30 : vector<1x8x128xf32> to vector<8x128xf32>
    %32 = vector.shape_cast %29 : vector<8x128xf32> to vector<1x8x128xf32>
    tpu.vector_store %arg3[%c0_12, %c0_13, %c0_14], %32 {strides = array<i32>} : memref<8x8x128xf32, #tpu.memory_space<vmem>>, vector<1x8x128xf32>,
    %c1 = arith.constant 1 : index
    %c0_15 = arith.constant 0 : index
    %c0_16 = arith.constant 0 : index
    %33 = vector.load %arg1[%c1, %c0_15, %c0_16] : memref<8x8x512xbf16, #tpu.memory_space<vmem>>, vector<1x8x512xbf16>
    %34 = vector.shape_cast %33 : vector<1x8x512xbf16> to vector<8x512xbf16>
    %35 = arith.extf %34 : vector<8x512xbf16> to vector<8x512xf32>
    %36 = arith.truncf %29 : vector<8x128xf32> to vector<8x128xbf16>
    %cst_17 = arith.constant dense<0.000000e+00> : vector<8x512xf32>
    %37 = tpu.matmul %36, %3, %cst_17 {dimension_numbers = #tpu.dot_dimension_numbers<[1], [0], [0], [1], [0, 0, 1, 1], [], []>} : vector<8x128xbf16>, vector<128x512xbf16>, vector<8x512xf32> -> vector<8x512xf32>
    %38 = arith.addf %35, %37 : vector<8x512xf32>
    %39 = vector.extract_strided_slice %38 {offsets = [0, 0], sizes = [8, 384], strides = [1, 1]} : vector<8x512xf32> to vector<8x384xf32>
    %cst_18 = arith.constant 0.000000e+00 : f32
    %40 = vector.broadcast %cst_18 : f32 to vector<8x384xf32>
    %41 = arith.subf %40, %39 : vector<8x384xf32>
    %42 = math.exp %41 : vector<8x384xf32>
    %cst_19 = arith.constant 1.000000e+00 : f32
    %43 = vector.broadcast %cst_19 : f32 to vector<8x384xf32>
    %44 = arith.addf %43, %42 : vector<8x384xf32>
    %cst_20 = arith.constant 1.000000e+00 : f32
    %45 = vector.broadcast %cst_20 : f32 to vector<8x384xf32>
    %46 = arith.divf %45, %44 : vector<8x384xf32>
    %47 = vector.extract_strided_slice %46 {offsets = [0, 0], sizes = [8, 128], strides = [1, 1]} : vector<8x384xf32> to vector<8x128xf32>
    %48 = vector.extract_strided_slice %46 {offsets = [0, 128], sizes = [8, 128], strides = [1, 1]} : vector<8x384xf32> to vector<8x128xf32>
    %49 = vector.extract_strided_slice %46 {offsets = [0, 256], sizes = [8, 128], strides = [1, 1]} : vector<8x384xf32> to vector<8x128xf32>
    %50 = vector.extract_strided_slice %38 {offsets = [0, 384], sizes = [8, 128], strides = [1, 1]} : vector<8x512xf32> to vector<8x128xf32>
    %51 = math.tanh %50 : vector<8x128xf32>
    %52 = arith.mulf %48, %27 : vector<8x128xf32>
    %53 = arith.mulf %47, %51 : vector<8x128xf32>
    %54 = arith.addf %52, %53 : vector<8x128xf32>
    %55 = math.tanh %54 : vector<8x128xf32>
    %56 = arith.mulf %49, %55 : vector<8x128xf32>
    %c1_21 = arith.constant 1 : index
    %c0_22 = arith.constant 0 : index
    %c0_23 = arith.constant 0 : index
    %57 = vector.load %arg3[%c1_21, %c0_22, %c0_23] : memref<8x8x128xf32, #tpu.memory_space<vmem>>, vector<1x8x128xf32>
    %58 = vector.shape_cast %57 : vector<1x8x128xf32> to vector<8x128xf32>
    %59 = vector.shape_cast %56 : vector<8x128xf32> to vector<1x8x128xf32>
    tpu.vector_store %arg3[%c1_21, %c0_22, %c0_23], %59 {strides = array<i32>} : memref<8x8x128xf32, #tpu.memory_space<vmem>>, vector<1x8x128xf32>,
    %c2 = arith.constant 2 : index
    %c0_24 = arith.constant 0 : index
    %c0_25 = arith.constant 0 : index
    %60 = vector.load %arg1[%c2, %c0_24, %c0_25] : memref<8x8x512xbf16, #tpu.memory_space<vmem>>, vector<1x8x512xbf16>
    %61 = vector.shape_cast %60 : vector<1x8x512xbf16> to vector<8x512xbf16>
    %62 = arith.extf %61 : vector<8x512xbf16> to vector<8x512xf32>
    %63 = arith.truncf %56 : vector<8x128xf32> to vector<8x128xbf16>
    %cst_26 = arith.constant dense<0.000000e+00> : vector<8x512xf32>
    %64 = tpu.matmul %63, %3, %cst_26 {dimension_numbers = #tpu.dot_dimension_numbers<[1], [0], [0], [1], [0, 0, 1, 1], [], []>} : vector<8x128xbf16>, vector<128x512xbf16>, vector<8x512xf32> -> vector<8x512xf32>
    %65 = arith.addf %62, %64 : vector<8x512xf32>
    %66 = vector.extract_strided_slice %65 {offsets = [0, 0], sizes = [8, 384], strides = [1, 1]} : vector<8x512xf32> to vector<8x384xf32>
    %cst_27 = arith.constant 0.000000e+00 : f32
    %67 = vector.broadcast %cst_27 : f32 to vector<8x384xf32>
    %68 = arith.subf %67, %66 : vector<8x384xf32>
    %69 = math.exp %68 : vector<8x384xf32>
    %cst_28 = arith.constant 1.000000e+00 : f32
    %70 = vector.broadcast %cst_28 : f32 to vector<8x384xf32>
    %71 = arith.addf %70, %69 : vector<8x384xf32>
    %cst_29 = arith.constant 1.000000e+00 : f32
    %72 = vector.broadcast %cst_29 : f32 to vector<8x384xf32>
    %73 = arith.divf %72, %71 : vector<8x384xf32>
    %74 = vector.extract_strided_slice %73 {offsets = [0, 0], sizes = [8, 128], strides = [1, 1]} : vector<8x384xf32> to vector<8x128xf32>
    %75 = vector.extract_strided_slice %73 {offsets = [0, 128], sizes = [8, 128], strides = [1, 1]} : vector<8x384xf32> to vector<8x128xf32>
    %76 = vector.extract_strided_slice %73 {offsets = [0, 256], sizes = [8, 128], strides = [1, 1]} : vector<8x384xf32> to vector<8x128xf32>
    %77 = vector.extract_strided_slice %65 {offsets = [0, 384], sizes = [8, 128], strides = [1, 1]} : vector<8x512xf32> to vector<8x128xf32>
    %78 = math.tanh %77 : vector<8x128xf32>
    %79 = arith.mulf %75, %54 : vector<8x128xf32>
    %80 = arith.mulf %74, %78 : vector<8x128xf32>
    %81 = arith.addf %79, %80 : vector<8x128xf32>
    %82 = math.tanh %81 : vector<8x128xf32>
    %83 = arith.mulf %76, %82 : vector<8x128xf32>
    %c2_30 = arith.constant 2 : index
    %c0_31 = arith.constant 0 : index
    %c0_32 = arith.constant 0 : index
    %84 = vector.load %arg3[%c2_30, %c0_31, %c0_32] : memref<8x8x128xf32, #tpu.memory_space<vmem>>, vector<1x8x128xf32>
    %85 = vector.shape_cast %84 : vector<1x8x128xf32> to vector<8x128xf32>
    %86 = vector.shape_cast %83 : vector<8x128xf32> to vector<1x8x128xf32>
    tpu.vector_store %arg3[%c2_30, %c0_31, %c0_32], %86 {strides = array<i32>} : memref<8x8x128xf32, #tpu.memory_space<vmem>>, vector<1x8x128xf32>,
    %c3 = arith.constant 3 : index
    %c0_33 = arith.constant 0 : index
    %c0_34 = arith.constant 0 : index
    %87 = vector.load %arg1[%c3, %c0_33, %c0_34] : memref<8x8x512xbf16, #tpu.memory_space<vmem>>, vector<1x8x512xbf16>
    %88 = vector.shape_cast %87 : vector<1x8x512xbf16> to vector<8x512xbf16>
    %89 = arith.extf %88 : vector<8x512xbf16> to vector<8x512xf32>
    %90 = arith.truncf %83 : vector<8x128xf32> to vector<8x128xbf16>
    %cst_35 = arith.constant dense<0.000000e+00> : vector<8x512xf32>
    %91 = tpu.matmul %90, %3, %cst_35 {dimension_numbers = #tpu.dot_dimension_numbers<[1], [0], [0], [1], [0, 0, 1, 1], [], []>} : vector<8x128xbf16>, vector<128x512xbf16>, vector<8x512xf32> -> vector<8x512xf32>
    %92 = arith.addf %89, %91 : vector<8x512xf32>
    %93 = vector.extract_strided_slice %92 {offsets = [0, 0], sizes = [8, 384], strides = [1, 1]} : vector<8x512xf32> to vector<8x384xf32>
    %cst_36 = arith.constant 0.000000e+00 : f32
    %94 = vector.broadcast %cst_36 : f32 to vector<8x384xf32>
    %95 = arith.subf %94, %93 : vector<8x384xf32>
    %96 = math.exp %95 : vector<8x384xf32>
    %cst_37 = arith.constant 1.000000e+00 : f32
    %97 = vector.broadcast %cst_37 : f32 to vector<8x384xf32>
    %98 = arith.addf %97, %96 : vector<8x384xf32>
    %cst_38 = arith.constant 1.000000e+00 : f32
    %99 = vector.broadcast %cst_38 : f32 to vector<8x384xf32>
    %100 = arith.divf %99, %98 : vector<8x384xf32>
    %101 = vector.extract_strided_slice %100 {offsets = [0, 0], sizes = [8, 128], strides = [1, 1]} : vector<8x384xf32> to vector<8x128xf32>
    %102 = vector.extract_strided_slice %100 {offsets = [0, 128], sizes = [8, 128], strides = [1, 1]} : vector<8x384xf32> to vector<8x128xf32>
    %103 = vector.extract_strided_slice %100 {offsets = [0, 256], sizes = [8, 128], strides = [1, 1]} : vector<8x384xf32> to vector<8x128xf32>
    %104 = vector.extract_strided_slice %92 {offsets = [0, 384], sizes = [8, 128], strides = [1, 1]} : vector<8x512xf32> to vector<8x128xf32>
    %105 = math.tanh %104 : vector<8x128xf32>
    %106 = arith.mulf %102, %81 : vector<8x128xf32>
    %107 = arith.mulf %101, %105 : vector<8x128xf32>
    %108 = arith.addf %106, %107 : vector<8x128xf32>
    %109 = math.tanh %108 : vector<8x128xf32>
    %110 = arith.mulf %103, %109 : vector<8x128xf32>
    %c3_39 = arith.constant 3 : index
    %c0_40 = arith.constant 0 : index
    %c0_41 = arith.constant 0 : index
    %111 = vector.load %arg3[%c3_39, %c0_40, %c0_41] : memref<8x8x128xf32, #tpu.memory_space<vmem>>, vector<1x8x128xf32>
    %112 = vector.shape_cast %111 : vector<1x8x128xf32> to vector<8x128xf32>
    %113 = vector.shape_cast %110 : vector<8x128xf32> to vector<1x8x128xf32>
    tpu.vector_store %arg3[%c3_39, %c0_40, %c0_41], %113 {strides = array<i32>} : memref<8x8x128xf32, #tpu.memory_space<vmem>>, vector<1x8x128xf32>,
    %c4 = arith.constant 4 : index
    %c0_42 = arith.constant 0 : index
    %c0_43 = arith.constant 0 : index
    %114 = vector.load %arg1[%c4, %c0_42, %c0_43] : memref<8x8x512xbf16, #tpu.memory_space<vmem>>, vector<1x8x512xbf16>
    %115 = vector.shape_cast %114 : vector<1x8x512xbf16> to vector<8x512xbf16>
    %116 = arith.extf %115 : vector<8x512xbf16> to vector<8x512xf32>
    %117 = arith.truncf %110 : vector<8x128xf32> to vector<8x128xbf16>
    %cst_44 = arith.constant dense<0.000000e+00> : vector<8x512xf32>
    %118 = tpu.matmul %117, %3, %cst_44 {dimension_numbers = #tpu.dot_dimension_numbers<[1], [0], [0], [1], [0, 0, 1, 1], [], []>} : vector<8x128xbf16>, vector<128x512xbf16>, vector<8x512xf32> -> vector<8x512xf32>
    %119 = arith.addf %116, %118 : vector<8x512xf32>
    %120 = vector.extract_strided_slice %119 {offsets = [0, 0], sizes = [8, 384], strides = [1, 1]} : vector<8x512xf32> to vector<8x384xf32>
    %cst_45 = arith.constant 0.000000e+00 : f32
    %121 = vector.broadcast %cst_45 : f32 to vector<8x384xf32>
    %122 = arith.subf %121, %120 : vector<8x384xf32>
    %123 = math.exp %122 : vector<8x384xf32>
    %cst_46 = arith.constant 1.000000e+00 : f32
    %124 = vector.broadcast %cst_46 : f32 to vector<8x384xf32>
    %125 = arith.addf %124, %123 : vector<8x384xf32>
    %cst_47 = arith.constant 1.000000e+00 : f32
    %126 = vector.broadcast %cst_47 : f32 to vector<8x384xf32>
    %127 = arith.divf %126, %125 : vector<8x384xf32>
    %128 = vector.extract_strided_slice %127 {offsets = [0, 0], sizes = [8, 128], strides = [1, 1]} : vector<8x384xf32> to vector<8x128xf32>
    %129 = vector.extract_strided_slice %127 {offsets = [0, 128], sizes = [8, 128], strides = [1, 1]} : vector<8x384xf32> to vector<8x128xf32>
    %130 = vector.extract_strided_slice %127 {offsets = [0, 256], sizes = [8, 128], strides = [1, 1]} : vector<8x384xf32> to vector<8x128xf32>
    %131 = vector.extract_strided_slice %119 {offsets = [0, 384], sizes = [8, 128], strides = [1, 1]} : vector<8x512xf32> to vector<8x128xf32>
    %132 = math.tanh %131 : vector<8x128xf32>
    %133 = arith.mulf %129, %108 : vector<8x128xf32>
    %134 = arith.mulf %128, %132 : vector<8x128xf32>
    %135 = arith.addf %133, %134 : vector<8x128xf32>
    %136 = math.tanh %135 : vector<8x128xf32>
    %137 = arith.mulf %130, %136 : vector<8x128xf32>
    %c4_48 = arith.constant 4 : index
    %c0_49 = arith.constant 0 : index
    %c0_50 = arith.constant 0 : index
    %138 = vector.load %arg3[%c4_48, %c0_49, %c0_50] : memref<8x8x128xf32, #tpu.memory_space<vmem>>, vector<1x8x128xf32>
    %139 = vector.shape_cast %138 : vector<1x8x128xf32> to vector<8x128xf32>
    %140 = vector.shape_cast %137 : vector<8x128xf32> to vector<1x8x128xf32>
    tpu.vector_store %arg3[%c4_48, %c0_49, %c0_50], %140 {strides = array<i32>} : memref<8x8x128xf32, #tpu.memory_space<vmem>>, vector<1x8x128xf32>,
    %c5 = arith.constant 5 : index
    %c0_51 = arith.constant 0 : index
    %c0_52 = arith.constant 0 : index
    %141 = vector.load %arg1[%c5, %c0_51, %c0_52] : memref<8x8x512xbf16, #tpu.memory_space<vmem>>, vector<1x8x512xbf16>
    %142 = vector.shape_cast %141 : vector<1x8x512xbf16> to vector<8x512xbf16>
    %143 = arith.extf %142 : vector<8x512xbf16> to vector<8x512xf32>
    %144 = arith.truncf %137 : vector<8x128xf32> to vector<8x128xbf16>
    %cst_53 = arith.constant dense<0.000000e+00> : vector<8x512xf32>
    %145 = tpu.matmul %144, %3, %cst_53 {dimension_numbers = #tpu.dot_dimension_numbers<[1], [0], [0], [1], [0, 0, 1, 1], [], []>} : vector<8x128xbf16>, vector<128x512xbf16>, vector<8x512xf32> -> vector<8x512xf32>
    %146 = arith.addf %143, %145 : vector<8x512xf32>
    %147 = vector.extract_strided_slice %146 {offsets = [0, 0], sizes = [8, 384], strides = [1, 1]} : vector<8x512xf32> to vector<8x384xf32>
    %cst_54 = arith.constant 0.000000e+00 : f32
    %148 = vector.broadcast %cst_54 : f32 to vector<8x384xf32>
    %149 = arith.subf %148, %147 : vector<8x384xf32>
    %150 = math.exp %149 : vector<8x384xf32>
    %cst_55 = arith.constant 1.000000e+00 : f32
    %151 = vector.broadcast %cst_55 : f32 to vector<8x384xf32>
    %152 = arith.addf %151, %150 : vector<8x384xf32>
    %cst_56 = arith.constant 1.000000e+00 : f32
    %153 = vector.broadcast %cst_56 : f32 to vector<8x384xf32>
    %154 = arith.divf %153, %152 : vector<8x384xf32>
    %155 = vector.extract_strided_slice %154 {offsets = [0, 0], sizes = [8, 128], strides = [1, 1]} : vector<8x384xf32> to vector<8x128xf32>
    %156 = vector.extract_strided_slice %154 {offsets = [0, 128], sizes = [8, 128], strides = [1, 1]} : vector<8x384xf32> to vector<8x128xf32>
    %157 = vector.extract_strided_slice %154 {offsets = [0, 256], sizes = [8, 128], strides = [1, 1]} : vector<8x384xf32> to vector<8x128xf32>
    %158 = vector.extract_strided_slice %146 {offsets = [0, 384], sizes = [8, 128], strides = [1, 1]} : vector<8x512xf32> to vector<8x128xf32>
    %159 = math.tanh %158 : vector<8x128xf32>
    %160 = arith.mulf %156, %135 : vector<8x128xf32>
    %161 = arith.mulf %155, %159 : vector<8x128xf32>
    %162 = arith.addf %160, %161 : vector<8x128xf32>
    %163 = math.tanh %162 : vector<8x128xf32>
    %164 = arith.mulf %157, %163 : vector<8x128xf32>
    %c5_57 = arith.constant 5 : index
    %c0_58 = arith.constant 0 : index
    %c0_59 = arith.constant 0 : index
    %165 = vector.load %arg3[%c5_57, %c0_58, %c0_59] : memref<8x8x128xf32, #tpu.memory_space<vmem>>, vector<1x8x128xf32>
    %166 = vector.shape_cast %165 : vector<1x8x128xf32> to vector<8x128xf32>
    %167 = vector.shape_cast %164 : vector<8x128xf32> to vector<1x8x128xf32>
    tpu.vector_store %arg3[%c5_57, %c0_58, %c0_59], %167 {strides = array<i32>} : memref<8x8x128xf32, #tpu.memory_space<vmem>>, vector<1x8x128xf32>,
    %c6 = arith.constant 6 : index
    %c0_60 = arith.constant 0 : index
    %c0_61 = arith.constant 0 : index
    %168 = vector.load %arg1[%c6, %c0_60, %c0_61] : memref<8x8x512xbf16, #tpu.memory_space<vmem>>, vector<1x8x512xbf16>
    %169 = vector.shape_cast %168 : vector<1x8x512xbf16> to vector<8x512xbf16>
    %170 = arith.extf %169 : vector<8x512xbf16> to vector<8x512xf32>
    %171 = arith.truncf %164 : vector<8x128xf32> to vector<8x128xbf16>
    %cst_62 = arith.constant dense<0.000000e+00> : vector<8x512xf32>
    %172 = tpu.matmul %171, %3, %cst_62 {dimension_numbers = #tpu.dot_dimension_numbers<[1], [0], [0], [1], [0, 0, 1, 1], [], []>} : vector<8x128xbf16>, vector<128x512xbf16>, vector<8x512xf32> -> vector<8x512xf32>
    %173 = arith.addf %170, %172 : vector<8x512xf32>
    %174 = vector.extract_strided_slice %173 {offsets = [0, 0], sizes = [8, 384], strides = [1, 1]} : vector<8x512xf32> to vector<8x384xf32>
    %cst_63 = arith.constant 0.000000e+00 : f32
    %175 = vector.broadcast %cst_63 : f32 to vector<8x384xf32>
    %176 = arith.subf %175, %174 : vector<8x384xf32>
    %177 = math.exp %176 : vector<8x384xf32>
    %cst_64 = arith.constant 1.000000e+00 : f32
    %178 = vector.broadcast %cst_64 : f32 to vector<8x384xf32>
    %179 = arith.addf %178, %177 : vector<8x384xf32>
    %cst_65 = arith.constant 1.000000e+00 : f32
    %180 = vector.broadcast %cst_65 : f32 to vector<8x384xf32>
    %181 = arith.divf %180, %179 : vector<8x384xf32>
    %182 = vector.extract_strided_slice %181 {offsets = [0, 0], sizes = [8, 128], strides = [1, 1]} : vector<8x384xf32> to vector<8x128xf32>
    %183 = vector.extract_strided_slice %181 {offsets = [0, 128], sizes = [8, 128], strides = [1, 1]} : vector<8x384xf32> to vector<8x128xf32>
    %184 = vector.extract_strided_slice %181 {offsets = [0, 256], sizes = [8, 128], strides = [1, 1]} : vector<8x384xf32> to vector<8x128xf32>
    %185 = vector.extract_strided_slice %173 {offsets = [0, 384], sizes = [8, 128], strides = [1, 1]} : vector<8x512xf32> to vector<8x128xf32>
    %186 = math.tanh %185 : vector<8x128xf32>
    %187 = arith.mulf %183, %162 : vector<8x128xf32>
    %188 = arith.mulf %182, %186 : vector<8x128xf32>
    %189 = arith.addf %187, %188 : vector<8x128xf32>
    %190 = math.tanh %189 : vector<8x128xf32>
    %191 = arith.mulf %184, %190 : vector<8x128xf32>
    %c6_66 = arith.constant 6 : index
    %c0_67 = arith.constant 0 : index
    %c0_68 = arith.constant 0 : index
    %192 = vector.load %arg3[%c6_66, %c0_67, %c0_68] : memref<8x8x128xf32, #tpu.memory_space<vmem>>, vector<1x8x128xf32>
    %193 = vector.shape_cast %192 : vector<1x8x128xf32> to vector<8x128xf32>
    %194 = vector.shape_cast %191 : vector<8x128xf32> to vector<1x8x128xf32>
    tpu.vector_store %arg3[%c6_66, %c0_67, %c0_68], %194 {strides = array<i32>} : memref<8x8x128xf32, #tpu.memory_space<vmem>>, vector<1x8x128xf32>,
    %c7 = arith.constant 7 : index
    %c0_69 = arith.constant 0 : index
    %c0_70 = arith.constant 0 : index
    %195 = vector.load %arg1[%c7, %c0_69, %c0_70] : memref<8x8x512xbf16, #tpu.memory_space<vmem>>, vector<1x8x512xbf16>
    %196 = vector.shape_cast %195 : vector<1x8x512xbf16> to vector<8x512xbf16>
    %197 = arith.extf %196 : vector<8x512xbf16> to vector<8x512xf32>
    %198 = arith.truncf %191 : vector<8x128xf32> to vector<8x128xbf16>
    %cst_71 = arith.constant dense<0.000000e+00> : vector<8x512xf32>
    %199 = tpu.matmul %198, %3, %cst_71 {dimension_numbers = #tpu.dot_dimension_numbers<[1], [0], [0], [1], [0, 0, 1, 1], [], []>} : vector<8x128xbf16>, vector<128x512xbf16>, vector<8x512xf32> -> vector<8x512xf32>
    %200 = arith.addf %197, %199 : vector<8x512xf32>
    %201 = vector.extract_strided_slice %200 {offsets = [0, 0], sizes = [8, 384], strides = [1, 1]} : vector<8x512xf32> to vector<8x384xf32>
    %cst_72 = arith.constant 0.000000e+00 : f32
    %202 = vector.broadcast %cst_72 : f32 to vector<8x384xf32>
    %203 = arith.subf %202, %201 : vector<8x384xf32>
    %204 = math.exp %203 : vector<8x384xf32>
    %cst_73 = arith.constant 1.000000e+00 : f32
    %205 = vector.broadcast %cst_73 : f32 to vector<8x384xf32>
    %206 = arith.addf %205, %204 : vector<8x384xf32>
    %cst_74 = arith.constant 1.000000e+00 : f32
    %207 = vector.broadcast %cst_74 : f32 to vector<8x384xf32>
    %208 = arith.divf %207, %206 : vector<8x384xf32>
    %209 = vector.extract_strided_slice %208 {offsets = [0, 0], sizes = [8, 128], strides = [1, 1]} : vector<8x384xf32> to vector<8x128xf32>
    %210 = vector.extract_strided_slice %208 {offsets = [0, 128], sizes = [8, 128], strides = [1, 1]} : vector<8x384xf32> to vector<8x128xf32>
    %211 = vector.extract_strided_slice %208 {offsets = [0, 256], sizes = [8, 128], strides = [1, 1]} : vector<8x384xf32> to vector<8x128xf32>
    %212 = vector.extract_strided_slice %200 {offsets = [0, 384], sizes = [8, 128], strides = [1, 1]} : vector<8x512xf32> to vector<8x128xf32>
    %213 = math.tanh %212 : vector<8x128xf32>
    %214 = arith.mulf %210, %189 : vector<8x128xf32>
    %215 = arith.mulf %209, %213 : vector<8x128xf32>
    %216 = arith.addf %214, %215 : vector<8x128xf32>
    %217 = math.tanh %216 : vector<8x128xf32>
    %218 = arith.mulf %211, %217 : vector<8x128xf32>
    %c7_75 = arith.constant 7 : index
    %c0_76 = arith.constant 0 : index
    %c0_77 = arith.constant 0 : index
    %219 = vector.load %arg3[%c7_75, %c0_76, %c0_77] : memref<8x8x128xf32, #tpu.memory_space<vmem>>, vector<1x8x128xf32>
    %220 = vector.shape_cast %219 : vector<1x8x128xf32> to vector<8x128xf32>
    %221 = vector.shape_cast %218 : vector<8x128xf32> to vector<1x8x128xf32>
    tpu.vector_store %arg3[%c7_75, %c0_76, %c0_77], %221 {strides = array<i32>} : memref<8x8x128xf32, #tpu.memory_space<vmem>>, vector<1x8x128xf32>,
    %c0_78 = arith.constant 0 : index
    %c0_79 = arith.constant 0 : index
    %222 = vector.load %arg5[%c0_78, %c0_79] : memref<8x128xf32, #tpu.memory_space<vmem>>, vector<8x128xf32>
    tpu.vector_store %arg5[%c0_78, %c0_79], %218 {strides = array<i32>} : memref<8x128xf32, #tpu.memory_space<vmem>>, vector<8x128xf32>,
    %c0_80 = arith.constant 0 : index
    %c0_81 = arith.constant 0 : index
    %223 = vector.load %arg6[%c0_80, %c0_81] : memref<8x128xf32, #tpu.memory_space<vmem>>, vector<8x128xf32>
    tpu.vector_store %arg6[%c0_80, %c0_81], %216 {strides = array<i32>} : memref<8x128xf32, #tpu.memory_space<vmem>>, vector<8x128xf32>,
    %c0_82 = arith.constant 0 : index
    %c0_83 = arith.constant 0 : index
    %224 = vector.load %arg4[%c0_82, %c0_83] : memref<8x128xf32, #tpu.memory_space<vmem>>, vector<8x128xf32>
    tpu.vector_store %arg4[%c0_82, %c0_83], %216 {strides = array<i32>} : memref<8x128xf32, #tpu.memory_space<vmem>>, vector<8x128xf32>,
    return
  }
  func.func @transform_0(%arg0: i32) -> (i32, i32, i32) {
    %c0_i32 = arith.constant 0 : i32
    %c0_i32_0 = arith.constant 0 : i32
    %c0_i32_1 = arith.constant 0 : i32
    return %arg0, %c0_i32, %c0_i32_0 : i32, i32, i32
  }
  func.func @transform_1(%arg0: i32) -> (i32, i32) {
    %c0_i32 = arith.constant 0 : i32
    %c0_i32_0 = arith.constant 0 : i32
    %c0_i32_1 = arith.constant 0 : i32
    return %c0_i32, %c0_i32_0 : i32, i32
  }
  func.func @transform_2(%arg0: i32) -> (i32, i32, i32) {
    %c0_i32 = arith.constant 0 : i32
    %c0_i32_0 = arith.constant 0 : i32
    %c0_i32_1 = arith.constant 0 : i32
    return %arg0, %c0_i32, %c0_i32_0 : i32, i32, i32
  }
  func.func @transform_3(%arg0: i32) -> (i32, i32) {
    %c0_i32 = arith.constant 0 : i32
    %c0_i32_0 = arith.constant 0 : i32
    %c0_i32_1 = arith.constant 0 : i32
    return %c0_i32, %c0_i32_0 : i32, i32
  }
}

</mosaic_0001>

<llo_original>
// kernel: tpu_custom_call.1
$region0: #{tpu_custom_call.1}
  #allocation0 [shape = 'u32[]', space=smem, size = 0x4, offset = 0x4, fixed_abs, tag = 'smem constant byte address 0x4 - core index']
  #allocation1 [shape = 'u32[144,128]{1,0:T(1,128)}', space=vmem, size = 0x12000, scoped, tag = 'internal scratch']
  #allocation2 [shape = 'f32[8,128]{1,0:T(8,128)}', space=vmem, size = 0x1000, scoped, tag = 'scratch operand']
  #allocation3 [shape = 'f32[8,128]{1,0:T(8,128)}', space=vmem, size = 0x1000, scoped, tag = 'scratch operand']
  %s0 = inlined_call_operand.hbm [shape: bf16[8,8,512], index: 0, kind: input, shape index: {}]
  %s1 = inlined_call_operand.hbm [shape: bf16[128,512], index: 1, kind: input, shape index: {}]
  %s2 = inlined_call_operand.hbm [shape: f32[8,8,128], index: 2, kind: output, shape index: {0}]
  %s3 = inlined_call_operand.hbm [shape: f32[8,128], index: 3, kind: output, shape index: {1}]
  %4 = xla_tuple %s2, %s3
  %s5 = sld [smem:[#allocation0]]
  $region38: #{tpu_custom_call.1} parent=0
    _
  %s7 = ssub.s32 1, %s5
  %s8 = scalar_select 0, %s7, %s5
  $region1: #{tpu_custom_call.1} parent=0
    #allocation4 [shape = 'u8[65536]{0}', space=vmem, size = 0x10000, scoped, tag = 'input window, operand 0, single buffered']
    #allocation5 [shape = 's32[1]{0}', space=sflag, size = 0x4, scoped, tag = 'scoped memory for tpu_custom_call.1']
    #allocation6 [shape = 's32[1]{0}', space=sflag, size = 0x4, scoped, tag = 'scoped memory for tpu_custom_call.1']
    #allocation7 [shape = 'u8[131072]{0}', space=vmem, size = 0x20000, scoped, tag = 'input window, operand 1, single buffered']
    #allocation8 [shape = 's32[1]{0}', space=sflag, size = 0x4, scoped, tag = 'scoped memory for tpu_custom_call.1']
    #allocation9 [shape = 'u8[32768]{0}', space=vmem, size = 0x8000, scoped, tag = 'output window, operand 0, single buffered']
    #allocation10 [shape = 'u8[4096]{0}', space=vmem, size = 0x1000, scoped, tag = 'output window, operand 1, single buffered']
    #allocation11 [shape = 's32[1]{0}', space=sflag, size = 0x4, scoped, tag = 'scoped memory for tpu_custom_call.1']
    %9 = vsyncpa [#allocation5], 0
    %10 = vsyncpa [#allocation8], 0
    %11 = vsyncpa [#allocation6], 0
    %12 = vsyncpa [#allocation11], 0
    // Predicated region
    $region2: #{tpu_custom_call.1} parent=1 // pred_check
      _
    $region3: #{tpu_custom_call.1} parent=1 // pred_check_branch
      %14 = sbr.rel (0) target = $region5
    $region4: #{tpu_custom_call.1} parent=1 // pred_region
      %s16 = ssub.s32 2048, 2048
      %17 = vsyncadd [#allocation5], %s16
      %s18 = sshll.u32 [#allocation4], 4
      %s19 = int_to_ptr.vmem [resolvable:$true] %s18
      %24 = dma.hbm_to_vmem [thread:$0]  %s0, 2048, %s19, [#allocation5], 256, 256, 16
    $region5: #{tpu_custom_call.1} parent=1 // pred_fallthru
      _
    // Predicated region
    $region6: #{tpu_custom_call.1} parent=1 // pred_check
      _
    $region7: #{tpu_custom_call.1} parent=1 // pred_check_branch
      %26 = sbr.rel (0) target = $region9
    $region8: #{tpu_custom_call.1} parent=1 // pred_region
      %s28 = ssub.s32 4096, 4096
      %29 = vsyncadd [#allocation8], %s28
      %s30 = sshll.u32 [#allocation7], 4
      %s31 = int_to_ptr.vmem [resolvable:$true] %s30
      %36 = dma.hbm_to_vmem [thread:$0]  %s1, 4096, %s31, [#allocation8], 256, 256, 16
    $region9: #{tpu_custom_call.1} parent=1 // pred_fallthru
      _
    // Predicated region
    $region10: #{tpu_custom_call.1} parent=1 // pred_check
      _
    $region11: #{tpu_custom_call.1} parent=1 // pred_check_branch
      %38 = sbr.rel (0) target = $region13
    $region12: #{tpu_custom_call.1} parent=1 // pred_region
      %39 = dma.done [#allocation5], 2048
    $region13: #{tpu_custom_call.1} parent=1 // pred_fallthru
      _
    // Predicated region
    $region14: #{tpu_custom_call.1} parent=1 // pred_check
      _
    $region15: #{tpu_custom_call.1} parent=1 // pred_check_branch
      %41 = sbr.rel (0) target = $region17
    $region16: #{tpu_custom_call.1} parent=1 // pred_region
      %42 = dma.done [#allocation8], 4096
    $region17: #{tpu_custom_call.1} parent=1 // pred_fallthru
      _
    %p44 = scmp.eq.s32.totalorder 0, 0
    // Predicated region
    $region18: #{tpu_custom_call.1} parent=1 // pred_check
      %p45 = pneg %p44
    $region19: #{tpu_custom_call.1} parent=1 // pred_check_branch
      %47 = sbr.rel (%p45) target = $region21
    $region20: #{tpu_custom_call.1} parent=1 // pred_region
      %48 = vst [vmem:[#allocation2] sm:$0xff] 0.0
      %49 = vst [vmem:[#allocation3] sm:$0xff] 0.0
    $region21: #{tpu_custom_call.1} parent=1 // pred_fallthru
      _
    %v50 = vld [vmem:[#allocation7] sm:$0xff]
    %v51 = vld [vmem:[#allocation7 + $0x8] sm:$0xff]
    %v52 = vld [vmem:[#allocation7 + $0x10] sm:$0xff]
    %v53 = vld [vmem:[#allocation7 + $0x18] sm:$0xff]
    %v54 = vld [vmem:[#allocation7 + $0x20] sm:$0xff]
    %v55 = vld [vmem:[#allocation7 + $0x28] sm:$0xff]
    %v56 = vld [vmem:[#allocation7 + $0x30] sm:$0xff]
    %v57 = vld [vmem:[#allocation7 + $0x38] sm:$0xff]
    %v58 = vld [vmem:[#allocation7 + $0x40] sm:$0xff]
    %v59 = vld [vmem:[#allocation7 + $0x48] sm:$0xff]
    %v60 = vld [vmem:[#allocation7 + $0x50] sm:$0xff]
    %v61 = vld [vmem:[#allocation7 + $0x58] sm:$0xff]
    %v62 = vld [vmem:[#allocation7 + $0x60] sm:$0xff]
    %v63 = vld [vmem:[#allocation7 + $0x68] sm:$0xff]
    %v64 = vld [vmem:[#allocation7 + $0x70] sm:$0xff]
    %v65 = vld [vmem:[#allocation7 + $0x78] sm:$0xff]
    %v66 = vld [vmem:[#allocation7 + $0x80] sm:$0xff]
    %v67 = vld [vmem:[#allocation7 + $0x88] sm:$0xff]
    %v68 = vld [vmem:[#allocation7 + $0x90] sm:$0xff]
    %v69 = vld [vmem:[#allocation7 + $0x98] sm:$0xff]
    %v70 = vld [vmem:[#allocation7 + $0xa0] sm:$0xff]
    %v71 = vld [vmem:[#allocation7 + $0xa8] sm:$0xff]
    %v72 = vld [vmem:[#allocation7 + $0xb0] sm:$0xff]
    %v73 = vld [vmem:[#allocation7 + $0xb8] sm:$0xff]
    %v74 = vld [vmem:[#allocation7 + $0xc0] sm:$0xff]
    %v75 = vld [vmem:[#allocation7 + $0xc8] sm:$0xff]
    %v76 = vld [vmem:[#allocation7 + $0xd0] sm:$0xff]
    %v77 = vld [vmem:[#allocation7 + $0xd8] sm:$0xff]
    %v78 = vld [vmem:[#allocation7 + $0xe0] sm:$0xff]
    %v79 = vld [vmem:[#allocation7 + $0xe8] sm:$0xff]
    %v80 = vld [vmem:[#allocation7 + $0xf0] sm:$0xff]
    %v81 = vld [vmem:[#allocation7 + $0xf8] sm:$0xff]
    %v82 = vld [vmem:[#allocation2] sm:$0xff]
    %v83 = vld [vmem:[#allocation3] sm:$0xff]
    %v84 = vld [vmem:[#allocation4] sm:$0xff]
    %v85 = vld [vmem:[#allocation4 + $0x8] sm:$0xff]
    %v86 = vunpack.c.l.bf16 %v84
    %v87 = vunpack.c.h.bf16 %v84
    %v88 = vunpack.c.l.bf16 %v85
    %v89 = vunpack.c.h.bf16 %v85
    %v90 = vpack.c.bf16 %v82, %v82
    %v123 = vunpack.c.l.b16 %v50
    %v124 = vunpack.c.h.b16 %v50
    %v125 = vunpack.c.l.b16 %v51
    %v126 = vunpack.c.h.b16 %v51
    %v127 = vunpack.c.l.b16 %v52
    %v128 = vunpack.c.h.b16 %v52
    %v129 = vunpack.c.l.b16 %v53
    %v130 = vunpack.c.h.b16 %v53
    %v131 = vunpack.c.l.b16 %v54
    %v132 = vunpack.c.h.b16 %v54
    %v133 = vunpack.c.l.b16 %v55
    %v134 = vunpack.c.h.b16 %v55
    %v135 = vunpack.c.l.b16 %v56
    %v136 = vunpack.c.h.b16 %v56
    %v137 = vunpack.c.l.b16 %v57
    %v138 = vunpack.c.h.b16 %v57
    %v139 = vunpack.c.l.b16 %v58
    %v140 = vunpack.c.h.b16 %v58
    %v141 = vunpack.c.l.b16 %v59
    %v142 = vunpack.c.h.b16 %v59
    %v143 = vunpack.c.l.b16 %v60
    %v144 = vunpack.c.h.b16 %v60
    %v145 = vunpack.c.l.b16 %v61
    %v146 = vunpack.c.h.b16 %v61
    %v147 = vunpack.c.l.b16 %v62
    %v148 = vunpack.c.h.b16 %v62
    %v149 = vunpack.c.l.b16 %v63
    %v150 = vunpack.c.h.b16 %v63
    %v151 = vunpack.c.l.b16 %v64
    %v152 = vunpack.c.h.b16 %v64
    %v153 = vunpack.c.l.b16 %v65
    %v154 = vunpack.c.h.b16 %v65
    %v155 = vunpack.c.l.b16 %v66
    %v156 = vunpack.c.h.b16 %v66
    %v157 = vunpack.c.l.b16 %v67
    %v158 = vunpack.c.h.b16 %v67
    %v159 = vunpack.c.l.b16 %v68
    %v160 = vunpack.c.h.b16 %v68
    %v161 = vunpack.c.l.b16 %v69
    %v162 = vunpack.c.h.b16 %v69
    %v163 = vunpack.c.l.b16 %v70
    %v164 = vunpack.c.h.b16 %v70
    %v165 = vunpack.c.l.b16 %v71
    %v166 = vunpack.c.h.b16 %v71
    %v167 = vunpack.c.l.b16 %v72
    %v168 = vunpack.c.h.b16 %v72
    %v169 = vunpack.c.l.b16 %v73
    %v170 = vunpack.c.h.b16 %v73
    %v171 = vunpack.c.l.b16 %v74
    %v172 = vunpack.c.h.b16 %v74
    %v173 = vunpack.c.l.b16 %v75
    %v174 = vunpack.c.h.b16 %v75
    %v175 = vunpack.c.l.b16 %v76
    %v176 = vunpack.c.h.b16 %v76
    %v177 = vunpack.c.l.b16 %v77
    %v178 = vunpack.c.h.b16 %v77
    %v179 = vunpack.c.l.b16 %v78
    %v180 = vunpack.c.h.b16 %v78
    %v181 = vunpack.c.l.b16 %v79
    %v182 = vunpack.c.h.b16 %v79
    %v183 = vunpack.c.l.b16 %v80
    %v184 = vunpack.c.h.b16 %v80
    %v185 = vunpack.c.l.b16 %v81
    %v186 = vunpack.c.h.b16 %v81
    %v187 = vpack.c.b16 %v127, %v123
    %v188 = vpack.c.b16 %v128, %v124
    %v189 = vpack.c.b16 %v129, %v125
    %v190 = vpack.c.b16 %v130, %v126
    %v191 = vpack.c.b16 %v135, %v131
    %v192 = vpack.c.b16 %v136, %v132
    %v193 = vpack.c.b16 %v137, %v133
    %v194 = vpack.c.b16 %v138, %v134
    %v195 = vpack.c.b16 %v143, %v139
    %v196 = vpack.c.b16 %v144, %v140
    %v197 = vpack.c.b16 %v145, %v141
    %v198 = vpack.c.b16 %v146, %v142
    %v199 = vpack.c.b16 %v151, %v147
    %v200 = vpack.c.b16 %v152, %v148
    %v201 = vpack.c.b16 %v153, %v149
    %v202 = vpack.c.b16 %v154, %v150
    %v203 = vpack.c.b16 %v159, %v155
    %v204 = vpack.c.b16 %v160, %v156
    %v205 = vpack.c.b16 %v161, %v157
    %v206 = vpack.c.b16 %v162, %v158
    %v207 = vpack.c.b16 %v167, %v163
    %v208 = vpack.c.b16 %v168, %v164
    %v209 = vpack.c.b16 %v169, %v165
    %v210 = vpack.c.b16 %v170, %v166
    %v211 = vpack.c.b16 %v175, %v171
    %v212 = vpack.c.b16 %v176, %v172
    %v213 = vpack.c.b16 %v177, %v173
    %v214 = vpack.c.b16 %v178, %v174
    %v215 = vpack.c.b16 %v183, %v179
    %v216 = vpack.c.b16 %v184, %v180
    %v217 = vpack.c.b16 %v185, %v181
    %v218 = vpack.c.b16 %v186, %v182
    %251 = vmatprep.subr.bf16.mxu0 %v216
    %252 = vmatpush1.bf16.msra.mxu0 %v215
    %253 = vmatprep.subr.bf16.mxu0 %v212
    %254 = vmatpush1.bf16.msra.mxu0 %v211
    %255 = vmatprep.subr.bf16.mxu0 %v208
    %256 = vmatpush1.bf16.msra.mxu0 %v207
    %257 = vmatprep.subr.bf16.mxu0 %v204
    %258 = vmatpush1.bf16.msra.mxu0 %v203
    %259 = vmatprep.subr.bf16.mxu0 %v200
    %260 = vmatpush1.bf16.msra.mxu0 %v199
    %261 = vmatprep.subr.bf16.mxu0 %v196
    %262 = vmatpush1.bf16.msra.mxu0 %v195
    %263 = vmatprep.subr.bf16.mxu0 %v192
    %264 = vmatpush1.bf16.msra.mxu0 %v191
    %265 = vmatprep.subr.bf16.mxu0 %v188
    %266 = vmatpush1.bf16.msra.mxu0 %v187
    %267 = vmatprep.subr.bf16.mxu0 0
    %268 = vmatpush2.bf16.msra.mxu0 0
    %269 = vmatprep.subr.bf16.mxu0 0
    %270 = vmatpush2.bf16.msra.mxu0 0
    %271 = vmatprep.subr.bf16.mxu0 0
    %272 = vmatpush2.bf16.msra.mxu0 0
    %273 = vmatprep.subr.bf16.mxu0 0
    %274 = vmatpush2.bf16.msra.mxu0 0
    %275 = vmatprep.subr.bf16.mxu0 0
    %276 = vmatpush2.bf16.msra.mxu0 0
    %277 = vmatprep.subr.bf16.mxu0 0
    %278 = vmatpush2.bf16.msra.mxu0 0
    %279 = vmatprep.subr.bf16.mxu0 0
    %280 = vmatpush2.bf16.msra.mxu0 0
    %281 = vmatprep.subr.bf16.mxu0 0
    %282 = vmatpush2.bf16.msra.mxu0 0
    %283 = vmatprep.mubr.bf16.mxu0 0
    %284 = vmatmul.mubr.bf16.gmra.mxu0 %v90
    %v285 = vpop.f32.mrf.mxu0
    %v286 = vadd.f32 0.0, %v285
    %v287 = vpop.f32.mrf.mxu0
    %v288 = vadd.f32 0.0, %v287
    %v289 = vpop.f32.mrf.mxu0
    %v290 = vpop.f32.mrf.mxu0
    %291 = vdwg.mxu0
    %292 = vmatprep.subr.bf16.mxu0 %v218
    %293 = vmatpush1.bf16.msra.mxu0 %v217
    %294 = vmatprep.subr.bf16.mxu0 %v214
    %295 = vmatpush1.bf16.msra.mxu0 %v213
    %296 = vmatprep.subr.bf16.mxu0 %v210
    %297 = vmatpush1.bf16.msra.mxu0 %v209
    %298 = vmatprep.subr.bf16.mxu0 %v206
    %299 = vmatpush1.bf16.msra.mxu0 %v205
    %300 = vmatprep.subr.bf16.mxu0 %v202
    %301 = vmatpush1.bf16.msra.mxu0 %v201
    %302 = vmatprep.subr.bf16.mxu0 %v198
    %303 = vmatpush1.bf16.msra.mxu0 %v197
    %304 = vmatprep.subr.bf16.mxu0 %v194
    %305 = vmatpush1.bf16.msra.mxu0 %v193
    %306 = vmatprep.subr.bf16.mxu0 %v190
    %307 = vmatpush1.bf16.msra.mxu0 %v189
    %308 = vmatprep.subr.bf16.mxu0 0
    %309 = vmatpush2.bf16.msra.mxu0 0
    %310 = vmatprep.subr.bf16.mxu0 0
    %311 = vmatpush2.bf16.msra.mxu0 0
    %312 = vmatprep.subr.bf16.mxu0 0
    %313 = vmatpush2.bf16.msra.mxu0 0
    %314 = vmatprep.subr.bf16.mxu0 0
    %315 = vmatpush2.bf16.msra.mxu0 0
    %316 = vmatprep.subr.bf16.mxu0 0
    %317 = vmatpush2.bf16.msra.mxu0 0
    %318 = vmatprep.subr.bf16.mxu0 0
    %319 = vmatpush2.bf16.msra.mxu0 0
    %320 = vmatprep.subr.bf16.mxu0 0
    %321 = vmatpush2.bf16.msra.mxu0 0
    %322 = vmatprep.subr.bf16.mxu0 0
    %323 = vmatpush2.bf16.msra.mxu0 0
    %324 = vmatprep.mubr.bf16.mxu0 0
    %325 = vmatmul.mubr.bf16.gmra.mxu0 %v90
    %v326 = vpop.f32.mrf.mxu0
    %v327 = vadd.f32 0.0, %v326
    %v328 = vpop.f32.mrf.mxu0
    %v329 = vadd.f32 0.0, %v328
    %v330 = vpop.f32.mrf.mxu0
    %v331 = vpop.f32.mrf.mxu0
    %332 = vdwg.mxu0
    %v333 = vadd.f32 %v86, %v286
    %v334 = vadd.f32 %v87, %v288
    %v335 = vadd.f32 %v88, %v327
    %v336 = vadd.f32 %v89, %v329
    %v337 = vsub.f32 0.0, %v333
    %v338 = vsub.f32 0.0, %v334
    %v339 = vsub.f32 0.0, %v335
    %v340 = vmul.f32 %v337, 1.442695
    %v341 = vpow.pop %v340
    %v342 = vmul.f32 %v338, 1.442695
    %v343 = vpow.pop %v342
    %v344 = vmul.f32 %v339, 1.442695
    %v345 = vpow.pop %v344
    %v346 = vadd.f32 %v341, 1.0
    %v347 = vadd.f32 %v343, 1.0
    %v348 = vadd.f32 %v345, 1.0
    %v349 = vrcp.pop %v346
    %v350 = vmul.f32 1.0, %v349
    %v351 = vrcp.pop %v347
    %v352 = vmul.f32 1.0, %v351
    %v353 = vrcp.pop %v348
    %v354 = vmul.f32 1.0, %v353
    %v355 = vtanh.pop %v336
    %v356 = vmul.f32 %v352, %v83
    %v357 = vmul.f32 %v350, %v355
    %v358 = vadd.f32 %v356, %v357
    %v359 = vtanh.pop %v358
    %v360 = vmul.f32 %v354, %v359
    %361 = vst [vmem:[#allocation9] sm:$0xff] %v360
    %s362 = scalar_lea.vmem [#allocation4], 16
    %v363 = vld [vmem:[%s362] sm:$0xff]
    %v364 = vld [vmem:[%s362 + $0x8] sm:$0xff]
    %v365 = vunpack.c.l.bf16 %v363
    %v366 = vunpack.c.h.bf16 %v363
    %v367 = vunpack.c.l.bf16 %v364
    %v368 = vunpack.c.h.bf16 %v364
    %v369 = vpack.c.bf16 %v360, %v360
    %370 = vmatprep.subr.bf16.mxu0 %v216
    %371 = vmatpush1.bf16.msra.mxu0 %v215
    %372 = vmatprep.subr.bf16.mxu0 %v212
    %373 = vmatpush1.bf16.msra.mxu0 %v211
    %374 = vmatprep.subr.bf16.mxu0 %v208
    %375 = vmatpush1.bf16.msra.mxu0 %v207
    %376 = vmatprep.subr.bf16.mxu0 %v204
    %377 = vmatpush1.bf16.msra.mxu0 %v203
    %378 = vmatprep.subr.bf16.mxu0 %v200
    %379 = vmatpush1.bf16.msra.mxu0 %v199
    %380 = vmatprep.subr.bf16.mxu0 %v196
    %381 = vmatpush1.bf16.msra.mxu0 %v195
    %382 = vmatprep.subr.bf16.mxu0 %v192
    %383 = vmatpush1.bf16.msra.mxu0 %v191
    %384 = vmatprep.subr.bf16.mxu0 %v188
    %385 = vmatpush1.bf16.msra.mxu0 %v187
    %386 = vmatprep.subr.bf16.mxu0 0
    %387 = vmatpush2.bf16.msra.mxu0 0
    %388 = vmatprep.subr.bf16.mxu0 0
    %389 = vmatpush2.bf16.msra.mxu0 0
    %390 = vmatprep.subr.bf16.mxu0 0
    %391 = vmatpush2.bf16.msra.mxu0 0
    %392 = vmatprep.subr.bf16.mxu0 0
    %393 = vmatpush2.bf16.msra.mxu0 0
    %394 = vmatprep.subr.bf16.mxu0 0
    %395 = vmatpush2.bf16.msra.mxu0 0
    %396 = vmatprep.subr.bf16.mxu0 0
    %397 = vmatpush2.bf16.msra.mxu0 0
    %398 = vmatprep.subr.bf16.mxu0 0
    %399 = vmatpush2.bf16.msra.mxu0 0
    %400 = vmatprep.subr.bf16.mxu0 0
    %401 = vmatpush2.bf16.msra.mxu0 0
    %402 = vmatprep.mubr.bf16.mxu0 0
    %403 = vmatmul.mubr.bf16.gmra.mxu0 %v369
    %v404 = vpop.f32.mrf.mxu0
    %v405 = vadd.f32 0.0, %v404
    %v406 = vpop.f32.mrf.mxu0
    %v407 = vadd.f32 0.0, %v406
    %v408 = vpop.f32.mrf.mxu0
    %v409 = vpop.f32.mrf.mxu0
    %410 = vdwg.mxu0
    %411 = vmatprep.subr.bf16.mxu0 %v218
    %412 = vmatpush1.bf16.msra.mxu0 %v217
    %413 = vmatprep.subr.bf16.mxu0 %v214
    %414 = vmatpush1.bf16.msra.mxu0 %v213
    %415 = vmatprep.subr.bf16.mxu0 %v210
    %416 = vmatpush1.bf16.msra.mxu0 %v209
    %417 = vmatprep.subr.bf16.mxu0 %v206
    %418 = vmatpush1.bf16.msra.mxu0 %v205
    %419 = vmatprep.subr.bf16.mxu0 %v202
    %420 = vmatpush1.bf16.msra.mxu0 %v201
    %421 = vmatprep.subr.bf16.mxu0 %v198
    %422 = vmatpush1.bf16.msra.mxu0 %v197
    %423 = vmatprep.subr.bf16.mxu0 %v194
    %424 = vmatpush1.bf16.msra.mxu0 %v193
    %425 = vmatprep.subr.bf16.mxu0 %v190
    %426 = vmatpush1.bf16.msra.mxu0 %v189
    %427 = vmatprep.subr.bf16.mxu0 0
    %428 = vmatpush2.bf16.msra.mxu0 0
    %429 = vmatprep.subr.bf16.mxu0 0
    %430 = vmatpush2.bf16.msra.mxu0 0
    %431 = vmatprep.subr.bf16.mxu0 0
    %432 = vmatpush2.bf16.msra.mxu0 0
    %433 = vmatprep.subr.bf16.mxu0 0
    %434 = vmatpush2.bf16.msra.mxu0 0
    %435 = vmatprep.subr.bf16.mxu0 0
    %436 = vmatpush2.bf16.msra.mxu0 0
    %437 = vmatprep.subr.bf16.mxu0 0
    %438 = vmatpush2.bf16.msra.mxu0 0
    %439 = vmatprep.subr.bf16.mxu0 0
    %440 = vmatpush2.bf16.msra.mxu0 0
    %441 = vmatprep.subr.bf16.mxu0 0
    %442 = vmatpush2.bf16.msra.mxu0 0
    %443 = vmatprep.mubr.bf16.mxu0 0
    %444 = vmatmul.mubr.bf16.gmra.mxu0 %v369
    %v445 = vpop.f32.mrf.mxu0
    %v446 = vadd.f32 0.0, %v445
    %v447 = vpop.f32.mrf.mxu0
    %v448 = vadd.f32 0.0, %v447
    %v449 = vpop.f32.mrf.mxu0
    %v450 = vpop.f32.mrf.mxu0
    %451 = vdwg.mxu0
    %v452 = vadd.f32 %v365, %v405
    %v453 = vadd.f32 %v366, %v407
    %v454 = vadd.f32 %v367, %v446
    %v455 = vadd.f32 %v368, %v448
    %v456 = vsub.f32 0.0, %v452
    %v457 = vsub.f32 0.0, %v453
    %v458 = vsub.f32 0.0, %v454
    %v459 = vmul.f32 %v456, 1.442695
    %v460 = vpow.pop %v459
    %v461 = vmul.f32 %v457, 1.442695
    %v462 = vpow.pop %v461
    %v463 = vmul.f32 %v458, 1.442695
    %v464 = vpow.pop %v463
    %v465 = vadd.f32 %v460, 1.0
    %v466 = vadd.f32 %v462, 1.0
    %v467 = vadd.f32 %v464, 1.0
    %v468 = vrcp.pop %v465
    %v469 = vmul.f32 1.0, %v468
    %v470 = vrcp.pop %v466
    %v471 = vmul.f32 1.0, %v470
    %v472 = vrcp.pop %v467
    %v473 = vmul.f32 1.0, %v472
    %v474 = vtanh.pop %v455
    %v475 = vmul.f32 %v471, %v358
    %v476 = vmul.f32 %v469, %v474
    %v477 = vadd.f32 %v475, %v476
    %v478 = vtanh.pop %v477
    %v479 = vmul.f32 %v473, %v478
    %s480 = scalar_lea.vmem [#allocation9], 8
    %481 = vst [vmem:[%s480] sm:$0xff] %v479
    %s482 = scalar_lea.vmem [#allocation4], 32
    %v483 = vld [vmem:[%s482] sm:$0xff]
    %v484 = vld [vmem:[%s482 + $0x8] sm:$0xff]
    %v485 = vunpack.c.l.bf16 %v483
    %v486 = vunpack.c.h.bf16 %v483
    %v487 = vunpack.c.l.bf16 %v484
    %v488 = vunpack.c.h.bf16 %v484
    %v489 = vpack.c.bf16 %v479, %v479
    %490 = vmatprep.subr.bf16.mxu0 %v216
    %491 = vmatpush1.bf16.msra.mxu0 %v215
    %492 = vmatprep.subr.bf16.mxu0 %v212
    %493 = vmatpush1.bf16.msra.mxu0 %v211
    %494 = vmatprep.subr.bf16.mxu0 %v208
    %495 = vmatpush1.bf16.msra.mxu0 %v207
    %496 = vmatprep.subr.bf16.mxu0 %v204
    %497 = vmatpush1.bf16.msra.mxu0 %v203
    %498 = vmatprep.subr.bf16.mxu0 %v200
    %499 = vmatpush1.bf16.msra.mxu0 %v199
    %500 = vmatprep.subr.bf16.mxu0 %v196
    %501 = vmatpush1.bf16.msra.mxu0 %v195
    %502 = vmatprep.subr.bf16.mxu0 %v192
    %503 = vmatpush1.bf16.msra.mxu0 %v191
    %504 = vmatprep.subr.bf16.mxu0 %v188
    %505 = vmatpush1.bf16.msra.mxu0 %v187
    %506 = vmatprep.subr.bf16.mxu0 0
    %507 = vmatpush2.bf16.msra.mxu0 0
    %508 = vmatprep.subr.bf16.mxu0 0
    %509 = vmatpush2.bf16.msra.mxu0 0
    %510 = vmatprep.subr.bf16.mxu0 0
    %511 = vmatpush2.bf16.msra.mxu0 0
    %512 = vmatprep.subr.bf16.mxu0 0
    %513 = vmatpush2.bf16.msra.mxu0 0
    %514 = vmatprep.subr.bf16.mxu0 0
    %515 = vmatpush2.bf16.msra.mxu0 0
    %516 = vmatprep.subr.bf16.mxu0 0
    %517 = vmatpush2.bf16.msra.mxu0 0
    %518 = vmatprep.subr.bf16.mxu0 0
    %519 = vmatpush2.bf16.msra.mxu0 0
    %520 = vmatprep.subr.bf16.mxu0 0
    %521 = vmatpush2.bf16.msra.mxu0 0
    %522 = vmatprep.mubr.bf16.mxu0 0
    %523 = vmatmul.mubr.bf16.gmra.mxu0 %v489
    %v524 = vpop.f32.mrf.mxu0
    %v525 = vadd.f32 0.0, %v524
    %v526 = vpop.f32.mrf.mxu0
    %v527 = vadd.f32 0.0, %v526
    %v528 = vpop.f32.mrf.mxu0
    %v529 = vpop.f32.mrf.mxu0
    %530 = vdwg.mxu0
    %531 = vmatprep.subr.bf16.mxu0 %v218
    %532 = vmatpush1.bf16.msra.mxu0 %v217
    %533 = vmatprep.subr.bf16.mxu0 %v214
    %534 = vmatpush1.bf16.msra.mxu0 %v213
    %535 = vmatprep.subr.bf16.mxu0 %v210
    %536 = vmatpush1.bf16.msra.mxu0 %v209
    %537 = vmatprep.subr.bf16.mxu0 %v206
    %538 = vmatpush1.bf16.msra.mxu0 %v205
    %539 = vmatprep.subr.bf16.mxu0 %v202
    %540 = vmatpush1.bf16.msra.mxu0 %v201
    %541 = vmatprep.subr.bf16.mxu0 %v198
    %542 = vmatpush1.bf16.msra.mxu0 %v197
    %543 = vmatprep.subr.bf16.mxu0 %v194
    %544 = vmatpush1.bf16.msra.mxu0 %v193
    %545 = vmatprep.subr.bf16.mxu0 %v190
    %546 = vmatpush1.bf16.msra.mxu0 %v189
    %547 = vmatprep.subr.bf16.mxu0 0
    %548 = vmatpush2.bf16.msra.mxu0 0
    %549 = vmatprep.subr.bf16.mxu0 0
    %550 = vmatpush2.bf16.msra.mxu0 0
    %551 = vmatprep.subr.bf16.mxu0 0
    %552 = vmatpush2.bf16.msra.mxu0 0
    %553 = vmatprep.subr.bf16.mxu0 0
    %554 = vmatpush2.bf16.msra.mxu0 0
    %555 = vmatprep.subr.bf16.mxu0 0
    %556 = vmatpush2.bf16.msra.mxu0 0
    %557 = vmatprep.subr.bf16.mxu0 0
    %558 = vmatpush2.bf16.msra.mxu0 0
    %559 = vmatprep.subr.bf16.mxu0 0
    %560 = vmatpush2.bf16.msra.mxu0 0
    %561 = vmatprep.subr.bf16.mxu0 0
    %562 = vmatpush2.bf16.msra.mxu0 0
    %563 = vmatprep.mubr.bf16.mxu0 0
    %564 = vmatmul.mubr.bf16.gmra.mxu0 %v489
    %v565 = vpop.f32.mrf.mxu0
    %v566 = vadd.f32 0.0, %v565
    %v567 = vpop.f32.mrf.mxu0
    %v568 = vadd.f32 0.0, %v567
    %v569 = vpop.f32.mrf.mxu0
    %v570 = vpop.f32.mrf.mxu0
    %571 = vdwg.mxu0
    %v572 = vadd.f32 %v485, %v525
    %v573 = vadd.f32 %v486, %v527
    %v574 = vadd.f32 %v487, %v566
    %v575 = vadd.f32 %v488, %v568
    %v576 = vsub.f32 0.0, %v572
    %v577 = vsub.f32 0.0, %v573
    %v578 = vsub.f32 0.0, %v574
    %v579 = vmul.f32 %v576, 1.442695
    %v580 = vpow.pop %v579
    %v581 = vmul.f32 %v577, 1.442695
    %v582 = vpow.pop %v581
    %v583 = vmul.f32 %v578, 1.442695
    %v584 = vpow.pop %v583
    %v585 = vadd.f32 %v580, 1.0
    %v586 = vadd.f32 %v582, 1.0
    %v587 = vadd.f32 %v584, 1.0
    %v588 = vrcp.pop %v585
    %v589 = vmul.f32 1.0, %v588
    %v590 = vrcp.pop %v586
    %v591 = vmul.f32 1.0, %v590
    %v592 = vrcp.pop %v587
    %v593 = vmul.f32 1.0, %v592
    %v594 = vtanh.pop %v575
    %v595 = vmul.f32 %v591, %v477
    %v596 = vmul.f32 %v589, %v594
    %v597 = vadd.f32 %v595, %v596
    %v598 = vtanh.pop %v597
    %v599 = vmul.f32 %v593, %v598
    %s600 = scalar_lea.vmem [#allocation9], 16
    %601 = vst [vmem:[%s600] sm:$0xff] %v599
    %s602 = scalar_lea.vmem [#allocation4], 48
    %v603 = vld [vmem:[%s602] sm:$0xff]
    %v604 = vld [vmem:[%s602 + $0x8] sm:$0xff]
    %v605 = vunpack.c.l.bf16 %v603
    %v606 = vunpack.c.h.bf16 %v603
    %v607 = vunpack.c.l.bf16 %v604
    %v608 = vunpack.c.h.bf16 %v604
    %v609 = vpack.c.bf16 %v599, %v599
    %610 = vmatprep.subr.bf16.mxu0 %v216
    %611 = vmatpush1.bf16.msra.mxu0 %v215
    %612 = vmatprep.subr.bf16.mxu0 %v212
    %613 = vmatpush1.bf16.msra.mxu0 %v211
    %614 = vmatprep.subr.bf16.mxu0 %v208
    %615 = vmatpush1.bf16.msra.mxu0 %v207
    %616 = vmatprep.subr.bf16.mxu0 %v204
    %617 = vmatpush1.bf16.msra.mxu0 %v203
    %618 = vmatprep.subr.bf16.mxu0 %v200
    %619 = vmatpush1.bf16.msra.mxu0 %v199
    %620 = vmatprep.subr.bf16.mxu0 %v196
    %621 = vmatpush1.bf16.msra.mxu0 %v195
    %622 = vmatprep.subr.bf16.mxu0 %v192
    %623 = vmatpush1.bf16.msra.mxu0 %v191
    %624 = vmatprep.subr.bf16.mxu0 %v188
    %625 = vmatpush1.bf16.msra.mxu0 %v187
    %626 = vmatprep.subr.bf16.mxu0 0
    %627 = vmatpush2.bf16.msra.mxu0 0
    %628 = vmatprep.subr.bf16.mxu0 0
    %629 = vmatpush2.bf16.msra.mxu0 0
    %630 = vmatprep.subr.bf16.mxu0 0
    %631 = vmatpush2.bf16.msra.mxu0 0
    %632 = vmatprep.subr.bf16.mxu0 0
    %633 = vmatpush2.bf16.msra.mxu0 0
    %634 = vmatprep.subr.bf16.mxu0 0
    %635 = vmatpush2.bf16.msra.mxu0 0
    %636 = vmatprep.subr.bf16.mxu0 0
    %637 = vmatpush2.bf16.msra.mxu0 0
    %638 = vmatprep.subr.bf16.mxu0 0
    %639 = vmatpush2.bf16.msra.mxu0 0
    %640 = vmatprep.subr.bf16.mxu0 0
    %641 = vmatpush2.bf16.msra.mxu0 0
    %642 = vmatprep.mubr.bf16.mxu0 0
    %643 = vmatmul.mubr.bf16.gmra.mxu0 %v609
    %v644 = vpop.f32.mrf.mxu0
    %v645 = vadd.f32 0.0, %v644
    %v646 = vpop.f32.mrf.mxu0
    %v647 = vadd.f32 0.0, %v646
    %v648 = vpop.f32.mrf.mxu0
    %v649 = vpop.f32.mrf.mxu0
    %650 = vdwg.mxu0
    %651 = vmatprep.subr.bf16.mxu0 %v218
    %652 = vmatpush1.bf16.msra.mxu0 %v217
    %653 = vmatprep.subr.bf16.mxu0 %v214
    %654 = vmatpush1.bf16.msra.mxu0 %v213
    %655 = vmatprep.subr.bf16.mxu0 %v210
    %656 = vmatpush1.bf16.msra.mxu0 %v209
    %657 = vmatprep.subr.bf16.mxu0 %v206
    %658 = vmatpush1.bf16.msra.mxu0 %v205
    %659 = vmatprep.subr.bf16.mxu0 %v202
    %660 = vmatpush1.bf16.msra.mxu0 %v201
    %661 = vmatprep.subr.bf16.mxu0 %v198
    %662 = vmatpush1.bf16.msra.mxu0 %v197
    %663 = vmatprep.subr.bf16.mxu0 %v194
    %664 = vmatpush1.bf16.msra.mxu0 %v193
    %665 = vmatprep.subr.bf16.mxu0 %v190
    %666 = vmatpush1.bf16.msra.mxu0 %v189
    %667 = vmatprep.subr.bf16.mxu0 0
    %668 = vmatpush2.bf16.msra.mxu0 0
    %669 = vmatprep.subr.bf16.mxu0 0
    %670 = vmatpush2.bf16.msra.mxu0 0
    %671 = vmatprep.subr.bf16.mxu0 0
    %672 = vmatpush2.bf16.msra.mxu0 0
    %673 = vmatprep.subr.bf16.mxu0 0
    %674 = vmatpush2.bf16.msra.mxu0 0
    %675 = vmatprep.subr.bf16.mxu0 0
    %676 = vmatpush2.bf16.msra.mxu0 0
    %677 = vmatprep.subr.bf16.mxu0 0
    %678 = vmatpush2.bf16.msra.mxu0 0
    %679 = vmatprep.subr.bf16.mxu0 0
    %680 = vmatpush2.bf16.msra.mxu0 0
    %681 = vmatprep.subr.bf16.mxu0 0
    %682 = vmatpush2.bf16.msra.mxu0 0
    %683 = vmatprep.mubr.bf16.mxu0 0
    %684 = vmatmul.mubr.bf16.gmra.mxu0 %v609
    %v685 = vpop.f32.mrf.mxu0
    %v686 = vadd.f32 0.0, %v685
    %v687 = vpop.f32.mrf.mxu0
    %v688 = vadd.f32 0.0, %v687
    %v689 = vpop.f32.mrf.mxu0
    %v690 = vpop.f32.mrf.mxu0
    %691 = vdwg.mxu0
    %v692 = vadd.f32 %v605, %v645
    %v693 = vadd.f32 %v606, %v647
    %v694 = vadd.f32 %v607, %v686
    %v695 = vadd.f32 %v608, %v688
    %v696 = vsub.f32 0.0, %v692
    %v697 = vsub.f32 0.0, %v693
    %v698 = vsub.f32 0.0, %v694
    %v699 = vmul.f32 %v696, 1.442695
    %v700 = vpow.pop %v699
    %v701 = vmul.f32 %v697, 1.442695
    %v702 = vpow.pop %v701
    %v703 = vmul.f32 %v698, 1.442695
    %v704 = vpow.pop %v703
    %v705 = vadd.f32 %v700, 1.0
    %v706 = vadd.f32 %v702, 1.0
    %v707 = vadd.f32 %v704, 1.0
    %v708 = vrcp.pop %v705
    %v709 = vmul.f32 1.0, %v708
    %v710 = vrcp.pop %v706
    %v711 = vmul.f32 1.0, %v710
    %v712 = vrcp.pop %v707
    %v713 = vmul.f32 1.0, %v712
    %v714 = vtanh.pop %v695
    %v715 = vmul.f32 %v711, %v597
    %v716 = vmul.f32 %v709, %v714
    %v717 = vadd.f32 %v715, %v716
    %v718 = vtanh.pop %v717
    %v719 = vmul.f32 %v713, %v718
    %s720 = scalar_lea.vmem [#allocation9], 24
    %721 = vst [vmem:[%s720] sm:$0xff] %v719
    %s722 = scalar_lea.vmem [#allocation4], 64
    %v723 = vld [vmem:[%s722] sm:$0xff]
    %v724 = vld [vmem:[%s722 + $0x8] sm:$0xff]
    %v725 = vunpack.c.l.bf16 %v723
    %v726 = vunpack.c.h.bf16 %v723
    %v727 = vunpack.c.l.bf16 %v724
    %v728 = vunpack.c.h.bf16 %v724
    %v729 = vpack.c.bf16 %v719, %v719
    %730 = vmatprep.subr.bf16.mxu0 %v216
    %731 = vmatpush1.bf16.msra.mxu0 %v215
    %732 = vmatprep.subr.bf16.mxu0 %v212
    %733 = vmatpush1.bf16.msra.mxu0 %v211
    %734 = vmatprep.subr.bf16.mxu0 %v208
    %735 = vmatpush1.bf16.msra.mxu0 %v207
    %736 = vmatprep.subr.bf16.mxu0 %v204
    %737 = vmatpush1.bf16.msra.mxu0 %v203
    %738 = vmatprep.subr.bf16.mxu0 %v200
    %739 = vmatpush1.bf16.msra.mxu0 %v199
    %740 = vmatprep.subr.bf16.mxu0 %v196
    %741 = vmatpush1.bf16.msra.mxu0 %v195
    %742 = vmatprep.subr.bf16.mxu0 %v192
    %743 = vmatpush1.bf16.msra.mxu0 %v191
    %744 = vmatprep.subr.bf16.mxu0 %v188
    %745 = vmatpush1.bf16.msra.mxu0 %v187
    %746 = vmatprep.subr.bf16.mxu0 0
    %747 = vmatpush2.bf16.msra.mxu0 0
    %748 = vmatprep.subr.bf16.mxu0 0
    %749 = vmatpush2.bf16.msra.mxu0 0
    %750 = vmatprep.subr.bf16.mxu0 0
    %751 = vmatpush2.bf16.msra.mxu0 0
    %752 = vmatprep.subr.bf16.mxu0 0
    %753 = vmatpush2.bf16.msra.mxu0 0
    %754 = vmatprep.subr.bf16.mxu0 0
    %755 = vmatpush2.bf16.msra.mxu0 0
    %756 = vmatprep.subr.bf16.mxu0 0
    %757 = vmatpush2.bf16.msra.mxu0 0
    %758 = vmatprep.subr.bf16.mxu0 0
    %759 = vmatpush2.bf16.msra.mxu0 0
    %760 = vmatprep.subr.bf16.mxu0 0
    %761 = vmatpush2.bf16.msra.mxu0 0
    %762 = vmatprep.mubr.bf16.mxu0 0
    %763 = vmatmul.mubr.bf16.gmra.mxu0 %v729
    %v764 = vpop.f32.mrf.mxu0
    %v765 = vadd.f32 0.0, %v764
    %v766 = vpop.f32.mrf.mxu0
    %v767 = vadd.f32 0.0, %v766
    %v768 = vpop.f32.mrf.mxu0
    %v769 = vpop.f32.mrf.mxu0
    %770 = vdwg.mxu0
    %771 = vmatprep.subr.bf16.mxu0 %v218
    %772 = vmatpush1.bf16.msra.mxu0 %v217
    %773 = vmatprep.subr.bf16.mxu0 %v214
    %774 = vmatpush1.bf16.msra.mxu0 %v213
    %775 = vmatprep.subr.bf16.mxu0 %v210
    %776 = vmatpush1.bf16.msra.mxu0 %v209
    %777 = vmatprep.subr.bf16.mxu0 %v206
    %778 = vmatpush1.bf16.msra.mxu0 %v205
    %779 = vmatprep.subr.bf16.mxu0 %v202
    %780 = vmatpush1.bf16.msra.mxu0 %v201
    %781 = vmatprep.subr.bf16.mxu0 %v198
    %782 = vmatpush1.bf16.msra.mxu0 %v197
    %783 = vmatprep.subr.bf16.mxu0 %v194
    %784 = vmatpush1.bf16.msra.mxu0 %v193
    %785 = vmatprep.subr.bf16.mxu0 %v190
    %786 = vmatpush1.bf16.msra.mxu0 %v189
    %787 = vmatprep.subr.bf16.mxu0 0
    %788 = vmatpush2.bf16.msra.mxu0 0
    %789 = vmatprep.subr.bf16.mxu0 0
    %790 = vmatpush2.bf16.msra.mxu0 0
    %791 = vmatprep.subr.bf16.mxu0 0
    %792 = vmatpush2.bf16.msra.mxu0 0
    %793 = vmatprep.subr.bf16.mxu0 0
    %794 = vmatpush2.bf16.msra.mxu0 0
    %795 = vmatprep.subr.bf16.mxu0 0
    %796 = vmatpush2.bf16.msra.mxu0 0
    %797 = vmatprep.subr.bf16.mxu0 0
    %798 = vmatpush2.bf16.msra.mxu0 0
    %799 = vmatprep.subr.bf16.mxu0 0
    %800 = vmatpush2.bf16.msra.mxu0 0
    %801 = vmatprep.subr.bf16.mxu0 0
    %802 = vmatpush2.bf16.msra.mxu0 0
    %803 = vmatprep.mubr.bf16.mxu0 0
    %804 = vmatmul.mubr.bf16.gmra.mxu0 %v729
    %v805 = vpop.f32.mrf.mxu0
    %v806 = vadd.f32 0.0, %v805
    %v807 = vpop.f32.mrf.mxu0
    %v808 = vadd.f32 0.0, %v807
    %v809 = vpop.f32.mrf.mxu0
    %v810 = vpop.f32.mrf.mxu0
    %811 = vdwg.mxu0
    %v812 = vadd.f32 %v725, %v765
    %v813 = vadd.f32 %v726, %v767
    %v814 = vadd.f32 %v727, %v806
    %v815 = vadd.f32 %v728, %v808
    %v816 = vsub.f32 0.0, %v812
    %v817 = vsub.f32 0.0, %v813
    %v818 = vsub.f32 0.0, %v814
    %v819 = vmul.f32 %v816, 1.442695
    %v820 = vpow.pop %v819
    %v821 = vmul.f32 %v817, 1.442695
    %v822 = vpow.pop %v821
    %v823 = vmul.f32 %v818, 1.442695
    %v824 = vpow.pop %v823
    %v825 = vadd.f32 %v820, 1.0
    %v826 = vadd.f32 %v822, 1.0
    %v827 = vadd.f32 %v824, 1.0
    %v828 = vrcp.pop %v825
    %v829 = vmul.f32 1.0, %v828
    %v830 = vrcp.pop %v826
    %v831 = vmul.f32 1.0, %v830
    %v832 = vrcp.pop %v827
    %v833 = vmul.f32 1.0, %v832
    %v834 = vtanh.pop %v815
    %v835 = vmul.f32 %v831, %v717
    %v836 = vmul.f32 %v829, %v834
    %v837 = vadd.f32 %v835, %v836
    %v838 = vtanh.pop %v837
    %v839 = vmul.f32 %v833, %v838
    %s840 = scalar_lea.vmem [#allocation9], 32
    %841 = vst [vmem:[%s840] sm:$0xff] %v839
    %s842 = scalar_lea.vmem [#allocation4], 80
    %v843 = vld [vmem:[%s842] sm:$0xff]
    %v844 = vld [vmem:[%s842 + $0x8] sm:$0xff]
    %v845 = vunpack.c.l.bf16 %v843
    %v846 = vunpack.c.h.bf16 %v843
    %v847 = vunpack.c.l.bf16 %v844
    %v848 = vunpack.c.h.bf16 %v844
    %v849 = vpack.c.bf16 %v839, %v839
    %850 = vmatprep.subr.bf16.mxu0 %v216
    %851 = vmatpush1.bf16.msra.mxu0 %v215
    %852 = vmatprep.subr.bf16.mxu0 %v212
    %853 = vmatpush1.bf16.msra.mxu0 %v211
    %854 = vmatprep.subr.bf16.mxu0 %v208
    %855 = vmatpush1.bf16.msra.mxu0 %v207
    %856 = vmatprep.subr.bf16.mxu0 %v204
    %857 = vmatpush1.bf16.msra.mxu0 %v203
    %858 = vmatprep.subr.bf16.mxu0 %v200
    %859 = vmatpush1.bf16.msra.mxu0 %v199
    %860 = vmatprep.subr.bf16.mxu0 %v196
    %861 = vmatpush1.bf16.msra.mxu0 %v195
    %862 = vmatprep.subr.bf16.mxu0 %v192
    %863 = vmatpush1.bf16.msra.mxu0 %v191
    %864 = vmatprep.subr.bf16.mxu0 %v188
    %865 = vmatpush1.bf16.msra.mxu0 %v187
    %866 = vmatprep.subr.bf16.mxu0 0
    %867 = vmatpush2.bf16.msra.mxu0 0
    %868 = vmatprep.subr.bf16.mxu0 0
    %869 = vmatpush2.bf16.msra.mxu0 0
    %870 = vmatprep.subr.bf16.mxu0 0
    %871 = vmatpush2.bf16.msra.mxu0 0
    %872 = vmatprep.subr.bf16.mxu0 0
    %873 = vmatpush2.bf16.msra.mxu0 0
    %874 = vmatprep.subr.bf16.mxu0 0
    %875 = vmatpush2.bf16.msra.mxu0 0
    %876 = vmatprep.subr.bf16.mxu0 0
    %877 = vmatpush2.bf16.msra.mxu0 0
    %878 = vmatprep.subr.bf16.mxu0 0
    %879 = vmatpush2.bf16.msra.mxu0 0
    %880 = vmatprep.subr.bf16.mxu0 0
    %881 = vmatpush2.bf16.msra.mxu0 0
    %882 = vmatprep.mubr.bf16.mxu0 0
    %883 = vmatmul.mubr.bf16.gmra.mxu0 %v849
    %v884 = vpop.f32.mrf.mxu0
    %v885 = vadd.f32 0.0, %v884
    %v886 = vpop.f32.mrf.mxu0
    %v887 = vadd.f32 0.0, %v886
    %v888 = vpop.f32.mrf.mxu0
    %v889 = vpop.f32.mrf.mxu0
    %890 = vdwg.mxu0
    %891 = vmatprep.subr.bf16.mxu0 %v218
    %892 = vmatpush1.bf16.msra.mxu0 %v217
    %893 = vmatprep.subr.bf16.mxu0 %v214
    %894 = vmatpush1.bf16.msra.mxu0 %v213
    %895 = vmatprep.subr.bf16.mxu0 %v210
    %896 = vmatpush1.bf16.msra.mxu0 %v209
    %897 = vmatprep.subr.bf16.mxu0 %v206
    %898 = vmatpush1.bf16.msra.mxu0 %v205
    %899 = vmatprep.subr.bf16.mxu0 %v202
    %900 = vmatpush1.bf16.msra.mxu0 %v201
    %901 = vmatprep.subr.bf16.mxu0 %v198
    %902 = vmatpush1.bf16.msra.mxu0 %v197
    %903 = vmatprep.subr.bf16.mxu0 %v194
    %904 = vmatpush1.bf16.msra.mxu0 %v193
    %905 = vmatprep.subr.bf16.mxu0 %v190
    %906 = vmatpush1.bf16.msra.mxu0 %v189
    %907 = vmatprep.subr.bf16.mxu0 0
    %908 = vmatpush2.bf16.msra.mxu0 0
    %909 = vmatprep.subr.bf16.mxu0 0
    %910 = vmatpush2.bf16.msra.mxu0 0
    %911 = vmatprep.subr.bf16.mxu0 0
    %912 = vmatpush2.bf16.msra.mxu0 0
    %913 = vmatprep.subr.bf16.mxu0 0
    %914 = vmatpush2.bf16.msra.mxu0 0
    %915 = vmatprep.subr.bf16.mxu0 0
    %916 = vmatpush2.bf16.msra.mxu0 0
    %917 = vmatprep.subr.bf16.mxu0 0
    %918 = vmatpush2.bf16.msra.mxu0 0
    %919 = vmatprep.subr.bf16.mxu0 0
    %920 = vmatpush2.bf16.msra.mxu0 0
    %921 = vmatprep.subr.bf16.mxu0 0
    %922 = vmatpush2.bf16.msra.mxu0 0
    %923 = vmatprep.mubr.bf16.mxu0 0
    %924 = vmatmul.mubr.bf16.gmra.mxu0 %v849
    %v925 = vpop.f32.mrf.mxu0
    %v926 = vadd.f32 0.0, %v925
    %v927 = vpop.f32.mrf.mxu0
    %v928 = vadd.f32 0.0, %v927
    %v929 = vpop.f32.mrf.mxu0
    %v930 = vpop.f32.mrf.mxu0
    %931 = vdwg.mxu0
    %v932 = vadd.f32 %v845, %v885
    %v933 = vadd.f32 %v846, %v887
    %v934 = vadd.f32 %v847, %v926
    %v935 = vadd.f32 %v848, %v928
    %v936 = vsub.f32 0.0, %v932
    %v937 = vsub.f32 0.0, %v933
    %v938 = vsub.f32 0.0, %v934
    %v939 = vmul.f32 %v936, 1.442695
    %v940 = vpow.pop %v939
    %v941 = vmul.f32 %v937, 1.442695
    %v942 = vpow.pop %v941
    %v943 = vmul.f32 %v938, 1.442695
    %v944 = vpow.pop %v943
    %v945 = vadd.f32 %v940, 1.0
    %v946 = vadd.f32 %v942, 1.0
    %v947 = vadd.f32 %v944, 1.0
    %v948 = vrcp.pop %v945
    %v949 = vmul.f32 1.0, %v948
    %v950 = vrcp.pop %v946
    %v951 = vmul.f32 1.0, %v950
    %v952 = vrcp.pop %v947
    %v953 = vmul.f32 1.0, %v952
    %v954 = vtanh.pop %v935
    %v955 = vmul.f32 %v951, %v837
    %v956 = vmul.f32 %v949, %v954
    %v957 = vadd.f32 %v955, %v956
    %v958 = vtanh.pop %v957
    %v959 = vmul.f32 %v953, %v958
    %s960 = scalar_lea.vmem [#allocation9], 40
    %961 = vst [vmem:[%s960] sm:$0xff] %v959
    %s962 = scalar_lea.vmem [#allocation4], 96
    %v963 = vld [vmem:[%s962] sm:$0xff]
    %v964 = vld [vmem:[%s962 + $0x8] sm:$0xff]
    %v965 = vunpack.c.l.bf16 %v963
    %v966 = vunpack.c.h.bf16 %v963
    %v967 = vunpack.c.l.bf16 %v964
    %v968 = vunpack.c.h.bf16 %v964
    %v969 = vpack.c.bf16 %v959, %v959
    %970 = vmatprep.subr.bf16.mxu0 %v216
    %971 = vmatpush1.bf16.msra.mxu0 %v215
    %972 = vmatprep.subr.bf16.mxu0 %v212
    %973 = vmatpush1.bf16.msra.mxu0 %v211
    %974 = vmatprep.subr.bf16.mxu0 %v208
    %975 = vmatpush1.bf16.msra.mxu0 %v207
    %976 = vmatprep.subr.bf16.mxu0 %v204
    %977 = vmatpush1.bf16.msra.mxu0 %v203
    %978 = vmatprep.subr.bf16.mxu0 %v200
    %979 = vmatpush1.bf16.msra.mxu0 %v199
    %980 = vmatprep.subr.bf16.mxu0 %v196
    %981 = vmatpush1.bf16.msra.mxu0 %v195
    %982 = vmatprep.subr.bf16.mxu0 %v192
    %983 = vmatpush1.bf16.msra.mxu0 %v191
    %984 = vmatprep.subr.bf16.mxu0 %v188
    %985 = vmatpush1.bf16.msra.mxu0 %v187
    %986 = vmatprep.subr.bf16.mxu0 0
    %987 = vmatpush2.bf16.msra.mxu0 0
    %988 = vmatprep.subr.bf16.mxu0 0
    %989 = vmatpush2.bf16.msra.mxu0 0
    %990 = vmatprep.subr.bf16.mxu0 0
    %991 = vmatpush2.bf16.msra.mxu0 0
    %992 = vmatprep.subr.bf16.mxu0 0
    %993 = vmatpush2.bf16.msra.mxu0 0
    %994 = vmatprep.subr.bf16.mxu0 0
    %995 = vmatpush2.bf16.msra.mxu0 0
    %996 = vmatprep.subr.bf16.mxu0 0
    %997 = vmatpush2.bf16.msra.mxu0 0
    %998 = vmatprep.subr.bf16.mxu0 0
    %999 = vmatpush2.bf16.msra.mxu0 0
    %1000 = vmatprep.subr.bf16.mxu0 0
    %1001 = vmatpush2.bf16.msra.mxu0 0
    %1002 = vmatprep.mubr.bf16.mxu0 0
    %1003 = vmatmul.mubr.bf16.gmra.mxu0 %v969
    %v1004 = vpop.f32.mrf.mxu0
    %v1005 = vadd.f32 0.0, %v1004
    %v1006 = vpop.f32.mrf.mxu0
    %v1007 = vadd.f32 0.0, %v1006
    %v1008 = vpop.f32.mrf.mxu0
    %v1009 = vpop.f32.mrf.mxu0
    %1010 = vdwg.mxu0
    %1011 = vmatprep.subr.bf16.mxu0 %v218
    %1012 = vmatpush1.bf16.msra.mxu0 %v217
    %1013 = vmatprep.subr.bf16.mxu0 %v214
    %1014 = vmatpush1.bf16.msra.mxu0 %v213
    %1015 = vmatprep.subr.bf16.mxu0 %v210
    %1016 = vmatpush1.bf16.msra.mxu0 %v209
    %1017 = vmatprep.subr.bf16.mxu0 %v206
    %1018 = vmatpush1.bf16.msra.mxu0 %v205
    %1019 = vmatprep.subr.bf16.mxu0 %v202
    %1020 = vmatpush1.bf16.msra.mxu0 %v201
    %1021 = vmatprep.subr.bf16.mxu0 %v198
    %1022 = vmatpush1.bf16.msra.mxu0 %v197
    %1023 = vmatprep.subr.bf16.mxu0 %v194
    %1024 = vmatpush1.bf16.msra.mxu0 %v193
    %1025 = vmatprep.subr.bf16.mxu0 %v190
    %1026 = vmatpush1.bf16.msra.mxu0 %v189
    %1027 = vmatprep.subr.bf16.mxu0 0
    %1028 = vmatpush2.bf16.msra.mxu0 0
    %1029 = vmatprep.subr.bf16.mxu0 0
    %1030 = vmatpush2.bf16.msra.mxu0 0
    %1031 = vmatprep.subr.bf16.mxu0 0
    %1032 = vmatpush2.bf16.msra.mxu0 0
    %1033 = vmatprep.subr.bf16.mxu0 0
    %1034 = vmatpush2.bf16.msra.mxu0 0
    %1035 = vmatprep.subr.bf16.mxu0 0
    %1036 = vmatpush2.bf16.msra.mxu0 0
    %1037 = vmatprep.subr.bf16.mxu0 0
    %1038 = vmatpush2.bf16.msra.mxu0 0
    %1039 = vmatprep.subr.bf16.mxu0 0
    %1040 = vmatpush2.bf16.msra.mxu0 0
    %1041 = vmatprep.subr.bf16.mxu0 0
    %1042 = vmatpush2.bf16.msra.mxu0 0
    %1043 = vmatprep.mubr.bf16.mxu0 0
    %1044 = vmatmul.mubr.bf16.gmra.mxu0 %v969
    %v1045 = vpop.f32.mrf.mxu0
    %v1046 = vadd.f32 0.0, %v1045
    %v1047 = vpop.f32.mrf.mxu0
    %v1048 = vadd.f32 0.0, %v1047
    %v1049 = vpop.f32.mrf.mxu0
    %v1050 = vpop.f32.mrf.mxu0
    %1051 = vdwg.mxu0
    %v1052 = vadd.f32 %v965, %v1005
    %v1053 = vadd.f32 %v966, %v1007
    %v1054 = vadd.f32 %v967, %v1046
    %v1055 = vadd.f32 %v968, %v1048
    %v1056 = vsub.f32 0.0, %v1052
    %v1057 = vsub.f32 0.0, %v1053
    %v1058 = vsub.f32 0.0, %v1054
    %v1059 = vmul.f32 %v1056, 1.442695
    %v1060 = vpow.pop %v1059
    %v1061 = vmul.f32 %v1057, 1.442695
    %v1062 = vpow.pop %v1061
    %v1063 = vmul.f32 %v1058, 1.442695
    %v1064 = vpow.pop %v1063
    %v1065 = vadd.f32 %v1060, 1.0
    %v1066 = vadd.f32 %v1062, 1.0
    %v1067 = vadd.f32 %v1064, 1.0
    %v1068 = vrcp.pop %v1065
    %v1069 = vmul.f32 1.0, %v1068
    %v1070 = vrcp.pop %v1066
    %v1071 = vmul.f32 1.0, %v1070
    %v1072 = vrcp.pop %v1067
    %v1073 = vmul.f32 1.0, %v1072
    %v1074 = vtanh.pop %v1055
    %v1075 = vmul.f32 %v1071, %v957
    %v1076 = vmul.f32 %v1069, %v1074
    %v1077 = vadd.f32 %v1075, %v1076
    %v1078 = vtanh.pop %v1077
    %v1079 = vmul.f32 %v1073, %v1078
    %s1080 = scalar_lea.vmem [#allocation9], 48
    %1081 = vst [vmem:[%s1080] sm:$0xff] %v1079
    %s1082 = scalar_lea.vmem [#allocation4], 112
    %v1083 = vld [vmem:[%s1082] sm:$0xff]
    %v1084 = vld [vmem:[%s1082 + $0x8] sm:$0xff]
    %v1085 = vunpack.c.l.bf16 %v1083
    %v1086 = vunpack.c.h.bf16 %v1083
    %v1087 = vunpack.c.l.bf16 %v1084
    %v1088 = vunpack.c.h.bf16 %v1084
    %v1089 = vpack.c.bf16 %v1079, %v1079
    %1090 = vmatprep.subr.bf16.mxu0 %v216
    %1091 = vmatpush1.bf16.msra.mxu0 %v215
    %1092 = vmatprep.subr.bf16.mxu0 %v212
    %1093 = vmatpush1.bf16.msra.mxu0 %v211
    %1094 = vmatprep.subr.bf16.mxu0 %v208
    %1095 = vmatpush1.bf16.msra.mxu0 %v207
    %1096 = vmatprep.subr.bf16.mxu0 %v204
    %1097 = vmatpush1.bf16.msra.mxu0 %v203
    %1098 = vmatprep.subr.bf16.mxu0 %v200
    %1099 = vmatpush1.bf16.msra.mxu0 %v199
    %1100 = vmatprep.subr.bf16.mxu0 %v196
    %1101 = vmatpush1.bf16.msra.mxu0 %v195
    %1102 = vmatprep.subr.bf16.mxu0 %v192
    %1103 = vmatpush1.bf16.msra.mxu0 %v191
    %1104 = vmatprep.subr.bf16.mxu0 %v188
    %1105 = vmatpush1.bf16.msra.mxu0 %v187
    %1106 = vmatprep.subr.bf16.mxu0 0
    %1107 = vmatpush2.bf16.msra.mxu0 0
    %1108 = vmatprep.subr.bf16.mxu0 0
    %1109 = vmatpush2.bf16.msra.mxu0 0
    %1110 = vmatprep.subr.bf16.mxu0 0
    %1111 = vmatpush2.bf16.msra.mxu0 0
    %1112 = vmatprep.subr.bf16.mxu0 0
    %1113 = vmatpush2.bf16.msra.mxu0 0
    %1114 = vmatprep.subr.bf16.mxu0 0
    %1115 = vmatpush2.bf16.msra.mxu0 0
    %1116 = vmatprep.subr.bf16.mxu0 0
    %1117 = vmatpush2.bf16.msra.mxu0 0
    %1118 = vmatprep.subr.bf16.mxu0 0
    %1119 = vmatpush2.bf16.msra.mxu0 0
    %1120 = vmatprep.subr.bf16.mxu0 0
    %1121 = vmatpush2.bf16.msra.mxu0 0
    %1122 = vmatprep.mubr.bf16.mxu0 0
    %1123 = vmatmul.mubr.bf16.gmra.mxu0 %v1089
    %v1124 = vpop.f32.mrf.mxu0
    %v1125 = vadd.f32 0.0, %v1124
    %v1126 = vpop.f32.mrf.mxu0
    %v1127 = vadd.f32 0.0, %v1126
    %v1128 = vpop.f32.mrf.mxu0
    %v1129 = vpop.f32.mrf.mxu0
    %1130 = vdwg.mxu0
    %1131 = vmatprep.subr.bf16.mxu0 %v218
    %1132 = vmatpush1.bf16.msra.mxu0 %v217
    %1133 = vmatprep.subr.bf16.mxu0 %v214
    %1134 = vmatpush1.bf16.msra.mxu0 %v213
    %1135 = vmatprep.subr.bf16.mxu0 %v210
    %1136 = vmatpush1.bf16.msra.mxu0 %v209
    %1137 = vmatprep.subr.bf16.mxu0 %v206
    %1138 = vmatpush1.bf16.msra.mxu0 %v205
    %1139 = vmatprep.subr.bf16.mxu0 %v202
    %1140 = vmatpush1.bf16.msra.mxu0 %v201
    %1141 = vmatprep.subr.bf16.mxu0 %v198
    %1142 = vmatpush1.bf16.msra.mxu0 %v197
    %1143 = vmatprep.subr.bf16.mxu0 %v194
    %1144 = vmatpush1.bf16.msra.mxu0 %v193
    %1145 = vmatprep.subr.bf16.mxu0 %v190
    %1146 = vmatpush1.bf16.msra.mxu0 %v189
    %1147 = vmatprep.subr.bf16.mxu0 0
    %1148 = vmatpush2.bf16.msra.mxu0 0
    %1149 = vmatprep.subr.bf16.mxu0 0
    %1150 = vmatpush2.bf16.msra.mxu0 0
    %1151 = vmatprep.subr.bf16.mxu0 0
    %1152 = vmatpush2.bf16.msra.mxu0 0
    %1153 = vmatprep.subr.bf16.mxu0 0
    %1154 = vmatpush2.bf16.msra.mxu0 0
    %1155 = vmatprep.subr.bf16.mxu0 0
    %1156 = vmatpush2.bf16.msra.mxu0 0
    %1157 = vmatprep.subr.bf16.mxu0 0
    %1158 = vmatpush2.bf16.msra.mxu0 0
    %1159 = vmatprep.subr.bf16.mxu0 0
    %1160 = vmatpush2.bf16.msra.mxu0 0
    %1161 = vmatprep.subr.bf16.mxu0 0
    %1162 = vmatpush2.bf16.msra.mxu0 0
    %1163 = vmatprep.mubr.bf16.mxu0 0
    %1164 = vmatmul.mubr.bf16.gmra.mxu0 %v1089
    %v1165 = vpop.f32.mrf.mxu0
    %v1166 = vadd.f32 0.0, %v1165
    %v1167 = vpop.f32.mrf.mxu0
    %v1168 = vadd.f32 0.0, %v1167
    %v1169 = vpop.f32.mrf.mxu0
    %v1170 = vpop.f32.mrf.mxu0
    %1171 = vdwg.mxu0
    %v1172 = vadd.f32 %v1085, %v1125
    %v1173 = vadd.f32 %v1086, %v1127
    %v1174 = vadd.f32 %v1087, %v1166
    %v1175 = vadd.f32 %v1088, %v1168
    %v1176 = vsub.f32 0.0, %v1172
    %v1177 = vsub.f32 0.0, %v1173
    %v1178 = vsub.f32 0.0, %v1174
    %v1179 = vmul.f32 %v1176, 1.442695
    %v1180 = vpow.pop %v1179
    %v1181 = vmul.f32 %v1177, 1.442695
    %v1182 = vpow.pop %v1181
    %v1183 = vmul.f32 %v1178, 1.442695
    %v1184 = vpow.pop %v1183
    %v1185 = vadd.f32 %v1180, 1.0
    %v1186 = vadd.f32 %v1182, 1.0
    %v1187 = vadd.f32 %v1184, 1.0
    %v1188 = vrcp.pop %v1185
    %v1189 = vmul.f32 1.0, %v1188
    %v1190 = vrcp.pop %v1186
    %v1191 = vmul.f32 1.0, %v1190
    %v1192 = vrcp.pop %v1187
    %v1193 = vmul.f32 1.0, %v1192
    %v1194 = vtanh.pop %v1175
    %v1195 = vmul.f32 %v1191, %v1077
    %v1196 = vmul.f32 %v1189, %v1194
    %v1197 = vadd.f32 %v1195, %v1196
    %v1198 = vtanh.pop %v1197
    %v1199 = vmul.f32 %v1193, %v1198
    %s1200 = scalar_lea.vmem [#allocation9], 56
    %1201 = vst [vmem:[%s1200] sm:$0xff] %v1199
    %1202 = vst [vmem:[#allocation2] sm:$0xff] %v1199
    %1203 = vst [vmem:[#allocation3] sm:$0xff] %v1197
    %1204 = vst [vmem:[#allocation10] sm:$0xff] %v1197
    // Predicated region
    $region22: #{tpu_custom_call.1} parent=1 // pred_check
      _
    $region23: #{tpu_custom_call.1} parent=1 // pred_check_branch
      %1206 = sbr.rel (0) target = $region25
    $region24: #{tpu_custom_call.1} parent=1 // pred_region
      %s1208 = ssub.s32 1024, 1024
      %1209 = vsyncadd [#allocation6], %s1208
      %s1210 = sshll.u32 [#allocation9], 4
      %s1211 = int_to_ptr.vmem [resolvable:$true] %s1210
      %1216 = dma.vmem_to_hbm [thread:$0]  %s1211, 1024, %s2, [#allocation6], 128, 128, 8
    $region25: #{tpu_custom_call.1} parent=1 // pred_fallthru
      _
    // Predicated region
    $region26: #{tpu_custom_call.1} parent=1 // pred_check
      _
    $region27: #{tpu_custom_call.1} parent=1 // pred_check_branch
      %1218 = sbr.rel (0) target = $region29
    $region28: #{tpu_custom_call.1} parent=1 // pred_region
      %s1220 = ssub.s32 128, 128
      %1221 = vsyncadd [#allocation11], %s1220
      %s1223 = sshll.u32 [#allocation10], 4
      %s1224 = int_to_ptr.vmem [resolvable:$true] %s1223
      %1226 = dma.vmem_to_hbm [thread:$0]  %s1224, 128, %s3, [#allocation11]
    $region29: #{tpu_custom_call.1} parent=1 // pred_fallthru
      _
    // Predicated region
    $region30: #{tpu_custom_call.1} parent=1 // pred_check
      _
    $region31: #{tpu_custom_call.1} parent=1 // pred_check_branch
      %1228 = sbr.rel (0) target = $region33
    $region32: #{tpu_custom_call.1} parent=1 // pred_region
      %1229 = dma.done [#allocation6], 1024
    $region33: #{tpu_custom_call.1} parent=1 // pred_fallthru
      _
    // Predicated region
    $region34: #{tpu_custom_call.1} parent=1 // pred_check
      _
    $region35: #{tpu_custom_call.1} parent=1 // pred_check_branch
      %1231 = sbr.rel (0) target = $region37
    $region36: #{tpu_custom_call.1} parent=1 // pred_region
      %1232 = dma.done [#allocation11], 128
    $region37: #{tpu_custom_call.1} parent=1 // pred_fallthru
      _
    %1233 = vsyncpa [#allocation5], 1
    %1234 = vsyncpa [#allocation8], 1
    %1235 = vsyncpa [#allocation6], 1
    %1236 = vsyncpa [#allocation11], 1

// kernel: tpu_custom_call.1
$region0: #{tpu_custom_call.1}
  #allocation0 [shape = 'u32[]', space=smem, size = 0x4, offset = 0x4, fixed_abs, tag = 'smem constant byte address 0x4 - core index']
  #allocation1 [shape = 'u32[144,128]{1,0:T(1,128)}', space=vmem, size = 0x12000, scoped, tag = 'internal scratch']
  #allocation2 [shape = 'f32[8,128]{1,0:T(8,128)}', space=vmem, size = 0x1000, scoped, tag = 'scratch operand']
  #allocation3 [shape = 'f32[8,128]{1,0:T(8,128)}', space=vmem, size = 0x1000, scoped, tag = 'scratch operand']
  %s0 = inlined_call_operand.hbm [shape: bf16[8,8,512], index: 0, kind: input, shape index: {}]
  %s1 = inlined_call_operand.hbm [shape: bf16[128,512], index: 1, kind: input, shape index: {}]
  %s2 = inlined_call_operand.hbm [shape: f32[8,8,128], index: 2, kind: output, shape index: {0}]
  %s3 = inlined_call_operand.hbm [shape: f32[8,128], index: 3, kind: output, shape index: {1}]
  %4 = xla_tuple %s2, %s3
  %s5 = sld [smem:[#allocation0]]
  $region38: #{tpu_custom_call.1} parent=0
    _
  %s7 = ssub.s32 1, %s5
  %s8 = scalar_select 0, %s7, %s5
  $region1: #{tpu_custom_call.1} parent=0
    #allocation4 [shape = 'u8[65536]{0}', space=vmem, size = 0x10000, scoped, tag = 'input window, operand 0, single buffered']
    #allocation5 [shape = 's32[1]{0}', space=sflag, size = 0x4, scoped, tag = 'scoped memory for tpu_custom_call.1']
    #allocation6 [shape = 's32[1]{0}', space=sflag, size = 0x4, scoped, tag = 'scoped memory for tpu_custom_call.1']
    #allocation7 [shape = 'u8[131072]{0}', space=vmem, size = 0x20000, scoped, tag = 'input window, operand 1, single buffered']
    #allocation8 [shape = 's32[1]{0}', space=sflag, size = 0x4, scoped, tag = 'scoped memory for tpu_custom_call.1']
    #allocation9 [shape = 'u8[32768]{0}', space=vmem, size = 0x8000, scoped, tag = 'output window, operand 0, single buffered']
    #allocation10 [shape = 'u8[4096]{0}', space=vmem, size = 0x1000, scoped, tag = 'output window, operand 1, single buffered']
    #allocation11 [shape = 's32[1]{0}', space=sflag, size = 0x4, scoped, tag = 'scoped memory for tpu_custom_call.1']
    %9 = vsyncpa [#allocation5], 0
    %10 = vsyncpa [#allocation8], 0
    %11 = vsyncpa [#allocation6], 0
    %12 = vsyncpa [#allocation11], 0
    // Predicated region
    $region2: #{tpu_custom_call.1} parent=1 // pred_check
      _
    $region3: #{tpu_custom_call.1} parent=1 // pred_check_branch
      %14 = sbr.rel (0) target = $region5
    $region4: #{tpu_custom_call.1} parent=1 // pred_region
      %s16 = ssub.s32 2048, 2048
      %17 = vsyncadd [#allocation5], %s16
      %s18 = sshll.u32 [#allocation4], 4
      %s19 = int_to_ptr.vmem [resolvable:$true] %s18
      %24 = dma.hbm_to_vmem [thread:$0]  %s0, 2048, %s19, [#allocation5], 256, 256, 16
    $region5: #{tpu_custom_call.1} parent=1 // pred_fallthru
      _
    // Predicated region
    $region6: #{tpu_custom_call.1} parent=1 // pred_check
      _
    $region7: #{tpu_custom_call.1} parent=1 // pred_check_branch
      %26 = sbr.rel (0) target = $region9
    $region8: #{tpu_custom_call.1} parent=1 // pred_region
      %s28 = ssub.s32 4096, 4096
      %29 = vsyncadd [#allocation8], %s28
      %s30 = sshll.u32 [#allocation7], 4
      %s31 = int_to_ptr.vmem [resolvable:$true] %s30
      %36 = dma.hbm_to_vmem [thread:$0]  %s1, 4096, %s31, [#allocation8], 256, 256, 16
    $region9: #{tpu_custom_call.1} parent=1 // pred_fallthru
      _
    // Predicated region
    $region10: #{tpu_custom_call.1} parent=1 // pred_check
      _
    $region11: #{tpu_custom_call.1} parent=1 // pred_check_branch
      %38 = sbr.rel (0) target = $region13
    $region12: #{tpu_custom_call.1} parent=1 // pred_region
      %39 = dma.done [#allocation5], 2048
    $region13: #{tpu_custom_call.1} parent=1 // pred_fallthru
      _
    // Predicated region
    $region14: #{tpu_custom_call.1} parent=1 // pred_check
      _
    $region15: #{tpu_custom_call.1} parent=1 // pred_check_branch
      %41 = sbr.rel (0) target = $region17
    $region16: #{tpu_custom_call.1} parent=1 // pred_region
      %42 = dma.done [#allocation8], 4096
    $region17: #{tpu_custom_call.1} parent=1 // pred_fallthru
      _
    %p44 = scmp.eq.s32.totalorder 0, 0
    // Predicated region
    $region18: #{tpu_custom_call.1} parent=1 // pred_check
      %p45 = pneg %p44
    $region19: #{tpu_custom_call.1} parent=1 // pred_check_branch
      %47 = sbr.rel (%p45) target = $region21
    $region20: #{tpu_custom_call.1} parent=1 // pred_region
      %48 = vst [vmem:[#allocation2] sm:$0xff] 0.0
      %49 = vst [vmem:[#allocation3] sm:$0xff] 0.0
    $region21: #{tpu_custom_call.1} parent=1 // pred_fallthru
      _
    %v50 = vld [vmem:[#allocation7] sm:$0xff]
    %v51 = vld [vmem:[#allocation7 + $0x8] sm:$0xff]
    %v52 = vld [vmem:[#allocation7 + $0x10] sm:$0xff]
    %v53 = vld [vmem:[#allocation7 + $0x18] sm:$0xff]
    %v54 = vld [vmem:[#allocation7 + $0x20] sm:$0xff]
    %v55 = vld [vmem:[#allocation7 + $0x28] sm:$0xff]
    %v56 = vld [vmem:[#allocation7 + $0x30] sm:$0xff]
    %v57 = vld [vmem:[#allocation7 + $0x38] sm:$0xff]
    %v58 = vld [vmem:[#allocation7 + $0x40] sm:$0xff]
    %v59 = vld [vmem:[#allocation7 + $0x48] sm:$0xff]
    %v60 = vld [vmem:[#allocation7 + $0x50] sm:$0xff]
    %v61 = vld [vmem:[#allocation7 + $0x58] sm:$0xff]
    %v62 = vld [vmem:[#allocation7 + $0x60] sm:$0xff]
    %v63 = vld [vmem:[#allocation7 + $0x68] sm:$0xff]
    %v64 = vld [vmem:[#allocation7 + $0x70] sm:$0xff]
    %v65 = vld [vmem:[#allocation7 + $0x78] sm:$0xff]
    %v66 = vld [vmem:[#allocation7 + $0x80] sm:$0xff]
    %v67 = vld [vmem:[#allocation7 + $0x88] sm:$0xff]
    %v68 = vld [vmem:[#allocation7 + $0x90] sm:$0xff]
    %v69 = vld [vmem:[#allocation7 + $0x98] sm:$0xff]
    %v70 = vld [vmem:[#allocation7 + $0xa0] sm:$0xff]
    %v71 = vld [vmem:[#allocation7 + $0xa8] sm:$0xff]
    %v72 = vld [vmem:[#allocation7 + $0xb0] sm:$0xff]
    %v73 = vld [vmem:[#allocation7 + $0xb8] sm:$0xff]
    %v74 = vld [vmem:[#allocation7 + $0xc0] sm:$0xff]
    %v75 = vld [vmem:[#allocation7 + $0xc8] sm:$0xff]
    %v76 = vld [vmem:[#allocation7 + $0xd0] sm:$0xff]
    %v77 = vld [vmem:[#allocation7 + $0xd8] sm:$0xff]
    %v78 = vld [vmem:[#allocation7 + $0xe0] sm:$0xff]
    %v79 = vld [vmem:[#allocation7 + $0xe8] sm:$0xff]
    %v80 = vld [vmem:[#allocation7 + $0xf0] sm:$0xff]
    %v81 = vld [vmem:[#allocation7 + $0xf8] sm:$0xff]
    %v82 = vld [vmem:[#allocation2] sm:$0xff]
    %v83 = vld [vmem:[#allocation3] sm:$0xff]
    %v84 = vld [vmem:[#allocation4] sm:$0xff]
    %v85 = vld [vmem:[#allocation4 + $0x8] sm:$0xff]
    %v86 = vunpack.c.l.bf16 %v84
    %v87 = vunpack.c.h.bf16 %v84
    %v88 = vunpack.c.l.bf16 %v85
    %v89 = vunpack.c.h.bf16 %v85
    %v90 = vpack.c.bf16 %v82, %v82
    %v123 = vunpack.c.l.b16 %v50
    %v124 = vunpack.c.h.b16 %v50
    %v125 = vunpack.c.l.b16 %v51
    %v126 = vunpack.c.h.b16 %v51
    %v127 = vunpack.c.l.b16 %v52
    %v128 = vunpack.c.h.b16 %v52
    %v129 = vunpack.c.l.b16 %v53
    %v130 = vunpack.c.h.b16 %v53
    %v131 = vunpack.c.l.b16 %v54
    %v132 = vunpack.c.h.b16 %v54
    %v133 = vunpack.c.l.b16 %v55
    %v134 = vunpack.c.h.b16 %v55
    %v135 = vunpack.c.l.b16 %v56
    %v136 = vunpack.c.h.b16 %v56
    %v137 = vunpack.c.l.b16 %v57
    %v138 = vunpack.c.h.b16 %v57
    %v139 = vunpack.c.l.b16 %v58
    %v140 = vunpack.c.h.b16 %v58
    %v141 = vunpack.c.l.b16 %v59
    %v142 = vunpack.c.h.b16 %v59
    %v143 = vunpack.c.l.b16 %v60
    %v144 = vunpack.c.h.b16 %v60
    %v145 = vunpack.c.l.b16 %v61
    %v146 = vunpack.c.h.b16 %v61
    %v147 = vunpack.c.l.b16 %v62
    %v148 = vunpack.c.h.b16 %v62
    %v149 = vunpack.c.l.b16 %v63
    %v150 = vunpack.c.h.b16 %v63
    %v151 = vunpack.c.l.b16 %v64
    %v152 = vunpack.c.h.b16 %v64
    %v153 = vunpack.c.l.b16 %v65
    %v154 = vunpack.c.h.b16 %v65
    %v155 = vunpack.c.l.b16 %v66
    %v156 = vunpack.c.h.b16 %v66
    %v157 = vunpack.c.l.b16 %v67
    %v158 = vunpack.c.h.b16 %v67
    %v159 = vunpack.c.l.b16 %v68
    %v160 = vunpack.c.h.b16 %v68
    %v161 = vunpack.c.l.b16 %v69
    %v162 = vunpack.c.h.b16 %v69
    %v163 = vunpack.c.l.b16 %v70
    %v164 = vunpack.c.h.b16 %v70
    %v165 = vunpack.c.l.b16 %v71
    %v166 = vunpack.c.h.b16 %v71
    %v167 = vunpack.c.l.b16 %v72
    %v168 = vunpack.c.h.b16 %v72
    %v169 = vunpack.c.l.b16 %v73
    %v170 = vunpack.c.h.b16 %v73
    %v171 = vunpack.c.l.b16 %v74
    %v172 = vunpack.c.h.b16 %v74
    %v173 = vunpack.c.l.b16 %v75
    %v174 = vunpack.c.h.b16 %v75
    %v175 = vunpack.c.l.b16 %v76
    %v176 = vunpack.c.h.b16 %v76
    %v177 = vunpack.c.l.b16 %v77
    %v178 = vunpack.c.h.b16 %v77
    %v179 = vunpack.c.l.b16 %v78
    %v180 = vunpack.c.h.b16 %v78
    %v181 = vunpack.c.l.b16 %v79
    %v182 = vunpack.c.h.b16 %v79
    %v183 = vunpack.c.l.b16 %v80
    %v184 = vunpack.c.h.b16 %v80
    %v185 = vunpack.c.l.b16 %v81
    %v186 = vunpack.c.h.b16 %v81
    %v187 = vpack.c.b16 %v127, %v123
    %v188 = vpack.c.b16 %v128, %v124
    %v189 = vpack.c.b16 %v129, %v125
    %v190 = vpack.c.b16 %v130, %v126
    %v191 = vpack.c.b16 %v135, %v131
    %v192 = vpack.c.b16 %v136, %v132
    %v193 = vpack.c.b16 %v137, %v133
    %v194 = vpack.c.b16 %v138, %v134
    %v195 = vpack.c.b16 %v143, %v139
    %v196 = vpack.c.b16 %v144, %v140
    %v197 = vpack.c.b16 %v145, %v141
    %v198 = vpack.c.b16 %v146, %v142
    %v199 = vpack.c.b16 %v151, %v147
    %v200 = vpack.c.b16 %v152, %v148
    %v201 = vpack.c.b16 %v153, %v149
    %v202 = vpack.c.b16 %v154, %v150
    %v203 = vpack.c.b16 %v159, %v155
    %v204 = vpack.c.b16 %v160, %v156
    %v205 = vpack.c.b16 %v161, %v157
    %v206 = vpack.c.b16 %v162, %v158
    %v207 = vpack.c.b16 %v167, %v163
    %v208 = vpack.c.b16 %v168, %v164
    %v209 = vpack.c.b16 %v169, %v165
    %v210 = vpack.c.b16 %v170, %v166
    %v211 = vpack.c.b16 %v175, %v171
    %v212 = vpack.c.b16 %v176, %v172
    %v213 = vpack.c.b16 %v177, %v173
    %v214 = vpack.c.b16 %v178, %v174
    %v215 = vpack.c.b16 %v183, %v179
    %v216 = vpack.c.b16 %v184, %v180
    %v217 = vpack.c.b16 %v185, %v181
    %v218 = vpack.c.b16 %v186, %v182
    %251 = vmatprep.subr.bf16.mxu0 %v216
    %252 = vmatpush1.bf16.msra.mxu0 %v215
    %253 = vmatprep.subr.bf16.mxu0 %v212
    %254 = vmatpush1.bf16.msra.mxu0 %v211
    %255 = vmatprep.subr.bf16.mxu0 %v208
    %256 = vmatpush1.bf16.msra.mxu0 %v207
    %257 = vmatprep.subr.bf16.mxu0 %v204
    %258 = vmatpush1.bf16.msra.mxu0 %v203
    %259 = vmatprep.subr.bf16.mxu0 %v200
    %260 = vmatpush1.bf16.msra.mxu0 %v199
    %261 = vmatprep.subr.bf16.mxu0 %v196
    %262 = vmatpush1.bf16.msra.mxu0 %v195
    %263 = vmatprep.subr.bf16.mxu0 %v192
    %264 = vmatpush1.bf16.msra.mxu0 %v191
    %265 = vmatprep.subr.bf16.mxu0 %v188
    %266 = vmatpush1.bf16.msra.mxu0 %v187
    %267 = vmatprep.subr.bf16.mxu0 0
    %268 = vmatpush2.bf16.msra.mxu0 0
    %269 = vmatprep.subr.bf16.mxu0 0
    %270 = vmatpush2.bf16.msra.mxu0 0
    %271 = vmatprep.subr.bf16.mxu0 0
    %272 = vmatpush2.bf16.msra.mxu0 0
    %273 = vmatprep.subr.bf16.mxu0 0
    %274 = vmatpush2.bf16.msra.mxu0 0
    %275 = vmatprep.subr.bf16.mxu0 0
    %276 = vmatpush2.bf16.msra.mxu0 0
    %277 = vmatprep.subr.bf16.mxu0 0
    %278 = vmatpush2.bf16.msra.mxu0 0
    %279 = vmatprep.subr.bf16.mxu0 0
    %280 = vmatpush2.bf16.msra.mxu0 0
    %281 = vmatprep.subr.bf16.mxu0 0
    %282 = vmatpush2.bf16.msra.mxu0 0
    %283 = vmatprep.mubr.bf16.mxu0 0
    %284 = vmatmul.mubr.bf16.gmra.mxu0 %v90
    %v285 = vpop.f32.mrf.mxu0
    %v286 = vadd.f32 0.0, %v285
    %v287 = vpop.f32.mrf.mxu0
    %v288 = vadd.f32 0.0, %v287
    %v289 = vpop.f32.mrf.mxu0
    %v290 = vpop.f32.mrf.mxu0
    %291 = vdwg.mxu0
    %292 = vmatprep.subr.bf16.mxu0 %v218
    %293 = vmatpush1.bf16.msra.mxu0 %v217
    %294 = vmatprep.subr.bf16.mxu0 %v214
    %295 = vmatpush1.bf16.msra.mxu0 %v213
    %296 = vmatprep.subr.bf16.mxu0 %v210
    %297 = vmatpush1.bf16.msra.mxu0 %v209
    %298 = vmatprep.subr.bf16.mxu0 %v206
    %299 = vmatpush1.bf16.msra.mxu0 %v205
    %300 = vmatprep.subr.bf16.mxu0 %v202
    %301 = vmatpush1.bf16.msra.mxu0 %v201
    %302 = vmatprep.subr.bf16.mxu0 %v198
    %303 = vmatpush1.bf16.msra.mxu0 %v197
    %304 = vmatprep.subr.bf16.mxu0 %v194
    %305 = vmatpush1.bf16.msra.mxu0 %v193
    %306 = vmatprep.subr.bf16.mxu0 %v190
    %307 = vmatpush1.bf16.msra.mxu0 %v189
    %308 = vmatprep.subr.bf16.mxu0 0
    %309 = vmatpush2.bf16.msra.mxu0 0
    %310 = vmatprep.subr.bf16.mxu0 0
    %311 = vmatpush2.bf16.msra.mxu0 0
    %312 = vmatprep.subr.bf16.mxu0 0
    %313 = vmatpush2.bf16.msra.mxu0 0
    %314 = vmatprep.subr.bf16.mxu0 0
    %315 = vmatpush2.bf16.msra.mxu0 0
    %316 = vmatprep.subr.bf16.mxu0 0
    %317 = vmatpush2.bf16.msra.mxu0 0
    %318 = vmatprep.subr.bf16.mxu0 0
    %319 = vmatpush2.bf16.msra.mxu0 0
    %320 = vmatprep.subr.bf16.mxu0 0
    %321 = vmatpush2.bf16.msra.mxu0 0
    %322 = vmatprep.subr.bf16.mxu0 0
    %323 = vmatpush2.bf16.msra.mxu0 0
    %324 = vmatprep.mubr.bf16.mxu0 0
    %325 = vmatmul.mubr.bf16.gmra.mxu0 %v90
    %v326 = vpop.f32.mrf.mxu0
    %v327 = vadd.f32 0.0, %v326
    %v328 = vpop.f32.mrf.mxu0
    %v329 = vadd.f32 0.0, %v328
    %v330 = vpop.f32.mrf.mxu0
    %v331 = vpop.f32.mrf.mxu0
    %332 = vdwg.mxu0
    %v333 = vadd.f32 %v86, %v286
    %v334 = vadd.f32 %v87, %v288
    %v335 = vadd.f32 %v88, %v327
    %v336 = vadd.f32 %v89, %v329
    %v337 = vsub.f32 0.0, %v333
    %v338 = vsub.f32 0.0, %v334
    %v339 = vsub.f32 0.0, %v335
    %v340 = vmul.f32 %v337, 1.442695
    %v341 = vpow.pop %v340
    %v342 = vmul.f32 %v338, 1.442695
    %v343 = vpow.pop %v342
    %v344 = vmul.f32 %v339, 1.442695
    %v345 = vpow.pop %v344
    %v346 = vadd.f32 %v341, 1.0
    %v347 = vadd.f32 %v343, 1.0
    %v348 = vadd.f32 %v345, 1.0
    %v349 = vrcp.pop %v346
    %v350 = vmul.f32 1.0, %v349
    %v351 = vrcp.pop %v347
    %v352 = vmul.f32 1.0, %v351
    %v353 = vrcp.pop %v348
    %v354 = vmul.f32 1.0, %v353
    %v355 = vtanh.pop %v336
    %v356 = vmul.f32 %v352, %v83
    %v357 = vmul.f32 %v350, %v355
    %v358 = vadd.f32 %v356, %v357
    %v359 = vtanh.pop %v358
    %v360 = vmul.f32 %v354, %v359
    %361 = vst [vmem:[#allocation9] sm:$0xff] %v360
    %s362 = scalar_lea.vmem [#allocation4], 16
    %v363 = vld [vmem:[%s362] sm:$0xff]
    %v364 = vld [vmem:[%s362 + $0x8] sm:$0xff]
    %v365 = vunpack.c.l.bf16 %v363
    %v366 = vunpack.c.h.bf16 %v363
    %v367 = vunpack.c.l.bf16 %v364
    %v368 = vunpack.c.h.bf16 %v364
    %v369 = vpack.c.bf16 %v360, %v360
    %370 = vmatprep.subr.bf16.mxu0 %v216
    %371 = vmatpush1.bf16.msra.mxu0 %v215
    %372 = vmatprep.subr.bf16.mxu0 %v212
    %373 = vmatpush1.bf16.msra.mxu0 %v211
    %374 = vmatprep.subr.bf16.mxu0 %v208
    %375 = vmatpush1.bf16.msra.mxu0 %v207
    %376 = vmatprep.subr.bf16.mxu0 %v204
    %377 = vmatpush1.bf16.msra.mxu0 %v203
    %378 = vmatprep.subr.bf16.mxu0 %v200
    %379 = vmatpush1.bf16.msra.mxu0 %v199
    %380 = vmatprep.subr.bf16.mxu0 %v196
    %381 = vmatpush1.bf16.msra.mxu0 %v195
    %382 = vmatprep.subr.bf16.mxu0 %v192
    %383 = vmatpush1.bf16.msra.mxu0 %v191
    %384 = vmatprep.subr.bf16.mxu0 %v188
    %385 = vmatpush1.bf16.msra.mxu0 %v187
    %386 = vmatprep.subr.bf16.mxu0 0
    %387 = vmatpush2.bf16.msra.mxu0 0
    %388 = vmatprep.subr.bf16.mxu0 0
    %389 = vmatpush2.bf16.msra.mxu0 0
    %390 = vmatprep.subr.bf16.mxu0 0
    %391 = vmatpush2.bf16.msra.mxu0 0
    %392 = vmatprep.subr.bf16.mxu0 0
    %393 = vmatpush2.bf16.msra.mxu0 0
    %394 = vmatprep.subr.bf16.mxu0 0
    %395 = vmatpush2.bf16.msra.mxu0 0
    %396 = vmatprep.subr.bf16.mxu0 0
    %397 = vmatpush2.bf16.msra.mxu0 0
    %398 = vmatprep.subr.bf16.mxu0 0
    %399 = vmatpush2.bf16.msra.mxu0 0
    %400 = vmatprep.subr.bf16.mxu0 0
    %401 = vmatpush2.bf16.msra.mxu0 0
    %402 = vmatprep.mubr.bf16.mxu0 0
    %403 = vmatmul.mubr.bf16.gmra.mxu0 %v369
    %v404 = vpop.f32.mrf.mxu0
    %v405 = vadd.f32 0.0, %v404
    %v406 = vpop.f32.mrf.mxu0
    %v407 = vadd.f32 0.0, %v406
    %v408 = vpop.f32.mrf.mxu0
    %v409 = vpop.f32.mrf.mxu0
    %410 = vdwg.mxu0
    %411 = vmatprep.subr.bf16.mxu0 %v218
    %412 = vmatpush1.bf16.msra.mxu0 %v217
    %413 = vmatprep.subr.bf16.mxu0 %v214
    %414 = vmatpush1.bf16.msra.mxu0 %v213
    %415 = vmatprep.subr.bf16.mxu0 %v210
    %416 = vmatpush1.bf16.msra.mxu0 %v209
    %417 = vmatprep.subr.bf16.mxu0 %v206
    %418 = vmatpush1.bf16.msra.mxu0 %v205
    %419 = vmatprep.subr.bf16.mxu0 %v202
    %420 = vmatpush1.bf16.msra.mxu0 %v201
    %421 = vmatprep.subr.bf16.mxu0 %v198
    %422 = vmatpush1.bf16.msra.mxu0 %v197
    %423 = vmatprep.subr.bf16.mxu0 %v194
    %424 = vmatpush1.bf16.msra.mxu0 %v193
    %425 = vmatprep.subr.bf16.mxu0 %v190
    %426 = vmatpush1.bf16.msra.mxu0 %v189
    %427 = vmatprep.subr.bf16.mxu0 0
    %428 = vmatpush2.bf16.msra.mxu0 0
    %429 = vmatprep.subr.bf16.mxu0 0
    %430 = vmatpush2.bf16.msra.mxu0 0
    %431 = vmatprep.subr.bf16.mxu0 0
    %432 = vmatpush2.bf16.msra.mxu0 0
    %433 = vmatprep.subr.bf16.mxu0 0
    %434 = vmatpush2.bf16.msra.mxu0 0
    %435 = vmatprep.subr.bf16.mxu0 0
    %436 = vmatpush2.bf16.msra.mxu0 0
    %437 = vmatprep.subr.bf16.mxu0 0
    %438 = vmatpush2.bf16.msra.mxu0 0
    %439 = vmatprep.subr.bf16.mxu0 0
    %440 = vmatpush2.bf16.msra.mxu0 0
    %441 = vmatprep.subr.bf16.mxu0 0
    %442 = vmatpush2.bf16.msra.mxu0 0
    %443 = vmatprep.mubr.bf16.mxu0 0
    %444 = vmatmul.mubr.bf16.gmra.mxu0 %v369
    %v445 = vpop.f32.mrf.mxu0
    %v446 = vadd.f32 0.0, %v445
    %v447 = vpop.f32.mrf.mxu0
    %v448 = vadd.f32 0.0, %v447
    %v449 = vpop.f32.mrf.mxu0
    %v450 = vpop.f32.mrf.mxu0
    %451 = vdwg.mxu0
    %v452 = vadd.f32 %v365, %v405
    %v453 = vadd.f32 %v366, %v407
    %v454 = vadd.f32 %v367, %v446
    %v455 = vadd.f32 %v368, %v448
    %v456 = vsub.f32 0.0, %v452
    %v457 = vsub.f32 0.0, %v453
    %v458 = vsub.f32 0.0, %v454
    %v459 = vmul.f32 %v456, 1.442695
    %v460 = vpow.pop %v459
    %v461 = vmul.f32 %v457, 1.442695
    %v462 = vpow.pop %v461
    %v463 = vmul.f32 %v458, 1.442695
    %v464 = vpow.pop %v463
    %v465 = vadd.f32 %v460, 1.0
    %v466 = vadd.f32 %v462, 1.0
    %v467 = vadd.f32 %v464, 1.0
    %v468 = vrcp.pop %v465
    %v469 = vmul.f32 1.0, %v468
    %v470 = vrcp.pop %v466
    %v471 = vmul.f32 1.0, %v470
    %v472 = vrcp.pop %v467
    %v473 = vmul.f32 1.0, %v472
    %v474 = vtanh.pop %v455
    %v475 = vmul.f32 %v471, %v358
    %v476 = vmul.f32 %v469, %v474
    %v477 = vadd.f32 %v475, %v476
    %v478 = vtanh.pop %v477
    %v479 = vmul.f32 %v473, %v478
    %s480 = scalar_lea.vmem [#allocation9], 8
    %481 = vst [vmem:[%s480] sm:$0xff] %v479
    %s482 = scalar_lea.vmem [#allocation4], 32
    %v483 = vld [vmem:[%s482] sm:$0xff]
    %v484 = vld [vmem:[%s482 + $0x8] sm:$0xff]
    %v485 = vunpack.c.l.bf16 %v483
    %v486 = vunpack.c.h.bf16 %v483
    %v487 = vunpack.c.l.bf16 %v484
    %v488 = vunpack.c.h.bf16 %v484
    %v489 = vpack.c.bf16 %v479, %v479
    %490 = vmatprep.subr.bf16.mxu0 %v216
    %491 = vmatpush1.bf16.msra.mxu0 %v215
    %492 = vmatprep.subr.bf16.mxu0 %v212
    %493 = vmatpush1.bf16.msra.mxu0 %v211
    %494 = vmatprep.subr.bf16.mxu0 %v208
    %495 = vmatpush1.bf16.msra.mxu0 %v207
    %496 = vmatprep.subr.bf16.mxu0 %v204
    %497 = vmatpush1.bf16.msra.mxu0 %v203
    %498 = vmatprep.subr.bf16.mxu0 %v200
    %499 = vmatpush1.bf16.msra.mxu0 %v199
    %500 = vmatprep.subr.bf16.mxu0 %v196
    %501 = vmatpush1.bf16.msra.mxu0 %v195
    %502 = vmatprep.subr.bf16.mxu0 %v192
    %503 = vmatpush1.bf16.msra.mxu0 %v191
    %504 = vmatprep.subr.bf16.mxu0 %v188
    %505 = vmatpush1.bf16.msra.mxu0 %v187
    %506 = vmatprep.subr.bf16.mxu0 0
    %507 = vmatpush2.bf16.msra.mxu0 0
    %508 = vmatprep.subr.bf16.mxu0 0
    %509 = vmatpush2.bf16.msra.mxu0 0
    %510 = vmatprep.subr.bf16.mxu0 0
    %511 = vmatpush2.bf16.msra.mxu0 0
    %512 = vmatprep.subr.bf16.mxu0 0
    %513 = vmatpush2.bf16.msra.mxu0 0
    %514 = vmatprep.subr.bf16.mxu0 0
    %515 = vmatpush2.bf16.msra.mxu0 0
    %516 = vmatprep.subr.bf16.mxu0 0
    %517 = vmatpush2.bf16.msra.mxu0 0
    %518 = vmatprep.subr.bf16.mxu0 0
    %519 = vmatpush2.bf16.msra.mxu0 0
    %520 = vmatprep.subr.bf16.mxu0 0
    %521 = vmatpush2.bf16.msra.mxu0 0
    %522 = vmatprep.mubr.bf16.mxu0 0
    %523 = vmatmul.mubr.bf16.gmra.mxu0 %v489
    %v524 = vpop.f32.mrf.mxu0
    %v525 = vadd.f32 0.0, %v524
    %v526 = vpop.f32.mrf.mxu0
    %v527 = vadd.f32 0.0, %v526
    %v528 = vpop.f32.mrf.mxu0
    %v529 = vpop.f32.mrf.mxu0
    %530 = vdwg.mxu0
    %531 = vmatprep.subr.bf16.mxu0 %v218
    %532 = vmatpush1.bf16.msra.mxu0 %v217
    %533 = vmatprep.subr.bf16.mxu0 %v214
    %534 = vmatpush1.bf16.msra.mxu0 %v213
    %535 = vmatprep.subr.bf16.mxu0 %v210
    %536 = vmatpush1.bf16.msra.mxu0 %v209
    %537 = vmatprep.subr.bf16.mxu0 %v206
    %538 = vmatpush1.bf16.msra.mxu0 %v205
    %539 = vmatprep.subr.bf16.mxu0 %v202
    %540 = vmatpush1.bf16.msra.mxu0 %v201
    %541 = vmatprep.subr.bf16.mxu0 %v198
    %542 = vmatpush1.bf16.msra.mxu0 %v197
    %543 = vmatprep.subr.bf16.mxu0 %v194
    %544 = vmatpush1.bf16.msra.mxu0 %v193
    %545 = vmatprep.subr.bf16.mxu0 %v190
    %546 = vmatpush1.bf16.msra.mxu0 %v189
    %547 = vmatprep.subr.bf16.mxu0 0
    %548 = vmatpush2.bf16.msra.mxu0 0
    %549 = vmatprep.subr.bf16.mxu0 0
    %550 = vmatpush2.bf16.msra.mxu0 0
    %551 = vmatprep.subr.bf16.mxu0 0
    %552 = vmatpush2.bf16.msra.mxu0 0
    %553 = vmatprep.subr.bf16.mxu0 0
    %554 = vmatpush2.bf16.msra.mxu0 0
    %555 = vmatprep.subr.bf16.mxu0 0
    %556 = vmatpush2.bf16.msra.mxu0 0
    %557 = vmatprep.subr.bf16.mxu0 0
    %558 = vmatpush2.bf16.msra.mxu0 0
    %559 = vmatprep.subr.bf16.mxu0 0
    %560 = vmatpush2.bf16.msra.mxu0 0
    %561 = vmatprep.subr.bf16.mxu0 0
    %562 = vmatpush2.bf16.msra.mxu0 0
    %563 = vmatprep.mubr.bf16.mxu0 0
    %564 = vmatmul.mubr.bf16.gmra.mxu0 %v489
    %v565 = vpop.f32.mrf.mxu0
    %v566 = vadd.f32 0.0, %v565
    %v567 = vpop.f32.mrf.mxu0
    %v568 = vadd.f32 0.0, %v567
    %v569 = vpop.f32.mrf.mxu0
    %v570 = vpop.f32.mrf.mxu0
    %571 = vdwg.mxu0
    %v572 = vadd.f32 %v485, %v525
    %v573 = vadd.f32 %v486, %v527
    %v574 = vadd.f32 %v487, %v566
    %v575 = vadd.f32 %v488, %v568
    %v576 = vsub.f32 0.0, %v572
    %v577 = vsub.f32 0.0, %v573
    %v578 = vsub.f32 0.0, %v574
    %v579 = vmul.f32 %v576, 1.442695
    %v580 = vpow.pop %v579
    %v581 = vmul.f32 %v577, 1.442695
    %v582 = vpow.pop %v581
    %v583 = vmul.f32 %v578, 1.442695
    %v584 = vpow.pop %v583
    %v585 = vadd.f32 %v580, 1.0
    %v586 = vadd.f32 %v582, 1.0
    %v587 = vadd.f32 %v584, 1.0
    %v588 = vrcp.pop %v585
    %v589 = vmul.f32 1.0, %v588
    %v590 = vrcp.pop %v586
    %v591 = vmul.f32 1.0, %v590
    %v592 = vrcp.pop %v587
    %v593 = vmul.f32 1.0, %v592
    %v594 = vtanh.pop %v575
    %v595 = vmul.f32 %v591, %v477
    %v596 = vmul.f32 %v589, %v594
    %v597 = vadd.f32 %v595, %v596
    %v598 = vtanh.pop %v597
    %v599 = vmul.f32 %v593, %v598
    %s600 = scalar_lea.vmem [#allocation9], 16
    %601 = vst [vmem:[%s600] sm:$0xff] %v599
    %s602 = scalar_lea.vmem [#allocation4], 48
    %v603 = vld [vmem:[%s602] sm:$0xff]
    %v604 = vld [vmem:[%s602 + $0x8] sm:$0xff]
    %v605 = vunpack.c.l.bf16 %v603
    %v606 = vunpack.c.h.bf16 %v603
    %v607 = vunpack.c.l.bf16 %v604
    %v608 = vunpack.c.h.bf16 %v604
    %v609 = vpack.c.bf16 %v599, %v599
    %610 = vmatprep.subr.bf16.mxu0 %v216
    %611 = vmatpush1.bf16.msra.mxu0 %v215
    %612 = vmatprep.subr.bf16.mxu0 %v212
    %613 = vmatpush1.bf16.msra.mxu0 %v211
    %614 = vmatprep.subr.bf16.mxu0 %v208
    %615 = vmatpush1.bf16.msra.mxu0 %v207
    %616 = vmatprep.subr.bf16.mxu0 %v204
    %617 = vmatpush1.bf16.msra.mxu0 %v203
    %618 = vmatprep.subr.bf16.mxu0 %v200
    %619 = vmatpush1.bf16.msra.mxu0 %v199
    %620 = vmatprep.subr.bf16.mxu0 %v196
    %621 = vmatpush1.bf16.msra.mxu0 %v195
    %622 = vmatprep.subr.bf16.mxu0 %v192
    %623 = vmatpush1.bf16.msra.mxu0 %v191
    %624 = vmatprep.subr.bf16.mxu0 %v188
    %625 = vmatpush1.bf16.msra.mxu0 %v187
    %626 = vmatprep.subr.bf16.mxu0 0
    %627 = vmatpush2.bf16.msra.mxu0 0
    %628 = vmatprep.subr.bf16.mxu0 0
    %629 = vmatpush2.bf16.msra.mxu0 0
    %630 = vmatprep.subr.bf16.mxu0 0
    %631 = vmatpush2.bf16.msra.mxu0 0
    %632 = vmatprep.subr.bf16.mxu0 0
    %633 = vmatpush2.bf16.msra.mxu0 0
    %634 = vmatprep.subr.bf16.mxu0 0
    %635 = vmatpush2.bf16.msra.mxu0 0
    %636 = vmatprep.subr.bf16.mxu0 0
    %637 = vmatpush2.bf16.msra.mxu0 0
    %638 = vmatprep.subr.bf16.mxu0 0
    %639 = vmatpush2.bf16.msra.mxu0 0
    %640 = vmatprep.subr.bf16.mxu0 0
    %641 = vmatpush2.bf16.msra.mxu0 0
    %642 = vmatprep.mubr.bf16.mxu0 0
    %643 = vmatmul.mubr.bf16.gmra.mxu0 %v609
    %v644 = vpop.f32.mrf.mxu0
    %v645 = vadd.f32 0.0, %v644
    %v646 = vpop.f32.mrf.mxu0
    %v647 = vadd.f32 0.0, %v646
    %v648 = vpop.f32.mrf.mxu0
    %v649 = vpop.f32.mrf.mxu0
    %650 = vdwg.mxu0
    %651 = vmatprep.subr.bf16.mxu0 %v218
    %652 = vmatpush1.bf16.msra.mxu0 %v217
    %653 = vmatprep.subr.bf16.mxu0 %v214
    %654 = vmatpush1.bf16.msra.mxu0 %v213
    %655 = vmatprep.subr.bf16.mxu0 %v210
    %656 = vmatpush1.bf16.msra.mxu0 %v209
    %657 = vmatprep.subr.bf16.mxu0 %v206
    %658 = vmatpush1.bf16.msra.mxu0 %v205
    %659 = vmatprep.subr.bf16.mxu0 %v202
    %660 = vmatpush1.bf16.msra.mxu0 %v201
    %661 = vmatprep.subr.bf16.mxu0 %v198
    %662 = vmatpush1.bf16.msra.mxu0 %v197
    %663 = vmatprep.subr.bf16.mxu0 %v194
    %664 = vmatpush1.bf16.msra.mxu0 %v193
    %665 = vmatprep.subr.bf16.mxu0 %v190
    %666 = vmatpush1.bf16.msra.mxu0 %v189
    %667 = vmatprep.subr.bf16.mxu0 0
    %668 = vmatpush2.bf16.msra.mxu0 0
    %669 = vmatprep.subr.bf16.mxu0 0
    %670 = vmatpush2.bf16.msra.mxu0 0
    %671 = vmatprep.subr.bf16.mxu0 0
    %672 = vmatpush2.bf16.msra.mxu0 0
    %673 = vmatprep.subr.bf16.mxu0 0
    %674 = vmatpush2.bf16.msra.mxu0 0
    %675 = vmatprep.subr.bf16.mxu0 0
    %676 = vmatpush2.bf16.msra.mxu0 0
    %677 = vmatprep.subr.bf16.mxu0 0
    %678 = vmatpush2.bf16.msra.mxu0 0
    %679 = vmatprep.subr.bf16.mxu0 0
    %680 = vmatpush2.bf16.msra.mxu0 0
    %681 = vmatprep.subr.bf16.mxu0 0
    %682 = vmatpush2.bf16.msra.mxu0 0
    %683 = vmatprep.mubr.bf16.mxu0 0
    %684 = vmatmul.mubr.bf16.gmra.mxu0 %v609
    %v685 = vpop.f32.mrf.mxu0
    %v686 = vadd.f32 0.0, %v685
    %v687 = vpop.f32.mrf.mxu0
    %v688 = vadd.f32 0.0, %v687
    %v689 = vpop.f32.mrf.mxu0
    %v690 = vpop.f32.mrf.mxu0
    %691 = vdwg.mxu0
    %v692 = vadd.f32 %v605, %v645
    %v693 = vadd.f32 %v606, %v647
    %v694 = vadd.f32 %v607, %v686
    %v695 = vadd.f32 %v608, %v688
    %v696 = vsub.f32 0.0, %v692
    %v697 = vsub.f32 0.0, %v693
    %v698 = vsub.f32 0.0, %v694
    %v699 = vmul.f32 %v696, 1.442695
    %v700 = vpow.pop %v699
    %v701 = vmul.f32 %v697, 1.442695
    %v702 = vpow.pop %v701
    %v703 = vmul.f32 %v698, 1.442695
    %v704 = vpow.pop %v703
    %v705 = vadd.f32 %v700, 1.0
    %v706 = vadd.f32 %v702, 1.0
    %v707 = vadd.f32 %v704, 1.0
    %v708 = vrcp.pop %v705
    %v709 = vmul.f32 1.0, %v708
    %v710 = vrcp.pop %v706
    %v711 = vmul.f32 1.0, %v710
    %v712 = vrcp.pop %v707
    %v713 = vmul.f32 1.0, %v712
    %v714 = vtanh.pop %v695
    %v715 = vmul.f32 %v711, %v597
    %v716 = vmul.f32 %v709, %v714
    %v717 = vadd.f32 %v715, %v716
    %v718 = vtanh.pop %v717
    %v719 = vmul.f32 %v713, %v718
    %s720 = scalar_lea.vmem [#allocation9], 24
    %721 = vst [vmem:[%s720] sm:$0xff] %v719
    %s722 = scalar_lea.vmem [#allocation4], 64
    %v723 = vld [vmem:[%s722] sm:$0xff]
    %v724 = vld [vmem:[%s722 + $0x8] sm:$0xff]
    %v725 = vunpack.c.l.bf16 %v723
    %v726 = vunpack.c.h.bf16 %v723
    %v727 = vunpack.c.l.bf16 %v724
    %v728 = vunpack.c.h.bf16 %v724
    %v729 = vpack.c.bf16 %v719, %v719
    %730 = vmatprep.subr.bf16.mxu0 %v216
    %731 = vmatpush1.bf16.msra.mxu0 %v215
    %732 = vmatprep.subr.bf16.mxu0 %v212
    %733 = vmatpush1.bf16.msra.mxu0 %v211
    %734 = vmatprep.subr.bf16.mxu0 %v208
    %735 = vmatpush1.bf16.msra.mxu0 %v207
    %736 = vmatprep.subr.bf16.mxu0 %v204
    %737 = vmatpush1.bf16.msra.mxu0 %v203
    %738 = vmatprep.subr.bf16.mxu0 %v200
    %739 = vmatpush1.bf16.msra.mxu0 %v199
    %740 = vmatprep.subr.bf16.mxu0 %v196
    %741 = vmatpush1.bf16.msra.mxu0 %v195
    %742 = vmatprep.subr.bf16.mxu0 %v192
    %743 = vmatpush1.bf16.msra.mxu0 %v191
    %744 = vmatprep.subr.bf16.mxu0 %v188
    %745 = vmatpush1.bf16.msra.mxu0 %v187
    %746 = vmatprep.subr.bf16.mxu0 0
    %747 = vmatpush2.bf16.msra.mxu0 0
    %748 = vmatprep.subr.bf16.mxu0 0
    %749 = vmatpush2.bf16.msra.mxu0 0
    %750 = vmatprep.subr.bf16.mxu0 0
    %751 = vmatpush2.bf16.msra.mxu0 0
    %752 = vmatprep.subr.bf16.mxu0 0
    %753 = vmatpush2.bf16.msra.mxu0 0
    %754 = vmatprep.subr.bf16.mxu0 0
    %755 = vmatpush2.bf16.msra.mxu0 0
    %756 = vmatprep.subr.bf16.mxu0 0
    %757 = vmatpush2.bf16.msra.mxu0 0
    %758 = vmatprep.subr.bf16.mxu0 0
    %759 = vmatpush2.bf16.msra.mxu0 0
    %760 = vmatprep.subr.bf16.mxu0 0
    %761 = vmatpush2.bf16.msra.mxu0 0
    %762 = vmatprep.mubr.bf16.mxu0 0
    %763 = vmatmul.mubr.bf16.gmra.mxu0 %v729
    %v764 = vpop.f32.mrf.mxu0
    %v765 = vadd.f32 0.0, %v764
    %v766 = vpop.f32.mrf.mxu0
    %v767 = vadd.f32 0.0, %v766
    %v768 = vpop.f32.mrf.mxu0
    %v769 = vpop.f32.mrf.mxu0
    %770 = vdwg.mxu0
    %771 = vmatprep.subr.bf16.mxu0 %v218
    %772 = vmatpush1.bf16.msra.mxu0 %v217
    %773 = vmatprep.subr.bf16.mxu0 %v214
    %774 = vmatpush1.bf16.msra.mxu0 %v213
    %775 = vmatprep.subr.bf16.mxu0 %v210
    %776 = vmatpush1.bf16.msra.mxu0 %v209
    %777 = vmatprep.subr.bf16.mxu0 %v206
    %778 = vmatpush1.bf16.msra.mxu0 %v205
    %779 = vmatprep.subr.bf16.mxu0 %v202
    %780 = vmatpush1.bf16.msra.mxu0 %v201
    %781 = vmatprep.subr.bf16.mxu0 %v198
    %782 = vmatpush1.bf16.msra.mxu0 %v197
    %783 = vmatprep.subr.bf16.mxu0 %v194
    %784 = vmatpush1.bf16.msra.mxu0 %v193
    %785 = vmatprep.subr.bf16.mxu0 %v190
    %786 = vmatpush1.bf16.msra.mxu0 %v189
    %787 = vmatprep.subr.bf16.mxu0 0
    %788 = vmatpush2.bf16.msra.mxu0 0
    %789 = vmatprep.subr.bf16.mxu0 0
    %790 = vmatpush2.bf16.msra.mxu0 0
    %791 = vmatprep.subr.bf16.mxu0 0
    %792 = vmatpush2.bf16.msra.mxu0 0
    %793 = vmatprep.subr.bf16.mxu0 0
    %794 = vmatpush2.bf16.msra.mxu0 0
    %795 = vmatprep.subr.bf16.mxu0 0
    %796 = vmatpush2.bf16.msra.mxu0 0
    %797 = vmatprep.subr.bf16.mxu0 0
    %798 = vmatpush2.bf16.msra.mxu0 0
    %799 = vmatprep.subr.bf16.mxu0 0
    %800 = vmatpush2.bf16.msra.mxu0 0
    %801 = vmatprep.subr.bf16.mxu0 0
    %802 = vmatpush2.bf16.msra.mxu0 0
    %803 = vmatprep.mubr.bf16.mxu0 0
    %804 = vmatmul.mubr.bf16.gmra.mxu0 %v729
    %v805 = vpop.f32.mrf.mxu0
    %v806 = vadd.f32 0.0, %v805
    %v807 = vpop.f32.mrf.mxu0
    %v808 = vadd.f32 0.0, %v807
    %v809 = vpop.f32.mrf.mxu0
    %v810 = vpop.f32.mrf.mxu0
    %811 = vdwg.mxu0
    %v812 = vadd.f32 %v725, %v765
    %v813 = vadd.f32 %v726, %v767
    %v814 = vadd.f32 %v727, %v806
    %v815 = vadd.f32 %v728, %v808
    %v816 = vsub.f32 0.0, %v812
    %v817 = vsub.f32 0.0, %v813
    %v818 = vsub.f32 0.0, %v814
    %v819 = vmul.f32 %v816, 1.442695
    %v820 = vpow.pop %v819
    %v821 = vmul.f32 %v817, 1.442695
    %v822 = vpow.pop %v821
    %v823 = vmul.f32 %v818, 1.442695
    %v824 = vpow.pop %v823
    %v825 = vadd.f32 %v820, 1.0
    %v826 = vadd.f32 %v822, 1.0
    %v827 = vadd.f32 %v824, 1.0
    %v828 = vrcp.pop %v825
    %v829 = vmul.f32 1.0, %v828
    %v830 = vrcp.pop %v826
    %v831 = vmul.f32 1.0, %v830
    %v832 = vrcp.pop %v827
    %v833 = vmul.f32 1.0, %v832
    %v834 = vtanh.pop %v815
    %v835 = vmul.f32 %v831, %v717
    %v836 = vmul.f32 %v829, %v834
    %v837 = vadd.f32 %v835, %v836
    %v838 = vtanh.pop %v837
    %v839 = vmul.f32 %v833, %v838
    %s840 = scalar_lea.vmem [#allocation9], 32
    %841 = vst [vmem:[%s840] sm:$0xff] %v839
    %s842 = scalar_lea.vmem [#allocation4], 80
    %v843 = vld [vmem:[%s842] sm:$0xff]
    %v844 = vld [vmem:[%s842 + $0x8] sm:$0xff]
    %v845 = vunpack.c.l.bf16 %v843
    %v846 = vunpack.c.h.bf16 %v843
    %v847 = vunpack.c.l.bf16 %v844
    %v848 = vunpack.c.h.bf16 %v844
    %v849 = vpack.c.bf16 %v839, %v839
    %850 = vmatprep.subr.bf16.mxu0 %v216
    %851 = vmatpush1.bf16.msra.mxu0 %v215
    %852 = vmatprep.subr.bf16.mxu0 %v212
    %853 = vmatpush1.bf16.msra.mxu0 %v211
    %854 = vmatprep.subr.bf16.mxu0 %v208
    %855 = vmatpush1.bf16.msra.mxu0 %v207
    %856 = vmatprep.subr.bf16.mxu0 %v204
    %857 = vmatpush1.bf16.msra.mxu0 %v203
    %858 = vmatprep.subr.bf16.mxu0 %v200
    %859 = vmatpush1.bf16.msra.mxu0 %v199
    %860 = vmatprep.subr.bf16.mxu0 %v196
    %861 = vmatpush1.bf16.msra.mxu0 %v195
    %862 = vmatprep.subr.bf16.mxu0 %v192
    %863 = vmatpush1.bf16.msra.mxu0 %v191
    %864 = vmatprep.subr.bf16.mxu0 %v188
    %865 = vmatpush1.bf16.msra.mxu0 %v187
    %866 = vmatprep.subr.bf16.mxu0 0
    %867 = vmatpush2.bf16.msra.mxu0 0
    %868 = vmatprep.subr.bf16.mxu0 0
    %869 = vmatpush2.bf16.msra.mxu0 0
    %870 = vmatprep.subr.bf16.mxu0 0
    %871 = vmatpush2.bf16.msra.mxu0 0
    %872 = vmatprep.subr.bf16.mxu0 0
    %873 = vmatpush2.bf16.msra.mxu0 0
    %874 = vmatprep.subr.bf16.mxu0 0
    %875 = vmatpush2.bf16.msra.mxu0 0
    %876 = vmatprep.subr.bf16.mxu0 0
    %877 = vmatpush2.bf16.msra.mxu0 0
    %878 = vmatprep.subr.bf16.mxu0 0
    %879 = vmatpush2.bf16.msra.mxu0 0
    %880 = vmatprep.subr.bf16.mxu0 0
    %881 = vmatpush2.bf16.msra.mxu0 0
    %882 = vmatprep.mubr.bf16.mxu0 0
    %883 = vmatmul.mubr.bf16.gmra.mxu0 %v849
    %v884 = vpop.f32.mrf.mxu0
    %v885 = vadd.f32 0.0, %v884
    %v886 = vpop.f32.mrf.mxu0
    %v887 = vadd.f32 0.0, %v886
    %v888 = vpop.f32.mrf.mxu0
    %v889 = vpop.f32.mrf.mxu0
    %890 = vdwg.mxu0
    %891 = vmatprep.subr.bf16.mxu0 %v218
    %892 = vmatpush1.bf16.msra.mxu0 %v217
    %893 = vmatprep.subr.bf16.mxu0 %v214
    %894 = vmatpush1.bf16.msra.mxu0 %v213
    %895 = vmatprep.subr.bf16.mxu0 %v210
    %896 = vmatpush1.bf16.msra.mxu0 %v209
    %897 = vmatprep.subr.bf16.mxu0 %v206
    %898 = vmatpush1.bf16.msra.mxu0 %v205
    %899 = vmatprep.subr.bf16.mxu0 %v202
    %900 = vmatpush1.bf16.msra.mxu0 %v201
    %901 = vmatprep.subr.bf16.mxu0 %v198
    %902 = vmatpush1.bf16.msra.mxu0 %v197
    %903 = vmatprep.subr.bf16.mxu0 %v194
    %904 = vmatpush1.bf16.msra.mxu0 %v193
    %905 = vmatprep.subr.bf16.mxu0 %v190
    %906 = vmatpush1.bf16.msra.mxu0 %v189
    %907 = vmatprep.subr.bf16.mxu0 0
    %908 = vmatpush2.bf16.msra.mxu0 0
    %909 = vmatprep.subr.bf16.mxu0 0
    %910 = vmatpush2.bf16.msra.mxu0 0
    %911 = vmatprep.subr.bf16.mxu0 0
    %912 = vmatpush2.bf16.msra.mxu0 0
    %913 = vmatprep.subr.bf16.mxu0 0
    %914 = vmatpush2.bf16.msra.mxu0 0
    %915 = vmatprep.subr.bf16.mxu0 0
    %916 = vmatpush2.bf16.msra.mxu0 0
    %917 = vmatprep.subr.bf16.mxu0 0
    %918 = vmatpush2.bf16.msra.mxu0 0
    %919 = vmatprep.subr.bf16.mxu0 0
    %920 = vmatpush2.bf16.msra.mxu0 0
    %921 = vmatprep.subr.bf16.mxu0 0
    %922 = vmatpush2.bf16.msra.mxu0 0
    %923 = vmatprep.mubr.bf16.mxu0 0
    %924 = vmatmul.mubr.bf16.gmra.mxu0 %v849
    %v925 = vpop.f32.mrf.mxu0
    %v926 = vadd.f32 0.0, %v925
    %v927 = vpop.f32.mrf.mxu0
    %v928 = vadd.f32 0.0, %v927
    %v929 = vpop.f32.mrf.mxu0
    %v930 = vpop.f32.mrf.mxu0
    %931 = vdwg.mxu0
    %v932 = vadd.f32 %v845, %v885
    %v933 = vadd.f32 %v846, %v887
    %v934 = vadd.f32 %v847, %v926
    %v935 = vadd.f32 %v848, %v928
    %v936 = vsub.f32 0.0, %v932
    %v937 = vsub.f32 0.0, %v933
    %v938 = vsub.f32 0.0, %v934
    %v939 = vmul.f32 %v936, 1.442695
    %v940 = vpow.pop %v939
    %v941 = vmul.f32 %v937, 1.442695
    %v942 = vpow.pop %v941
    %v943 = vmul.f32 %v938, 1.442695
    %v944 = vpow.pop %v943
    %v945 = vadd.f32 %v940, 1.0
    %v946 = vadd.f32 %v942, 1.0
    %v947 = vadd.f32 %v944, 1.0
    %v948 = vrcp.pop %v945
    %v949 = vmul.f32 1.0, %v948
    %v950 = vrcp.pop %v946
    %v951 = vmul.f32 1.0, %v950
    %v952 = vrcp.pop %v947
    %v953 = vmul.f32 1.0, %v952
    %v954 = vtanh.pop %v935
    %v955 = vmul.f32 %v951, %v837
    %v956 = vmul.f32 %v949, %v954
    %v957 = vadd.f32 %v955, %v956
    %v958 = vtanh.pop %v957
    %v959 = vmul.f32 %v953, %v958
    %s960 = scalar_lea.vmem [#allocation9], 40
    %961 = vst [vmem:[%s960] sm:$0xff] %v959
    %s962 = scalar_lea.vmem [#allocation4], 96
    %v963 = vld [vmem:[%s962] sm:$0xff]
    %v964 = vld [vmem:[%s962 + $0x8] sm:$0xff]
    %v965 = vunpack.c.l.bf16 %v963
    %v966 = vunpack.c.h.bf16 %v963
    %v967 = vunpack.c.l.bf16 %v964
    %v968 = vunpack.c.h.bf16 %v964
    %v969 = vpack.c.bf16 %v959, %v959
    %970 = vmatprep.subr.bf16.mxu0 %v216
    %971 = vmatpush1.bf16.msra.mxu0 %v215
    %972 = vmatprep.subr.bf16.mxu0 %v212
    %973 = vmatpush1.bf16.msra.mxu0 %v211
    %974 = vmatprep.subr.bf16.mxu0 %v208
    %975 = vmatpush1.bf16.msra.mxu0 %v207
    %976 = vmatprep.subr.bf16.mxu0 %v204
    %977 = vmatpush1.bf16.msra.mxu0 %v203
    %978 = vmatprep.subr.bf16.mxu0 %v200
    %979 = vmatpush1.bf16.msra.mxu0 %v199
    %980 = vmatprep.subr.bf16.mxu0 %v196
    %981 = vmatpush1.bf16.msra.mxu0 %v195
    %982 = vmatprep.subr.bf16.mxu0 %v192
    %983 = vmatpush1.bf16.msra.mxu0 %v191
    %984 = vmatprep.subr.bf16.mxu0 %v188
    %985 = vmatpush1.bf16.msra.mxu0 %v187
    %986 = vmatprep.subr.bf16.mxu0 0
    %987 = vmatpush2.bf16.msra.mxu0 0
    %988 = vmatprep.subr.bf16.mxu0 0
    %989 = vmatpush2.bf16.msra.mxu0 0
    %990 = vmatprep.subr.bf16.mxu0 0
    %991 = vmatpush2.bf16.msra.mxu0 0
    %992 = vmatprep.subr.bf16.mxu0 0
    %993 = vmatpush2.bf16.msra.mxu0 0
    %994 = vmatprep.subr.bf16.mxu0 0
    %995 = vmatpush2.bf16.msra.mxu0 0
    %996 = vmatprep.subr.bf16.mxu0 0
    %997 = vmatpush2.bf16.msra.mxu0 0
    %998 = vmatprep.subr.bf16.mxu0 0
    %999 = vmatpush2.bf16.msra.mxu0 0
    %1000 = vmatprep.subr.bf16.mxu0 0
    %1001 = vmatpush2.bf16.msra.mxu0 0
    %1002 = vmatprep.mubr.bf16.mxu0 0
    %1003 = vmatmul.mubr.bf16.gmra.mxu0 %v969
    %v1004 = vpop.f32.mrf.mxu0
    %v1005 = vadd.f32 0.0, %v1004
    %v1006 = vpop.f32.mrf.mxu0
    %v1007 = vadd.f32 0.0, %v1006
    %v1008 = vpop.f32.mrf.mxu0
    %v1009 = vpop.f32.mrf.mxu0
    %1010 = vdwg.mxu0
    %1011 = vmatprep.subr.bf16.mxu0 %v218
    %1012 = vmatpush1.bf16.msra.mxu0 %v217
    %1013 = vmatprep.subr.bf16.mxu0 %v214
    %1014 = vmatpush1.bf16.msra.mxu0 %v213
    %1015 = vmatprep.subr.bf16.mxu0 %v210
    %1016 = vmatpush1.bf16.msra.mxu0 %v209
    %1017 = vmatprep.subr.bf16.mxu0 %v206
    %1018 = vmatpush1.bf16.msra.mxu0 %v205
    %1019 = vmatprep.subr.bf16.mxu0 %v202
    %1020 = vmatpush1.bf16.msra.mxu0 %v201
    %1021 = vmatprep.subr.bf16.mxu0 %v198
    %1022 = vmatpush1.bf16.msra.mxu0 %v197
    %1023 = vmatprep.subr.bf16.mxu0 %v194
    %1024 = vmatpush1.bf16.msra.mxu0 %v193
    %1025 = vmatprep.subr.bf16.mxu0 %v190
    %1026 = vmatpush1.bf16.msra.mxu0 %v189
    %1027 = vmatprep.subr.bf16.mxu0 0
    %1028 = vmatpush2.bf16.msra.mxu0 0
    %1029 = vmatprep.subr.bf16.mxu0 0
    %1030 = vmatpush2.bf16.msra.mxu0 0
    %1031 = vmatprep.subr.bf16.mxu0 0
    %1032 = vmatpush2.bf16.msra.mxu0 0
    %1033 = vmatprep.subr.bf16.mxu0 0
    %1034 = vmatpush2.bf16.msra.mxu0 0
    %1035 = vmatprep.subr.bf16.mxu0 0
    %1036 = vmatpush2.bf16.msra.mxu0 0
    %1037 = vmatprep.subr.bf16.mxu0 0
    %1038 = vmatpush2.bf16.msra.mxu0 0
    %1039 = vmatprep.subr.bf16.mxu0 0
    %1040 = vmatpush2.bf16.msra.mxu0 0
    %1041 = vmatprep.subr.bf16.mxu0 0
    %1042 = vmatpush2.bf16.msra.mxu0 0
    %1043 = vmatprep.mubr.bf16.mxu0 0
    %1044 = vmatmul.mubr.bf16.gmra.mxu0 %v969
    %v1045 = vpop.f32.mrf.mxu0
    %v1046 = vadd.f32 0.0, %v1045
    %v1047 = vpop.f32.mrf.mxu0
    %v1048 = vadd.f32 0.0, %v1047
    %v1049 = vpop.f32.mrf.mxu0
    %v1050 = vpop.f32.mrf.mxu0
    %1051 = vdwg.mxu0
    %v1052 = vadd.f32 %v965, %v1005
    %v1053 = vadd.f32 %v966, %v1007
    %v1054 = vadd.f32 %v967, %v1046
    %v1055 = vadd.f32 %v968, %v1048
    %v1056 = vsub.f32 0.0, %v1052
    %v1057 = vsub.f32 0.0, %v1053
    %v1058 = vsub.f32 0.0, %v1054
    %v1059 = vmul.f32 %v1056, 1.442695
    %v1060 = vpow.pop %v1059
    %v1061 = vmul.f32 %v1057, 1.442695
    %v1062 = vpow.pop %v1061
    %v1063 = vmul.f32 %v1058, 1.442695
    %v1064 = vpow.pop %v1063
    %v1065 = vadd.f32 %v1060, 1.0
    %v1066 = vadd.f32 %v1062, 1.0
    %v1067 = vadd.f32 %v1064, 1.0
    %v1068 = vrcp.pop %v1065
    %v1069 = vmul.f32 1.0, %v1068
    %v1070 = vrcp.pop %v1066
    %v1071 = vmul.f32 1.0, %v1070
    %v1072 = vrcp.pop %v1067
    %v1073 = vmul.f32 1.0, %v1072
    %v1074 = vtanh.pop %v1055
    %v1075 = vmul.f32 %v1071, %v957
    %v1076 = vmul.f32 %v1069, %v1074
    %v1077 = vadd.f32 %v1075, %v1076
    %v1078 = vtanh.pop %v1077
    %v1079 = vmul.f32 %v1073, %v1078
    %s1080 = scalar_lea.vmem [#allocation9], 48
    %1081 = vst [vmem:[%s1080] sm:$0xff] %v1079
    %s1082 = scalar_lea.vmem [#allocation4], 112
    %v1083 = vld [vmem:[%s1082] sm:$0xff]
    %v1084 = vld [vmem:[%s1082 + $0x8] sm:$0xff]
    %v1085 = vunpack.c.l.bf16 %v1083
    %v1086 = vunpack.c.h.bf16 %v1083
    %v1087 = vunpack.c.l.bf16 %v1084
    %v1088 = vunpack.c.h.bf16 %v1084
    %v1089 = vpack.c.bf16 %v1079, %v1079
    %1090 = vmatprep.subr.bf16.mxu0 %v216
    %1091 = vmatpush1.bf16.msra.mxu0 %v215
    %1092 = vmatprep.subr.bf16.mxu0 %v212
    %1093 = vmatpush1.bf16.msra.mxu0 %v211
    %1094 = vmatprep.subr.bf16.mxu0 %v208
    %1095 = vmatpush1.bf16.msra.mxu0 %v207
    %1096 = vmatprep.subr.bf16.mxu0 %v204
    %1097 = vmatpush1.bf16.msra.mxu0 %v203
    %1098 = vmatprep.subr.bf16.mxu0 %v200
    %1099 = vmatpush1.bf16.msra.mxu0 %v199
    %1100 = vmatprep.subr.bf16.mxu0 %v196
    %1101 = vmatpush1.bf16.msra.mxu0 %v195
    %1102 = vmatprep.subr.bf16.mxu0 %v192
    %1103 = vmatpush1.bf16.msra.mxu0 %v191
    %1104 = vmatprep.subr.bf16.mxu0 %v188
    %1105 = vmatpush1.bf16.msra.mxu0 %v187
    %1106 = vmatprep.subr.bf16.mxu0 0
    %1107 = vmatpush2.bf16.msra.mxu0 0
    %1108 = vmatprep.subr.bf16.mxu0 0
    %1109 = vmatpush2.bf16.msra.mxu0 0
    %1110 = vmatprep.subr.bf16.mxu0 0
    %1111 = vmatpush2.bf16.msra.mxu0 0
    %1112 = vmatprep.subr.bf16.mxu0 0
    %1113 = vmatpush2.bf16.msra.mxu0 0
    %1114 = vmatprep.subr.bf16.mxu0 0
    %1115 = vmatpush2.bf16.msra.mxu0 0
    %1116 = vmatprep.subr.bf16.mxu0 0
    %1117 = vmatpush2.bf16.msra.mxu0 0
    %1118 = vmatprep.subr.bf16.mxu0 0
    %1119 = vmatpush2.bf16.msra.mxu0 0
    %1120 = vmatprep.subr.bf16.mxu0 0
    %1121 = vmatpush2.bf16.msra.mxu0 0
    %1122 = vmatprep.mubr.bf16.mxu0 0
    %1123 = vmatmul.mubr.bf16.gmra.mxu0 %v1089
    %v1124 = vpop.f32.mrf.mxu0
    %v1125 = vadd.f32 0.0, %v1124
    %v1126 = vpop.f32.mrf.mxu0
    %v1127 = vadd.f32 0.0, %v1126
    %v1128 = vpop.f32.mrf.mxu0
    %v1129 = vpop.f32.mrf.mxu0
    %1130 = vdwg.mxu0
    %1131 = vmatprep.subr.bf16.mxu0 %v218
    %1132 = vmatpush1.bf16.msra.mxu0 %v217
    %1133 = vmatprep.subr.bf16.mxu0 %v214
    %1134 = vmatpush1.bf16.msra.mxu0 %v213
    %1135 = vmatprep.subr.bf16.mxu0 %v210
    %1136 = vmatpush1.bf16.msra.mxu0 %v209
    %1137 = vmatprep.subr.bf16.mxu0 %v206
    %1138 = vmatpush1.bf16.msra.mxu0 %v205
    %1139 = vmatprep.subr.bf16.mxu0 %v202
    %1140 = vmatpush1.bf16.msra.mxu0 %v201
    %1141 = vmatprep.subr.bf16.mxu0 %v198
    %1142 = vmatpush1.bf16.msra.mxu0 %v197
    %1143 = vmatprep.subr.bf16.mxu0 %v194
    %1144 = vmatpush1.bf16.msra.mxu0 %v193
    %1145 = vmatprep.subr.bf16.mxu0 %v190
    %1146 = vmatpush1.bf16.msra.mxu0 %v189
    %1147 = vmatprep.subr.bf16.mxu0 0
    %1148 = vmatpush2.bf16.msra.mxu0 0
    %1149 = vmatprep.subr.bf16.mxu0 0
    %1150 = vmatpush2.bf16.msra.mxu0 0
    %1151 = vmatprep.subr.bf16.mxu0 0
    %1152 = vmatpush2.bf16.msra.mxu0 0
    %1153 = vmatprep.subr.bf16.mxu0 0
    %1154 = vmatpush2.bf16.msra.mxu0 0
    %1155 = vmatprep.subr.bf16.mxu0 0
    %1156 = vmatpush2.bf16.msra.mxu0 0
    %1157 = vmatprep.subr.bf16.mxu0 0
    %1158 = vmatpush2.bf16.msra.mxu0 0
    %1159 = vmatprep.subr.bf16.mxu0 0
    %1160 = vmatpush2.bf16.msra.mxu0 0
    %1161 = vmatprep.subr.bf16.mxu0 0
    %1162 = vmatpush2.bf16.msra.mxu0 0
    %1163 = vmatprep.mubr.bf16.mxu0 0
    %1164 = vmatmul.mubr.bf16.gmra.mxu0 %v1089
    %v1165 = vpop.f32.mrf.mxu0
    %v1166 = vadd.f32 0.0, %v1165
    %v1167 = vpop.f32.mrf.mxu0
    %v1168 = vadd.f32 0.0, %v1167
    %v1169 = vpop.f32.mrf.mxu0
    %v1170 = vpop.f32.mrf.mxu0
    %1171 = vdwg.mxu0
    %v1172 = vadd.f32 %v1085, %v1125
    %v1173 = vadd.f32 %v1086, %v1127
    %v1174 = vadd.f32 %v1087, %v1166
    %v1175 = vadd.f32 %v1088, %v1168
    %v1176 = vsub.f32 0.0, %v1172
    %v1177 = vsub.f32 0.0, %v1173
    %v1178 = vsub.f32 0.0, %v1174
    %v1179 = vmul.f32 %v1176, 1.442695
    %v1180 = vpow.pop %v1179
    %v1181 = vmul.f32 %v1177, 1.442695
    %v1182 = vpow.pop %v1181
    %v1183 = vmul.f32 %v1178, 1.442695
    %v1184 = vpow.pop %v1183
    %v1185 = vadd.f32 %v1180, 1.0
    %v1186 = vadd.f32 %v1182, 1.0
    %v1187 = vadd.f32 %v1184, 1.0
    %v1188 = vrcp.pop %v1185
    %v1189 = vmul.f32 1.0, %v1188
    %v1190 = vrcp.pop %v1186
    %v1191 = vmul.f32 1.0, %v1190
    %v1192 = vrcp.pop %v1187
    %v1193 = vmul.f32 1.0, %v1192
    %v1194 = vtanh.pop %v1175
    %v1195 = vmul.f32 %v1191, %v1077
    %v1196 = vmul.f32 %v1189, %v1194
    %v1197 = vadd.f32 %v1195, %v1196
    %v1198 = vtanh.pop %v1197
    %v1199 = vmul.f32 %v1193, %v1198
    %s1200 = scalar_lea.vmem [#allocation9], 56
    %1201 = vst [vmem:[%s1200] sm:$0xff] %v1199
    %1202 = vst [vmem:[#allocation2] sm:$0xff] %v1199
    %1203 = vst [vmem:[#allocation3] sm:$0xff] %v1197
    %1204 = vst [vmem:[#allocation10] sm:$0xff] %v1197
    // Predicated region
    $region22: #{tpu_custom_call.1} parent=1 // pred_check
      _
    $region23: #{tpu_custom_call.1} parent=1 // pred_check_branch
      %1206 = sbr.rel (0) target = $region25
    $region24: #{tpu_custom_call.1} parent=1 // pred_region
      %s1208 = ssub.s32 1024, 1024
      %1209 = vsyncadd [#allocation6], %s1208
      %s1210 = sshll.u32 [#allocation9], 4
      %s1211 = int_to_ptr.vmem [resolvable:$true] %s1210
      %1216 = dma.vmem_to_hbm [thread:$0]  %s1211, 1024, %s2, [#allocation6], 128, 128, 8
    $region25: #{tpu_custom_call.1} parent=1 // pred_fallthru
      _
    // Predicated region
    $region26: #{tpu_custom_call.1} parent=1 // pred_check
      _
    $region27: #{tpu_custom_call.1} parent=1 // pred_check_branch
      %1218 = sbr.rel (0) target = $region29
    $region28: #{tpu_custom_call.1} parent=1 // pred_region
      %s1220 = ssub.s32 128, 128
      %1221 = vsyncadd [#allocation11], %s1220
      %s1223 = sshll.u32 [#allocation10], 4
      %s1224 = int_to_ptr.vmem [resolvable:$true] %s1223
      %1226 = dma.vmem_to_hbm [thread:$0]  %s1224, 128, %s3, [#allocation11]
    $region29: #{tpu_custom_call.1} parent=1 // pred_fallthru
      _
    // Predicated region
    $region30: #{tpu_custom_call.1} parent=1 // pred_check
      _
    $region31: #{tpu_custom_call.1} parent=1 // pred_check_branch
      %1228 = sbr.rel (0) target = $region33
    $region32: #{tpu_custom_call.1} parent=1 // pred_region
      %1229 = dma.done [#allocation6], 1024
    $region33: #{tpu_custom_call.1} parent=1 // pred_fallthru
      _
    // Predicated region
    $region34: #{tpu_custom_call.1} parent=1 // pred_check
      _
    $region35: #{tpu_custom_call.1} parent=1 // pred_check_branch
      %1231 = sbr.rel (0) target = $region37
    $region36: #{tpu_custom_call.1} parent=1 // pred_region
      %1232 = dma.done [#allocation11], 128
    $region37: #{tpu_custom_call.1} parent=1 // pred_fallthru
      _
    %1233 = vsyncpa [#allocation5], 1
    %1234 = vsyncpa [#allocation8], 1
    %1235 = vsyncpa [#allocation6], 1
    %1236 = vsyncpa [#allocation11], 1

</llo_original>
